<compile_context>
chip_gen: v7x
topology: tpu7x:2x2x1
jax: 0.10.0
libtpu: 0.0.40
codegen_flags: <defaults>
</compile_context>

<pallas_src>
import functools

import jax
import jax.numpy as jnp
import numpy as np
from jax import lax
from jax.experimental import pallas as pl
from jax.experimental.pallas import tpu as pltpu

_HIGHEST = jax.lax.Precision.HIGHEST


def _packed_ce_kernel(x_ref, tgt_ref, st_ref, s_ref, u_ref, out_ref, *,
                      num_classes, pack, n_samples):
    """Per-tile partial loss; `pack` samples of `num_classes` logits per 128-lane row."""
    c = num_classes
    r = pack
    w = r * c                        # == 128 by construction (c divides 128)
    log2c = c.bit_length() - 1       # c is a power of two

    i = pl.program_id(0)

    x = x_ref[...].astype(jnp.float32)            # (tr, w)   packed logits (f32 upcast in VMEM)
    tgt = tgt_ref[...]                            # (tr, r)   int32 class ids, packed
    st = st_ref[...]                              # (r, w)    segment membership (broadcast)
    s = s_ref[...]                                # (w, r)    segment membership (reduce)
    u = u_ref[...]                                # (w, w+r)  [kron(I_r, T) | kron(I_r, rowsum T)]
    tr = x.shape[0]

    # ---- soft targets + their per-sample sum in one MXU pass --------------------------------
    lane = lax.broadcasted_iota(jnp.int32, (tr, w), 1)
    cpos = lane & (c - 1)                         # class index within each packed sample
    tgt_lane = jnp.dot(tgt.astype(jnp.float32), st,
                       precision=_HIGHEST, preferred_element_type=jnp.float32)   # (tr, w)
    onehot = (tgt_lane.astype(jnp.int32) == cpos).astype(jnp.float32)            # (tr, w)
    yu = jnp.dot(onehot, u, precision=_HIGHEST, preferred_element_type=jnp.float32)
    y = yu[:, :w]                                 # (tr, w)  y_true, packed
    y_sum = yu[:, w:]                             # (tr, r)  sum_c y_true per sample

    # ---- per-sample (segmented) max: masked bidirectional roll doubling tree ----------------
    seg = lane >> log2c                           # sample slot owning each lane
    m = x
    off = 1
    while off < c:
        for sh in (off, w - off):                 # both directions -> roll-convention agnostic
            mv = pltpu.roll(m, shift=sh, axis=1)
            sv = pltpu.roll(seg, shift=sh, axis=1)
            m = jnp.maximum(m, jnp.where(sv == seg, mv, -jnp.inf))
        off *= 2
    # every lane now holds the max logit of the sample that owns it

    # ---- cross entropy with probability targets, log-softmax never materialized -------------
    p = jnp.exp(x - m)                                                            # (tr, w)
    sum_exp = jnp.dot(p, s, precision=_HIGHEST,
                      preferred_element_type=jnp.float32)                         # (tr, r)
    pick0 = (cpos == 0).astype(jnp.float32)       # single-term sum -> exact per-sample max
    m_seg = jnp.dot(m * pick0, s, precision=_HIGHEST,
                    preferred_element_type=jnp.float32)                           # (tr, r)
    lse = jnp.log(sum_exp) + m_seg                                                # (tr, r)
    yx = jnp.dot(y * x, s, precision=_HIGHEST,
                 preferred_element_type=jnp.float32)                              # (tr, r)

    # ---- mask pad / overhang samples and reduce to a per-tile partial -----------------------
    t_idx = lax.broadcasted_iota(jnp.int32, (tr, r), 0)
    r_idx = lax.broadcasted_iota(jnp.int32, (tr, r), 1)
    sample_id = (i * tr + t_idx) * r + r_idx
    per_sample = jnp.where(sample_id < n_samples, lse * y_sum - yx, 0.0)
    out_ref[...] = jnp.broadcast_to(jnp.sum(per_sample), out_ref.shape)


def _rowwise_ce_kernel(x_ref, tgt_ref, taug_ref, out_ref, *, num_classes, n_samples):
    """Fallback: one sample per row (class count does not divide 128)."""
    c = num_classes
    i = pl.program_id(0)

    x = x_ref[...].astype(jnp.float32)            # (tn, c)
    tgt = tgt_ref[...]                            # (tn, 1) int32
    taug = taug_ref[...]                          # (c, c + 1): [T | rowsum(T)]
    tn = x.shape[0]

    class_ids = lax.broadcasted_iota(jnp.int32, (tn, c), 1)
    onehot = (class_ids == tgt).astype(jnp.float32)
    yaug = jnp.dot(onehot, taug, precision=_HIGHEST, preferred_element_type=jnp.float32)
    y = yaug[:, :c]
    y_sum = yaug[:, c:]

    m = jnp.max(x, axis=-1, keepdims=True)
    lse = jnp.log(jnp.sum(jnp.exp(x - m), axis=-1, keepdims=True)) + m
    yx = jnp.sum(y * x, axis=-1, keepdims=True)

    rows = i * tn + lax.broadcasted_iota(jnp.int32, (tn, 1), 0)
    per_sample = jnp.where(rows < n_samples, lse * y_sum - yx, 0.0)
    out_ref[...] = jnp.broadcast_to(jnp.sum(per_sample), out_ref.shape)


def _round_up(v, m):
    return ((v + m - 1) // m) * m


def _choose_rows(total_rows, bytes_per_row, max_rows=2048, budget_bytes=6 * 1024 * 1024):
    """Rows per tile: fill ~budget per double-buffered logits block, multiple of 32."""
    rows = (budget_bytes // max(int(bytes_per_row), 1)) // 32 * 32
    rows = max(32, min(max_rows, rows))
    if total_rows <= rows:
        return int(total_rows)          # single tile: block == full array dims
    return int(rows)


def custom_targets_cross_entropy_loss(logits, target, cls_probs, eta=1.0, tile_rows=None):
    """Forward pass of CustomTargetsCrossEntropyLoss (mean reduction, no class weights)."""
    n, c = logits.shape
    assert cls_probs.shape == (c, c)
    itemsize = jnp.dtype(logits.dtype).itemsize

    # Fold eta into the class-probability table once (tiny C x C op, plain JAX).
    t_mat = ((1.0 - eta) * jnp.eye(c, dtype=jnp.float32)
             + eta * cls_probs.astype(jnp.float32))
    t_rowsum = jnp.sum(t_mat, axis=1, keepdims=True)                 # (c, 1)
    target = target.astype(jnp.int32)

    cparams = pltpu.CompilerParams(
        dimension_semantics=("parallel",),
        vmem_limit_bytes=48 * 1024 * 1024,
    )

    if 2 <= c < 128 and 128 % c == 0:
        # ---------------- lane-packed path: r samples per 128-lane row -----------------------
        r = 128 // c
        w = 128
        n_rows = int(pl.cdiv(n, r))
        n_pad = n_rows * r
        if n_pad != n:
            logits = jnp.pad(logits, ((0, n_pad - n), (0, 0)))
            target = jnp.pad(target, (0, n_pad - n))
        x_packed = logits.reshape(n_rows, w)                          # free row-major view
        t_packed = target.reshape(n_rows, r)

        eye_r = jnp.eye(r, dtype=jnp.float32)
        seg_bcast = jnp.kron(eye_r, jnp.ones((1, c), jnp.float32))    # (r, w)
        seg_reduce = jnp.kron(eye_r, jnp.ones((c, 1), jnp.float32))   # (w, r)
        u_aug = jnp.concatenate(
            [jnp.kron(eye_r, t_mat), jnp.kron(eye_r, t_rowsum)], axis=1)   # (w, w + r)

        if tile_rows is None:
            tile_rows = _choose_rows(n_rows, w * itemsize)
        tile_rows = min(int(tile_rows), n_rows)
        grid = int(pl.cdiv(n_rows, tile_rows))

        kernel = functools.partial(_packed_ce_kernel, num_classes=c, pack=r, n_samples=n)

        cost = pl.CostEstimate(
            flops=int(2 * n_rows * w * (w + 5 * r) + 24 * n_rows * w),
            transcendentals=int(n_rows * (w + r)),
            bytes_accessed=int(n_rows * w * itemsize + n_rows * r * 4
                               + (w * (w + 2 * r) + r * w) * 4 + grid * 8 * 128 * 4),
        )

        partials = pl.pallas_call(
            kernel,
            out_shape=jax.ShapeDtypeStruct((grid, 8, 128), jnp.float32),
            grid=(grid,),
            in_specs=[
                pl.BlockSpec((tile_rows, w), lambda i: (i, 0)),   # streamed packed logits
                pl.BlockSpec((tile_rows, r), lambda i: (i, 0)),   # streamed packed targets
                pl.BlockSpec((r, w), lambda i: (0, 0)),           # constant tables
                pl.BlockSpec((w, r), lambda i: (0, 0)),
                pl.BlockSpec((w, w + r), lambda i: (0, 0)),
            ],
            out_specs=pl.BlockSpec((1, 8, 128), lambda i: (i, 0, 0)),
            compiler_params=cparams,
            cost_estimate=cost,
        )(x_packed, t_packed, seg_bcast, seg_reduce, u_aug)
    else:
        # ---------------- fallback: one sample per row ---------------------------------------
        t_aug = jnp.concatenate([t_mat, t_rowsum], axis=1)            # (c, c + 1)
        target_2d = target.reshape(n, 1)
        lanes = _round_up(c, 128)
        if tile_rows is None:
            tile_rows = _choose_rows(n, lanes * itemsize)
        tile_rows = min(int(tile_rows), n)
        grid = int(pl.cdiv(n, tile_rows))

        kernel = functools.partial(_rowwise_ce_kernel, num_classes=c, n_samples=n)

        cost = pl.CostEstimate(
            flops=int(2 * n * c * (c + 1) + 10 * n * c),
            transcendentals=int(n * c + n),
            bytes_accessed=int(n * c * itemsize + n * 4 + c * (c + 1) * 4 + grid * 8 * 128 * 4),
        )

        partials = pl.pallas_call(
            kernel,
            out_shape=jax.ShapeDtypeStruct((grid, 8, 128), jnp.float32),
            grid=(grid,),
            in_specs=[
                pl.BlockSpec((tile_rows, c), lambda i: (i, 0)),
                pl.BlockSpec((tile_rows, 1), lambda i: (i, 0)),
                pl.BlockSpec((c, c + 1), lambda i: (0, 0)),
            ],
            out_specs=pl.BlockSpec((1, 8, 128), lambda i: (i, 0, 0)),
            compiler_params=cparams,
            cost_estimate=cost,
        )(logits, target_2d, t_aug)

    # 'mean' reduction over the true batch size (not the padded / tiled total).
    return jnp.sum(partials[:, 0, 0]) / n


def _reference_loss(logits, target, cls_probs, eta):
    """Pure-JAX reference mirroring torch CrossEntropyLoss with probability targets."""
    c = cls_probs.shape[0]
    y_prob = cls_probs[target]
    target_oh = jax.nn.one_hot(target, c, dtype=jnp.float32)
    y_true = (1.0 - eta) * target_oh + eta * y_prob
    logp = jax.nn.log_softmax(logits.astype(jnp.float32), axis=-1)
    return jnp.mean(-jnp.sum(y_true * logp, axis=-1))


if __name__ == "__main__":
    key = jax.random.PRNGKey(0)

    def make_cls_probs(c):
        # Deterministic unimodal rows p[j, k] ~ exp(-|j - k|), row-normalized.
        idx = jnp.arange(c)
        dist = jnp.abs(idx[:, None] - idx[None, :]).astype(jnp.float32)
        p = jnp.exp(-dist)
        return p / jnp.sum(p, axis=1, keepdims=True)

    checks = [
        # (n, c, eta, dtype, tile_rows)
        (8,   4,  0.85, jnp.float32, None),   # tiny batch, packed path, single tile, pad masking
        (999, 16, 0.60, jnp.float32, 16),     # packed path, multi-tile, overhang + pad masking
        (200, 10, 0.70, jnp.float32, 64),     # rowwise fallback (C does not divide 128)
        (256, 4,  1.00, jnp.bfloat16, None),  # packed path, bf16 logits streamed natively
    ]
    for n, c, eta, dtype, tr in checks:
        k1, k2, key = jax.random.split(key, 3)
        logits = jax.random.normal(k1, (n, c), dtype=jnp.float32).astype(dtype)
        target = jax.random.randint(k2, (n,), 0, c, dtype=jnp.int32)
        probs = make_cls_probs(c)
        out = jax.block_until_ready(
            custom_targets_cross_entropy_loss(logits, target, probs, eta=eta, tile_rows=tr))
        ref = jax.block_until_ready(_reference_loss(logits, target, probs, eta))
        np.testing.assert_allclose(np.asarray(out), np.asarray(ref), rtol=1e-5, atol=1e-5)

    print("KERNEL_OK")
</pallas_src>

<mosaic_0001>
module attributes {stable_mosaic.version = 11 : i64} {
  func.func @_packed_ce_kernel(%arg0: i32, %arg1: memref<1x128xf32, #tpu.memory_space<vmem>>, %arg2: memref<1x32xi32, #tpu.memory_space<vmem>>, %arg3: memref<32x128xf32, #tpu.memory_space<vmem>>, %arg4: memref<128x32xf32, #tpu.memory_space<vmem>>, %arg5: memref<128x160xf32, #tpu.memory_space<vmem>>, %arg6: memref<1x8x128xf32, #tpu.memory_space<vmem>>) attributes {dimension_semantics = [#tpu.dimension_semantics<parallel>], iteration_bounds = array<i64: 1>, scalar_prefetch = 0 : i64, scratch_operands = 0 : i64, tpu.core_type = #tpu.core_type<tc>, window_params = [{transform_indices = @transform_0, window_bounds = array<i64: 1, 128>}, {transform_indices = @transform_1, window_bounds = array<i64: 1, 32>}, {pipeline_mode = #tpu.pipeline_mode<synchronous>, transform_indices = @transform_2, window_bounds = array<i64: 32, 128>}, {pipeline_mode = #tpu.pipeline_mode<synchronous>, transform_indices = @transform_3, window_bounds = array<i64: 128, 32>}, {pipeline_mode = #tpu.pipeline_mode<synchronous>, transform_indices = @transform_4, window_bounds = array<i64: 128, 160>}, {transform_indices = @transform_5, window_bounds = array<i64: 1, 8, 128>}]} {
    %c0 = arith.constant 0 : index
    %c0_0 = arith.constant 0 : index
    %0 = vector.load %arg1[%c0, %c0_0] : memref<1x128xf32, #tpu.memory_space<vmem>>, vector<1x128xf32>
    %c0_1 = arith.constant 0 : index
    %c0_2 = arith.constant 0 : index
    %1 = vector.load %arg2[%c0_1, %c0_2] : memref<1x32xi32, #tpu.memory_space<vmem>>, vector<1x32xi32>
    %c0_3 = arith.constant 0 : index
    %c0_4 = arith.constant 0 : index
    %2 = vector.load %arg3[%c0_3, %c0_4] : memref<32x128xf32, #tpu.memory_space<vmem>>, vector<32x128xf32>
    %c0_5 = arith.constant 0 : index
    %c0_6 = arith.constant 0 : index
    %3 = vector.load %arg4[%c0_5, %c0_6] : memref<128x32xf32, #tpu.memory_space<vmem>>, vector<128x32xf32>
    %c0_7 = arith.constant 0 : index
    %c0_8 = arith.constant 0 : index
    %4 = vector.load %arg5[%c0_7, %c0_8] : memref<128x160xf32, #tpu.memory_space<vmem>>, vector<128x160xf32>
    %5 = tpu.iota {dimensions = array<i32: 1>} : vector<1x128xi32>
    %c3_i32 = arith.constant 3 : i32
    %6 = vector.broadcast %c3_i32 : i32 to vector<1x128xi32>
    %7 = arith.andi %5, %6 : vector<1x128xi32>
    %8 = arith.sitofp %1 : vector<1x32xi32> to vector<1x32xf32>
    %cst = arith.constant dense<0.000000e+00> : vector<1x128xf32>
    %9 = tpu.matmul %8, %2, %cst {dimension_numbers = #tpu.dot_dimension_numbers<[1], [0], [0], [1], [0, 0, 1, 1], [], []>, precision = #tpu.contract_precision<fp32>} : vector<1x32xf32>, vector<32x128xf32>, vector<1x128xf32> -> vector<1x128xf32>
    %10 = arith.fptosi %9 : vector<1x128xf32> to vector<1x128xi32>
    %11 = arith.cmpi eq, %10, %7 : vector<1x128xi32>
    %12 = arith.extui %11 : vector<1x128xi1> to vector<1x128xi32>
    %13 = arith.sitofp %12 : vector<1x128xi32> to vector<1x128xf32>
    %cst_9 = arith.constant dense<0.000000e+00> : vector<1x160xf32>
    %14 = tpu.matmul %13, %4, %cst_9 {dimension_numbers = #tpu.dot_dimension_numbers<[1], [0], [0], [1], [0, 0, 1, 1], [], []>, precision = #tpu.contract_precision<fp32>} : vector<1x128xf32>, vector<128x160xf32>, vector<1x160xf32> -> vector<1x160xf32>
    %15 = vector.extract_strided_slice %14 {offsets = [0, 0], sizes = [1, 128], strides = [1, 1]} : vector<1x160xf32> to vector<1x128xf32>
    %16 = vector.extract_strided_slice %14 {offsets = [0, 128], sizes = [1, 32], strides = [1, 1]} : vector<1x160xf32> to vector<1x32xf32>
    %c2_i32 = arith.constant 2 : i32
    %17 = vector.broadcast %c2_i32 : i32 to vector<1x128xi32>
    %18 = arith.shrsi %5, %17 : vector<1x128xi32>
    %c1_i32 = arith.constant 1 : i32
    %19 = tpu.dynamic_rotate %0 by %c1_i32 dim 1 : vector<1x128xf32>, i32 -> vector<1x128xf32>
    %c1_i32_10 = arith.constant 1 : i32
    %20 = tpu.dynamic_rotate %18 by %c1_i32_10 dim 1 : vector<1x128xi32>, i32 -> vector<1x128xi32>
    %21 = arith.cmpi eq, %20, %18 : vector<1x128xi32>
    %cst_11 = arith.constant 0xFF800000 : f32
    %22 = vector.broadcast %cst_11 : f32 to vector<1x128xf32>
    %23 = arith.select %21, %19, %22 : vector<1x128xi1>, vector<1x128xf32>
    %24 = arith.maximumf %0, %23 : vector<1x128xf32>
    %c127_i32 = arith.constant 127 : i32
    %25 = tpu.dynamic_rotate %24 by %c127_i32 dim 1 : vector<1x128xf32>, i32 -> vector<1x128xf32>
    %c127_i32_12 = arith.constant 127 : i32
    %26 = tpu.dynamic_rotate %18 by %c127_i32_12 dim 1 : vector<1x128xi32>, i32 -> vector<1x128xi32>
    %27 = arith.cmpi eq, %26, %18 : vector<1x128xi32>
    %cst_13 = arith.constant 0xFF800000 : f32
    %28 = vector.broadcast %cst_13 : f32 to vector<1x128xf32>
    %29 = arith.select %27, %25, %28 : vector<1x128xi1>, vector<1x128xf32>
    %30 = arith.maximumf %24, %29 : vector<1x128xf32>
    %c2_i32_14 = arith.constant 2 : i32
    %31 = tpu.dynamic_rotate %30 by %c2_i32_14 dim 1 : vector<1x128xf32>, i32 -> vector<1x128xf32>
    %c2_i32_15 = arith.constant 2 : i32
    %32 = tpu.dynamic_rotate %18 by %c2_i32_15 dim 1 : vector<1x128xi32>, i32 -> vector<1x128xi32>
    %33 = arith.cmpi eq, %32, %18 : vector<1x128xi32>
    %cst_16 = arith.constant 0xFF800000 : f32
    %34 = vector.broadcast %cst_16 : f32 to vector<1x128xf32>
    %35 = arith.select %33, %31, %34 : vector<1x128xi1>, vector<1x128xf32>
    %36 = arith.maximumf %30, %35 : vector<1x128xf32>
    %c126_i32 = arith.constant 126 : i32
    %37 = tpu.dynamic_rotate %36 by %c126_i32 dim 1 : vector<1x128xf32>, i32 -> vector<1x128xf32>
    %c126_i32_17 = arith.constant 126 : i32
    %38 = tpu.dynamic_rotate %18 by %c126_i32_17 dim 1 : vector<1x128xi32>, i32 -> vector<1x128xi32>
    %39 = arith.cmpi eq, %38, %18 : vector<1x128xi32>
    %cst_18 = arith.constant 0xFF800000 : f32
    %40 = vector.broadcast %cst_18 : f32 to vector<1x128xf32>
    %41 = arith.select %39, %37, %40 : vector<1x128xi1>, vector<1x128xf32>
    %42 = arith.maximumf %36, %41 : vector<1x128xf32>
    %43 = arith.subf %0, %42 : vector<1x128xf32>
    %44 = math.exp %43 : vector<1x128xf32>
    %cst_19 = arith.constant dense<0.000000e+00> : vector<1x32xf32>
    %45 = tpu.matmul %44, %3, %cst_19 {dimension_numbers = #tpu.dot_dimension_numbers<[1], [0], [0], [1], [0, 0, 1, 1], [], []>, precision = #tpu.contract_precision<fp32>} : vector<1x128xf32>, vector<128x32xf32>, vector<1x32xf32> -> vector<1x32xf32>
    %c0_i32 = arith.constant 0 : i32
    %46 = vector.broadcast %c0_i32 : i32 to vector<1x128xi32>
    %47 = arith.cmpi eq, %7, %46 : vector<1x128xi32>
    %48 = arith.extui %47 : vector<1x128xi1> to vector<1x128xi32>
    %49 = arith.sitofp %48 : vector<1x128xi32> to vector<1x128xf32>
    %50 = arith.mulf %42, %49 : vector<1x128xf32>
    %cst_20 = arith.constant dense<0.000000e+00> : vector<1x32xf32>
    %51 = tpu.matmul %50, %3, %cst_20 {dimension_numbers = #tpu.dot_dimension_numbers<[1], [0], [0], [1], [0, 0, 1, 1], [], []>, precision = #tpu.contract_precision<fp32>} : vector<1x128xf32>, vector<128x32xf32>, vector<1x32xf32> -> vector<1x32xf32>
    %52 = math.log %45 : vector<1x32xf32>
    %53 = arith.addf %52, %51 : vector<1x32xf32>
    %54 = arith.mulf %15, %0 : vector<1x128xf32>
    %cst_21 = arith.constant dense<0.000000e+00> : vector<1x32xf32>
    %55 = tpu.matmul %54, %3, %cst_21 {dimension_numbers = #tpu.dot_dimension_numbers<[1], [0], [0], [1], [0, 0, 1, 1], [], []>, precision = #tpu.contract_precision<fp32>} : vector<1x128xf32>, vector<128x32xf32>, vector<1x32xf32> -> vector<1x32xf32>
    %56 = tpu.iota {dimensions = array<i32: 0>} : vector<1x32xi32>
    %57 = tpu.iota {dimensions = array<i32: 1>} : vector<1x32xi32>
    %c1_i32_22 = arith.constant 1 : i32
    %58 = arith.muli %arg0, %c1_i32_22 : i32
    %59 = vector.broadcast %58 : i32 to vector<1x32xi32>
    %60 = arith.addi %59, %56 : vector<1x32xi32>
    %c32_i32 = arith.constant 32 : i32
    %61 = vector.broadcast %c32_i32 : i32 to vector<1x32xi32>
    %62 = arith.muli %60, %61 : vector<1x32xi32>
    %63 = arith.addi %62, %57 : vector<1x32xi32>
    %c8_i32 = arith.constant 8 : i32
    %64 = vector.broadcast %c8_i32 : i32 to vector<1x32xi32>
    %65 = arith.cmpi slt, %63, %64 : vector<1x32xi32>
    %66 = arith.mulf %53, %16 : vector<1x32xf32>
    %67 = arith.subf %66, %55 : vector<1x32xf32>
    %cst_23 = arith.constant 0.000000e+00 : f32
    %68 = vector.broadcast %cst_23 : f32 to vector<1x32xf32>
    %69 = arith.select %65, %67, %68 : vector<1x32xi1>, vector<1x32xf32>
    %70 = vector.shape_cast %69 : vector<1x32xf32> to vector<1x1x32xf32>
    %cst_24 = arith.constant dense<0.000000e+00> : vector<1xf32>
    %71 = vector.multi_reduction <add>, %70, %cst_24 [1, 2] : vector<1x1x32xf32> to vector<1xf32>
    %72 = vector.shape_cast %71 : vector<1xf32> to vector<1x1x1xf32>
    %73 = vector.extract %72[0, 0, 0] : f32 from vector<1x1x1xf32>
    %74 = vector.broadcast %73 : f32 to vector<1x8x128xf32>
    %c0_25 = arith.constant 0 : index
    %c0_26 = arith.constant 0 : index
    %c0_27 = arith.constant 0 : index
    %75 = vector.load %arg6[%c0_25, %c0_26, %c0_27] : memref<1x8x128xf32, #tpu.memory_space<vmem>>, vector<1x8x128xf32>
    tpu.vector_store %arg6[%c0_25, %c0_26, %c0_27], %74 {strides = array<i32>} : memref<1x8x128xf32, #tpu.memory_space<vmem>>, vector<1x8x128xf32>,
    return
  }
  func.func @transform_0(%arg0: i32) -> (i32, i32) {
    %c0_i32 = arith.constant 0 : i32
    %c0_i32_0 = arith.constant 0 : i32
    return %arg0, %c0_i32 : i32, i32
  }
  func.func @transform_1(%arg0: i32) -> (i32, i32) {
    %c0_i32 = arith.constant 0 : i32
    %c0_i32_0 = arith.constant 0 : i32
    return %arg0, %c0_i32 : i32, i32
  }
  func.func @transform_2(%arg0: i32) -> (i32, i32) {
    %c0_i32 = arith.constant 0 : i32
    %c0_i32_0 = arith.constant 0 : i32
    %c0_i32_1 = arith.constant 0 : i32
    return %c0_i32, %c0_i32_0 : i32, i32
  }
  func.func @transform_3(%arg0: i32) -> (i32, i32) {
    %c0_i32 = arith.constant 0 : i32
    %c0_i32_0 = arith.constant 0 : i32
    %c0_i32_1 = arith.constant 0 : i32
    return %c0_i32, %c0_i32_0 : i32, i32
  }
  func.func @transform_4(%arg0: i32) -> (i32, i32) {
    %c0_i32 = arith.constant 0 : i32
    %c0_i32_0 = arith.constant 0 : i32
    %c0_i32_1 = arith.constant 0 : i32
    return %c0_i32, %c0_i32_0 : i32, i32
  }
  func.func @transform_5(%arg0: i32) -> (i32, i32, i32) {
    %c0_i32 = arith.constant 0 : i32
    %c0_i32_0 = arith.constant 0 : i32
    %c0_i32_1 = arith.constant 0 : i32
    return %arg0, %c0_i32, %c0_i32_0 : i32, i32, i32
  }
}

</mosaic_0001>

<llo_original>
// kernel: tpu_custom_call.1
$region0: #{tpu_custom_call.1}
  #allocation0 [shape = 'u32[]', space=smem, size = 0x4, offset = 0x4, fixed_abs, tag = 'smem constant byte address 0x4 - core index']
  #allocation1 [shape = 'u32[144,128]{1,0:T(1,128)}', space=vmem, size = 0x12000, scoped, tag = 'internal scratch']
  %s0 = inlined_call_operand.vmem [shape: f32[1,128], index: 0, kind: input, shape index: {}]
  %s1 = inlined_call_operand.vmem [shape: s32[1,32], index: 1, kind: input, shape index: {}]
  %s2 = inlined_call_operand.vmem [shape: f32[32,128], index: 2, kind: input, shape index: {}]
  %s3 = inlined_call_operand.vmem [shape: f32[128,32], index: 3, kind: input, shape index: {}]
  %s4 = inlined_call_operand.vmem [shape: f32[128,160], index: 4, kind: input, shape index: {}]
  %s5 = inlined_call_operand.hbm [shape: f32[1,8,128], index: 5, kind: output, shape index: {}]
  %s6 = sld [smem:[#allocation0]]
  $region30: #{tpu_custom_call.1} parent=0
    _
  %s8 = ssub.s32 1, %s6
  %s9 = scalar_select 0, %s8, %s6
  $region1: #{tpu_custom_call.1} parent=0
    #allocation2 [shape = 'u8[4096]{0}', space=vmem, size = 0x1000, scoped, tag = 'output window, operand 0, single buffered']
    #allocation3 [shape = 's32[1]{0}', space=sflag, size = 0x4, scoped, tag = 'scoped memory for tpu_custom_call.1']
    %10 = vsyncpa [#allocation3], 0
    // Predicated region
    $region2: #{tpu_custom_call.1} parent=1 // pred_check
      _
    $region3: #{tpu_custom_call.1} parent=1 // pred_check_branch
      %12 = sbr.rel (0) target = $region5
    $region4: #{tpu_custom_call.1} parent=1 // pred_region
      _
    $region5: #{tpu_custom_call.1} parent=1 // pred_fallthru
      _
    // Predicated region
    $region6: #{tpu_custom_call.1} parent=1 // pred_check
      _
    $region7: #{tpu_custom_call.1} parent=1 // pred_check_branch
      %14 = sbr.rel (0) target = $region9
    $region8: #{tpu_custom_call.1} parent=1 // pred_region
      _
    $region9: #{tpu_custom_call.1} parent=1 // pred_fallthru
      _
    // Predicated region
    $region10: #{tpu_custom_call.1} parent=1 // pred_check
      _
    $region11: #{tpu_custom_call.1} parent=1 // pred_check_branch
      %16 = sbr.rel (0) target = $region13
    $region12: #{tpu_custom_call.1} parent=1 // pred_region
      _
    $region13: #{tpu_custom_call.1} parent=1 // pred_fallthru
      _
    // Predicated region
    $region14: #{tpu_custom_call.1} parent=1 // pred_check
      _
    $region15: #{tpu_custom_call.1} parent=1 // pred_check_branch
      %18 = sbr.rel (0) target = $region17
    $region16: #{tpu_custom_call.1} parent=1 // pred_region
      _
    $region17: #{tpu_custom_call.1} parent=1 // pred_fallthru
      _
    // Predicated region
    $region18: #{tpu_custom_call.1} parent=1 // pred_check
      _
    $region19: #{tpu_custom_call.1} parent=1 // pred_check_branch
      %20 = sbr.rel (0) target = $region21
    $region20: #{tpu_custom_call.1} parent=1 // pred_region
      _
    $region21: #{tpu_custom_call.1} parent=1 // pred_fallthru
      _
    %v21 = vld [vmem:[%s0] sm:$0x1]
    %v22 = vld [vmem:[%s1] sm:$0x1]
    %v23 = vld [vmem:[%s2] sm:$0xff]
    %v24 = vld [vmem:[%s2 + $0x8] sm:$0xff]
    %v25 = vld [vmem:[%s2 + $0x10] sm:$0xff]
    %v26 = vld [vmem:[%s2 + $0x18] sm:$0xff]
    %v27 = vld [vmem:[%s3] sm:$0xff]
    %v28 = vld [vmem:[%s3 + $0x8] sm:$0xff]
    %v29 = vld [vmem:[%s3 + $0x10] sm:$0xff]
    %v30 = vld [vmem:[%s3 + $0x18] sm:$0xff]
    %v31 = vld [vmem:[%s3 + $0x20] sm:$0xff]
    %v32 = vld [vmem:[%s3 + $0x28] sm:$0xff]
    %v33 = vld [vmem:[%s3 + $0x30] sm:$0xff]
    %v34 = vld [vmem:[%s3 + $0x38] sm:$0xff]
    %v35 = vld [vmem:[%s3 + $0x40] sm:$0xff]
    %v36 = vld [vmem:[%s3 + $0x48] sm:$0xff]
    %v37 = vld [vmem:[%s3 + $0x50] sm:$0xff]
    %v38 = vld [vmem:[%s3 + $0x58] sm:$0xff]
    %v39 = vld [vmem:[%s3 + $0x60] sm:$0xff]
    %v40 = vld [vmem:[%s3 + $0x68] sm:$0xff]
    %v41 = vld [vmem:[%s3 + $0x70] sm:$0xff]
    %v42 = vld [vmem:[%s3 + $0x78] sm:$0xff]
    %v43 = vld [vmem:[%s4] sm:$0xff]
    %v44 = vld [vmem:[%s4 + $0x8] sm:$0xff]
    %v45 = vld [vmem:[%s4 + $0x10] sm:$0xff]
    %v46 = vld [vmem:[%s4 + $0x18] sm:$0xff]
    %v47 = vld [vmem:[%s4 + $0x20] sm:$0xff]
    %v48 = vld [vmem:[%s4 + $0x28] sm:$0xff]
    %v49 = vld [vmem:[%s4 + $0x30] sm:$0xff]
    %v50 = vld [vmem:[%s4 + $0x38] sm:$0xff]
    %v51 = vld [vmem:[%s4 + $0x40] sm:$0xff]
    %v52 = vld [vmem:[%s4 + $0x48] sm:$0xff]
    %v53 = vld [vmem:[%s4 + $0x50] sm:$0xff]
    %v54 = vld [vmem:[%s4 + $0x58] sm:$0xff]
    %v55 = vld [vmem:[%s4 + $0x60] sm:$0xff]
    %v56 = vld [vmem:[%s4 + $0x68] sm:$0xff]
    %v57 = vld [vmem:[%s4 + $0x70] sm:$0xff]
    %v58 = vld [vmem:[%s4 + $0x78] sm:$0xff]
    %v59 = vld [vmem:[%s4 + $0x80] sm:$0xff]
    %v60 = vld [vmem:[%s4 + $0x88] sm:$0xff]
    %v61 = vld [vmem:[%s4 + $0x90] sm:$0xff]
    %v62 = vld [vmem:[%s4 + $0x98] sm:$0xff]
    %v63 = vld [vmem:[%s4 + $0xa0] sm:$0xff]
    %v64 = vld [vmem:[%s4 + $0xa8] sm:$0xff]
    %v65 = vld [vmem:[%s4 + $0xb0] sm:$0xff]
    %v66 = vld [vmem:[%s4 + $0xb8] sm:$0xff]
    %v67 = vld [vmem:[%s4 + $0xc0] sm:$0xff]
    %v68 = vld [vmem:[%s4 + $0xc8] sm:$0xff]
    %v69 = vld [vmem:[%s4 + $0xd0] sm:$0xff]
    %v70 = vld [vmem:[%s4 + $0xd8] sm:$0xff]
    %v71 = vld [vmem:[%s4 + $0xe0] sm:$0xff]
    %v72 = vld [vmem:[%s4 + $0xe8] sm:$0xff]
    %v73 = vld [vmem:[%s4 + $0xf0] sm:$0xff]
    %v74 = vld [vmem:[%s4 + $0xf8] sm:$0xff]
    %v75 = vlaneseq
    %v76 = vand.u32 %v75, 127
    %v77 = vand.u32 %v76, 3
    %v78 = vcvt.s32.f32 %v22
    %vm79 = vcmask 261120
    %v81 = vsel %vm79, %v78, 0
    %83 = vmatprep.subr.mxu0 0.0
    %v84 = vand.u32 %v23, 4294901760
    %85 = vmatpush1.msra.mxu0 %v84
    %86 = vmatprep.subr.mxu0 0.0
    %v87 = vand.u32 %v24, 4294901760
    %88 = vmatpush1.msra.mxu0 %v87
    %89 = vmatprep.subr.mxu0 0.0
    %v90 = vand.u32 %v25, 4294901760
    %91 = vmatpush1.msra.mxu0 %v90
    %92 = vmatprep.subr.mxu0 0.0
    %v93 = vand.u32 %v26, 4294901760
    %94 = vmatpush1.msra.mxu0 %v93
    %95 = vmatprep.subr.mxu0 0.0
    %96 = vmatpush1.msra.mxu0 0.0
    %97 = vmatprep.subr.mxu0 0.0
    %98 = vmatpush1.msra.mxu0 0.0
    %99 = vmatprep.subr.mxu0 0.0
    %100 = vmatpush1.msra.mxu0 0.0
    %101 = vmatprep.subr.mxu0 0.0
    %102 = vmatpush1.msra.mxu0 0.0
    %103 = vmatprep.subr.mxu0 0.0
    %104 = vmatpush1.msra.mxu0 0.0
    %105 = vmatprep.subr.mxu0 0.0
    %106 = vmatpush1.msra.mxu0 0.0
    %107 = vmatprep.subr.mxu0 0.0
    %108 = vmatpush1.msra.mxu0 0.0
    %109 = vmatprep.subr.mxu0 0.0
    %110 = vmatpush1.msra.mxu0 0.0
    %111 = vmatprep.subr.mxu0 0.0
    %112 = vmatpush1.msra.mxu0 0.0
    %113 = vmatprep.subr.mxu0 0.0
    %114 = vmatpush1.msra.mxu0 0.0
    %115 = vmatprep.subr.mxu0 0.0
    %116 = vmatpush1.msra.mxu0 0.0
    %117 = vmatprep.subr.mxu0 0.0
    %118 = vmatpush1.msra.mxu0 0.0
    %119 = vmatprep.subr.mxu0 0.0
    %120 = vmatpush1.msra.mxu0 0.0
    %121 = vmatprep.subr.mxu0 0.0
    %122 = vmatpush1.msra.mxu0 0.0
    %123 = vmatprep.subr.mxu0 0.0
    %124 = vmatpush1.msra.mxu0 0.0
    %125 = vmatprep.subr.mxu0 0.0
    %126 = vmatpush1.msra.mxu0 0.0
    %127 = vmatprep.subr.mxu0 0.0
    %128 = vmatpush1.msra.mxu0 0.0
    %129 = vmatprep.subr.mxu0 0.0
    %130 = vmatpush1.msra.mxu0 0.0
    %131 = vmatprep.subr.mxu0 0.0
    %132 = vmatpush1.msra.mxu0 0.0
    %133 = vmatprep.subr.mxu0 0.0
    %134 = vmatpush1.msra.mxu0 0.0
    %135 = vmatprep.subr.mxu0 0.0
    %136 = vmatpush1.msra.mxu0 0.0
    %137 = vmatprep.subr.mxu0 0.0
    %138 = vmatpush1.msra.mxu0 0.0
    %139 = vmatprep.subr.mxu0 0.0
    %140 = vmatpush1.msra.mxu0 0.0
    %141 = vmatprep.subr.mxu0 0.0
    %142 = vmatpush1.msra.mxu0 0.0
    %143 = vmatprep.subr.mxu0 0.0
    %144 = vmatpush1.msra.mxu0 0.0
    %145 = vmatprep.subr.mxu0 0.0
    %146 = vmatpush1.msra.mxu0 0.0
    %147 = vmatprep.subr.mxu0 0.0
    %148 = vmatpush1.msra.mxu0 0.0
    %149 = vmatprep.subr.mxu0 0.0
    %150 = vmatpush1.msra.mxu0 0.0
    %151 = vmatprep.mubr.f32.mxu0 0.0
    %v152 = vand.u32 %v81, 4294901760
    %v153 = vsub.f32 %v81, %v152
    %v154 = vand.u32 %v153, 4294901760
    %v155 = vsub.f32 %v153, %v154
    %v156 = vand.u32 %v155, 4294901760
    %157 = vmatmul.mubr.f32.gmra.mrb[0].mxu0 %v156
    %v158 = vpop.f32.mrb[0].mxu0
    %v159 = vadd.f32 0.0, %v158
    %v160 = vpop.f32.mrb[0].mxu0
    %161 = vdwg.mxu0
    %162 = vmatprep.subr.mxu0 0.0
    %v163 = vand.u32 %v23, 4294901760
    %v164 = vsub.f32 %v23, %v163
    %v165 = vand.u32 %v164, 4294901760
    %v166 = vsub.f32 %v164, %v165
    %v167 = vand.u32 %v166, 4294901760
    %168 = vmatpush1.msra.mxu0 %v167
    %169 = vmatprep.subr.mxu0 0.0
    %v170 = vand.u32 %v24, 4294901760
    %v171 = vsub.f32 %v24, %v170
    %v172 = vand.u32 %v171, 4294901760
    %v173 = vsub.f32 %v171, %v172
    %v174 = vand.u32 %v173, 4294901760
    %175 = vmatpush1.msra.mxu0 %v174
    %176 = vmatprep.subr.mxu0 0.0
    %v177 = vand.u32 %v25, 4294901760
    %v178 = vsub.f32 %v25, %v177
    %v179 = vand.u32 %v178, 4294901760
    %v180 = vsub.f32 %v178, %v179
    %v181 = vand.u32 %v180, 4294901760
    %182 = vmatpush1.msra.mxu0 %v181
    %183 = vmatprep.subr.mxu0 0.0
    %v184 = vand.u32 %v26, 4294901760
    %v185 = vsub.f32 %v26, %v184
    %v186 = vand.u32 %v185, 4294901760
    %v187 = vsub.f32 %v185, %v186
    %v188 = vand.u32 %v187, 4294901760
    %189 = vmatpush1.msra.mxu0 %v188
    %190 = vmatprep.subr.mxu0 0.0
    %191 = vmatpush1.msra.mxu0 0.0
    %192 = vmatprep.subr.mxu0 0.0
    %193 = vmatpush1.msra.mxu0 0.0
    %194 = vmatprep.subr.mxu0 0.0
    %195 = vmatpush1.msra.mxu0 0.0
    %196 = vmatprep.subr.mxu0 0.0
    %197 = vmatpush1.msra.mxu0 0.0
    %198 = vmatprep.subr.mxu0 0.0
    %199 = vmatpush1.msra.mxu0 0.0
    %200 = vmatprep.subr.mxu0 0.0
    %201 = vmatpush1.msra.mxu0 0.0
    %202 = vmatprep.subr.mxu0 0.0
    %203 = vmatpush1.msra.mxu0 0.0
    %204 = vmatprep.subr.mxu0 0.0
    %205 = vmatpush1.msra.mxu0 0.0
    %206 = vmatprep.subr.mxu0 0.0
    %207 = vmatpush1.msra.mxu0 0.0
    %208 = vmatprep.subr.mxu0 0.0
    %209 = vmatpush1.msra.mxu0 0.0
    %210 = vmatprep.subr.mxu0 0.0
    %211 = vmatpush1.msra.mxu0 0.0
    %212 = vmatprep.subr.mxu0 0.0
    %213 = vmatpush1.msra.mxu0 0.0
    %214 = vmatprep.subr.mxu0 0.0
    %215 = vmatpush1.msra.mxu0 0.0
    %216 = vmatprep.subr.mxu0 0.0
    %217 = vmatpush1.msra.mxu0 0.0
    %218 = vmatprep.subr.mxu0 0.0
    %219 = vmatpush1.msra.mxu0 0.0
    %220 = vmatprep.subr.mxu0 0.0
    %221 = vmatpush1.msra.mxu0 0.0
    %222 = vmatprep.subr.mxu0 0.0
    %223 = vmatpush1.msra.mxu0 0.0
    %224 = vmatprep.subr.mxu0 0.0
    %225 = vmatpush1.msra.mxu0 0.0
    %226 = vmatprep.subr.mxu0 0.0
    %227 = vmatpush1.msra.mxu0 0.0
    %228 = vmatprep.subr.mxu0 0.0
    %229 = vmatpush1.msra.mxu0 0.0
    %230 = vmatprep.subr.mxu0 0.0
    %231 = vmatpush1.msra.mxu0 0.0
    %232 = vmatprep.subr.mxu0 0.0
    %233 = vmatpush1.msra.mxu0 0.0
    %234 = vmatprep.subr.mxu0 0.0
    %235 = vmatpush1.msra.mxu0 0.0
    %236 = vmatprep.subr.mxu0 0.0
    %237 = vmatpush1.msra.mxu0 0.0
    %238 = vmatprep.subr.mxu0 0.0
    %239 = vmatpush1.msra.mxu0 0.0
    %240 = vmatprep.subr.mxu0 0.0
    %241 = vmatpush1.msra.mxu0 0.0
    %242 = vmatprep.subr.mxu0 0.0
    %243 = vmatpush1.msra.mxu0 0.0
    %244 = vmatprep.subr.mxu0 0.0
    %245 = vmatpush1.msra.mxu0 0.0
    %246 = vmatprep.mubr.f32.mxu0 0.0
    %v247 = vand.u32 %v81, 4294901760
    %248 = vmatmul.mubr.f32.gmra.mrb[0].mxu0 %v247
    %v249 = vpop.f32.mrb[0].mxu0
    %v250 = vadd.f32 %v159, %v249
    %v251 = vpop.f32.mrb[0].mxu0
    %252 = vdwg.mxu0
    %253 = vmatprep.subr.mxu0 0.0
    %v254 = vand.u32 %v23, 4294901760
    %v255 = vsub.f32 %v23, %v254
    %256 = vmatpush1.msra.mxu0 %v255
    %257 = vmatprep.subr.mxu0 0.0
    %v258 = vand.u32 %v24, 4294901760
    %v259 = vsub.f32 %v24, %v258
    %260 = vmatpush1.msra.mxu0 %v259
    %261 = vmatprep.subr.mxu0 0.0
    %v262 = vand.u32 %v25, 4294901760
    %v263 = vsub.f32 %v25, %v262
    %264 = vmatpush1.msra.mxu0 %v263
    %265 = vmatprep.subr.mxu0 0.0
    %v266 = vand.u32 %v26, 4294901760
    %v267 = vsub.f32 %v26, %v266
    %268 = vmatpush1.msra.mxu0 %v267
    %269 = vmatprep.subr.mxu0 0.0
    %270 = vmatpush1.msra.mxu0 0.0
    %271 = vmatprep.subr.mxu0 0.0
    %272 = vmatpush1.msra.mxu0 0.0
    %273 = vmatprep.subr.mxu0 0.0
    %274 = vmatpush1.msra.mxu0 0.0
    %275 = vmatprep.subr.mxu0 0.0
    %276 = vmatpush1.msra.mxu0 0.0
    %277 = vmatprep.subr.mxu0 0.0
    %278 = vmatpush1.msra.mxu0 0.0
    %279 = vmatprep.subr.mxu0 0.0
    %280 = vmatpush1.msra.mxu0 0.0
    %281 = vmatprep.subr.mxu0 0.0
    %282 = vmatpush1.msra.mxu0 0.0
    %283 = vmatprep.subr.mxu0 0.0
    %284 = vmatpush1.msra.mxu0 0.0
    %285 = vmatprep.subr.mxu0 0.0
    %286 = vmatpush1.msra.mxu0 0.0
    %287 = vmatprep.subr.mxu0 0.0
    %288 = vmatpush1.msra.mxu0 0.0
    %289 = vmatprep.subr.mxu0 0.0
    %290 = vmatpush1.msra.mxu0 0.0
    %291 = vmatprep.subr.mxu0 0.0
    %292 = vmatpush1.msra.mxu0 0.0
    %293 = vmatprep.subr.mxu0 0.0
    %294 = vmatpush1.msra.mxu0 0.0
    %295 = vmatprep.subr.mxu0 0.0
    %296 = vmatpush1.msra.mxu0 0.0
    %297 = vmatprep.subr.mxu0 0.0
    %298 = vmatpush1.msra.mxu0 0.0
    %299 = vmatprep.subr.mxu0 0.0
    %300 = vmatpush1.msra.mxu0 0.0
    %301 = vmatprep.subr.mxu0 0.0
    %302 = vmatpush1.msra.mxu0 0.0
    %303 = vmatprep.subr.mxu0 0.0
    %304 = vmatpush1.msra.mxu0 0.0
    %305 = vmatprep.subr.mxu0 0.0
    %306 = vmatpush1.msra.mxu0 0.0
    %307 = vmatprep.subr.mxu0 0.0
    %308 = vmatpush1.msra.mxu0 0.0
    %309 = vmatprep.subr.mxu0 0.0
    %310 = vmatpush1.msra.mxu0 0.0
    %311 = vmatprep.subr.mxu0 0.0
    %312 = vmatpush1.msra.mxu0 0.0
    %313 = vmatprep.subr.mxu0 0.0
    %314 = vmatpush1.msra.mxu0 0.0
    %315 = vmatprep.subr.mxu0 0.0
    %316 = vmatpush1.msra.mxu0 0.0
    %317 = vmatprep.subr.mxu0 0.0
    %318 = vmatpush1.msra.mxu0 0.0
    %319 = vmatprep.subr.mxu0 0.0
    %320 = vmatpush1.msra.mxu0 0.0
    %321 = vmatprep.subr.mxu0 0.0
    %322 = vmatpush1.msra.mxu0 0.0
    %323 = vmatprep.subr.mxu0 0.0
    %324 = vmatpush1.msra.mxu0 0.0
    %325 = vmatprep.mubr.f32.mxu0 0.0
    %v326 = vand.u32 %v81, 4294901760
    %v327 = vsub.f32 %v81, %v326
    %328 = vmatmul.mubr.f32.gmra.mrb[0].mxu0 %v327
    %v329 = vpop.f32.mrb[0].mxu0
    %v330 = vadd.f32 %v250, %v329
    %v331 = vpop.f32.mrb[0].mxu0
    %332 = vdwg.mxu0
    %333 = vmatprep.subr.mxu0 0.0
    %v334 = vand.u32 %v23, 4294901760
    %335 = vmatpush1.msra.mxu0 %v334
    %336 = vmatprep.subr.mxu0 0.0
    %v337 = vand.u32 %v24, 4294901760
    %338 = vmatpush1.msra.mxu0 %v337
    %339 = vmatprep.subr.mxu0 0.0
    %v340 = vand.u32 %v25, 4294901760
    %341 = vmatpush1.msra.mxu0 %v340
    %342 = vmatprep.subr.mxu0 0.0
    %v343 = vand.u32 %v26, 4294901760
    %344 = vmatpush1.msra.mxu0 %v343
    %345 = vmatprep.subr.mxu0 0.0
    %346 = vmatpush1.msra.mxu0 0.0
    %347 = vmatprep.subr.mxu0 0.0
    %348 = vmatpush1.msra.mxu0 0.0
    %349 = vmatprep.subr.mxu0 0.0
    %350 = vmatpush1.msra.mxu0 0.0
    %351 = vmatprep.subr.mxu0 0.0
    %352 = vmatpush1.msra.mxu0 0.0
    %353 = vmatprep.subr.mxu0 0.0
    %354 = vmatpush1.msra.mxu0 0.0
    %355 = vmatprep.subr.mxu0 0.0
    %356 = vmatpush1.msra.mxu0 0.0
    %357 = vmatprep.subr.mxu0 0.0
    %358 = vmatpush1.msra.mxu0 0.0
    %359 = vmatprep.subr.mxu0 0.0
    %360 = vmatpush1.msra.mxu0 0.0
    %361 = vmatprep.subr.mxu0 0.0
    %362 = vmatpush1.msra.mxu0 0.0
    %363 = vmatprep.subr.mxu0 0.0
    %364 = vmatpush1.msra.mxu0 0.0
    %365 = vmatprep.subr.mxu0 0.0
    %366 = vmatpush1.msra.mxu0 0.0
    %367 = vmatprep.subr.mxu0 0.0
    %368 = vmatpush1.msra.mxu0 0.0
    %369 = vmatprep.subr.mxu0 0.0
    %370 = vmatpush1.msra.mxu0 0.0
    %371 = vmatprep.subr.mxu0 0.0
    %372 = vmatpush1.msra.mxu0 0.0
    %373 = vmatprep.subr.mxu0 0.0
    %374 = vmatpush1.msra.mxu0 0.0
    %375 = vmatprep.subr.mxu0 0.0
    %376 = vmatpush1.msra.mxu0 0.0
    %377 = vmatprep.subr.mxu0 0.0
    %378 = vmatpush1.msra.mxu0 0.0
    %379 = vmatprep.subr.mxu0 0.0
    %380 = vmatpush1.msra.mxu0 0.0
    %381 = vmatprep.subr.mxu0 0.0
    %382 = vmatpush1.msra.mxu0 0.0
    %383 = vmatprep.subr.mxu0 0.0
    %384 = vmatpush1.msra.mxu0 0.0
    %385 = vmatprep.subr.mxu0 0.0
    %386 = vmatpush1.msra.mxu0 0.0
    %387 = vmatprep.subr.mxu0 0.0
    %388 = vmatpush1.msra.mxu0 0.0
    %389 = vmatprep.subr.mxu0 0.0
    %390 = vmatpush1.msra.mxu0 0.0
    %391 = vmatprep.subr.mxu0 0.0
    %392 = vmatpush1.msra.mxu0 0.0
    %393 = vmatprep.subr.mxu0 0.0
    %394 = vmatpush1.msra.mxu0 0.0
    %395 = vmatprep.subr.mxu0 0.0
    %396 = vmatpush1.msra.mxu0 0.0
    %397 = vmatprep.subr.mxu0 0.0
    %398 = vmatpush1.msra.mxu0 0.0
    %399 = vmatprep.subr.mxu0 0.0
    %400 = vmatpush1.msra.mxu0 0.0
    %401 = vmatprep.mubr.f32.mxu0 0.0
    %v402 = vand.u32 %v81, 4294901760
    %v403 = vsub.f32 %v81, %v402
    %v404 = vand.u32 %v403, 4294901760
    %405 = vmatmul.mubr.f32.gmra.mrb[0].mxu0 %v404
    %v406 = vpop.f32.mrb[0].mxu0
    %v407 = vadd.f32 %v330, %v406
    %v408 = vpop.f32.mrb[0].mxu0
    %409 = vdwg.mxu0
    %410 = vmatprep.subr.mxu0 0.0
    %v411 = vand.u32 %v23, 4294901760
    %v412 = vsub.f32 %v23, %v411
    %v413 = vand.u32 %v412, 4294901760
    %414 = vmatpush1.msra.mxu0 %v413
    %415 = vmatprep.subr.mxu0 0.0
    %v416 = vand.u32 %v24, 4294901760
    %v417 = vsub.f32 %v24, %v416
    %v418 = vand.u32 %v417, 4294901760
    %419 = vmatpush1.msra.mxu0 %v418
    %420 = vmatprep.subr.mxu0 0.0
    %v421 = vand.u32 %v25, 4294901760
    %v422 = vsub.f32 %v25, %v421
    %v423 = vand.u32 %v422, 4294901760
    %424 = vmatpush1.msra.mxu0 %v423
    %425 = vmatprep.subr.mxu0 0.0
    %v426 = vand.u32 %v26, 4294901760
    %v427 = vsub.f32 %v26, %v426
    %v428 = vand.u32 %v427, 4294901760
    %429 = vmatpush1.msra.mxu0 %v428
    %430 = vmatprep.subr.mxu0 0.0
    %431 = vmatpush1.msra.mxu0 0.0
    %432 = vmatprep.subr.mxu0 0.0
    %433 = vmatpush1.msra.mxu0 0.0
    %434 = vmatprep.subr.mxu0 0.0
    %435 = vmatpush1.msra.mxu0 0.0
    %436 = vmatprep.subr.mxu0 0.0
    %437 = vmatpush1.msra.mxu0 0.0
    %438 = vmatprep.subr.mxu0 0.0
    %439 = vmatpush1.msra.mxu0 0.0
    %440 = vmatprep.subr.mxu0 0.0
    %441 = vmatpush1.msra.mxu0 0.0
    %442 = vmatprep.subr.mxu0 0.0
    %443 = vmatpush1.msra.mxu0 0.0
    %444 = vmatprep.subr.mxu0 0.0
    %445 = vmatpush1.msra.mxu0 0.0
    %446 = vmatprep.subr.mxu0 0.0
    %447 = vmatpush1.msra.mxu0 0.0
    %448 = vmatprep.subr.mxu0 0.0
    %449 = vmatpush1.msra.mxu0 0.0
    %450 = vmatprep.subr.mxu0 0.0
    %451 = vmatpush1.msra.mxu0 0.0
    %452 = vmatprep.subr.mxu0 0.0
    %453 = vmatpush1.msra.mxu0 0.0
    %454 = vmatprep.subr.mxu0 0.0
    %455 = vmatpush1.msra.mxu0 0.0
    %456 = vmatprep.subr.mxu0 0.0
    %457 = vmatpush1.msra.mxu0 0.0
    %458 = vmatprep.subr.mxu0 0.0
    %459 = vmatpush1.msra.mxu0 0.0
    %460 = vmatprep.subr.mxu0 0.0
    %461 = vmatpush1.msra.mxu0 0.0
    %462 = vmatprep.subr.mxu0 0.0
    %463 = vmatpush1.msra.mxu0 0.0
    %464 = vmatprep.subr.mxu0 0.0
    %465 = vmatpush1.msra.mxu0 0.0
    %466 = vmatprep.subr.mxu0 0.0
    %467 = vmatpush1.msra.mxu0 0.0
    %468 = vmatprep.subr.mxu0 0.0
    %469 = vmatpush1.msra.mxu0 0.0
    %470 = vmatprep.subr.mxu0 0.0
    %471 = vmatpush1.msra.mxu0 0.0
    %472 = vmatprep.subr.mxu0 0.0
    %473 = vmatpush1.msra.mxu0 0.0
    %474 = vmatprep.subr.mxu0 0.0
    %475 = vmatpush1.msra.mxu0 0.0
    %476 = vmatprep.subr.mxu0 0.0
    %477 = vmatpush1.msra.mxu0 0.0
    %478 = vmatprep.subr.mxu0 0.0
    %479 = vmatpush1.msra.mxu0 0.0
    %480 = vmatprep.subr.mxu0 0.0
    %481 = vmatpush1.msra.mxu0 0.0
    %482 = vmatprep.subr.mxu0 0.0
    %483 = vmatpush1.msra.mxu0 0.0
    %484 = vmatprep.subr.mxu0 0.0
    %485 = vmatpush1.msra.mxu0 0.0
    %486 = vmatprep.mubr.f32.mxu0 0.0
    %v487 = vand.u32 %v81, 4294901760
    %488 = vmatmul.mubr.f32.gmra.mrb[0].mxu0 %v487
    %v489 = vpop.f32.mrb[0].mxu0
    %v490 = vadd.f32 %v407, %v489
    %v491 = vpop.f32.mrb[0].mxu0
    %492 = vdwg.mxu0
    %493 = vmatprep.subr.mxu0 0.0
    %v494 = vand.u32 %v23, 4294901760
    %495 = vmatpush1.msra.mxu0 %v494
    %496 = vmatprep.subr.mxu0 0.0
    %v497 = vand.u32 %v24, 4294901760
    %498 = vmatpush1.msra.mxu0 %v497
    %499 = vmatprep.subr.mxu0 0.0
    %v500 = vand.u32 %v25, 4294901760
    %501 = vmatpush1.msra.mxu0 %v500
    %502 = vmatprep.subr.mxu0 0.0
    %v503 = vand.u32 %v26, 4294901760
    %504 = vmatpush1.msra.mxu0 %v503
    %505 = vmatprep.subr.mxu0 0.0
    %506 = vmatpush1.msra.mxu0 0.0
    %507 = vmatprep.subr.mxu0 0.0
    %508 = vmatpush1.msra.mxu0 0.0
    %509 = vmatprep.subr.mxu0 0.0
    %510 = vmatpush1.msra.mxu0 0.0
    %511 = vmatprep.subr.mxu0 0.0
    %512 = vmatpush1.msra.mxu0 0.0
    %513 = vmatprep.subr.mxu0 0.0
    %514 = vmatpush1.msra.mxu0 0.0
    %515 = vmatprep.subr.mxu0 0.0
    %516 = vmatpush1.msra.mxu0 0.0
    %517 = vmatprep.subr.mxu0 0.0
    %518 = vmatpush1.msra.mxu0 0.0
    %519 = vmatprep.subr.mxu0 0.0
    %520 = vmatpush1.msra.mxu0 0.0
    %521 = vmatprep.subr.mxu0 0.0
    %522 = vmatpush1.msra.mxu0 0.0
    %523 = vmatprep.subr.mxu0 0.0
    %524 = vmatpush1.msra.mxu0 0.0
    %525 = vmatprep.subr.mxu0 0.0
    %526 = vmatpush1.msra.mxu0 0.0
    %527 = vmatprep.subr.mxu0 0.0
    %528 = vmatpush1.msra.mxu0 0.0
    %529 = vmatprep.subr.mxu0 0.0
    %530 = vmatpush1.msra.mxu0 0.0
    %531 = vmatprep.subr.mxu0 0.0
    %532 = vmatpush1.msra.mxu0 0.0
    %533 = vmatprep.subr.mxu0 0.0
    %534 = vmatpush1.msra.mxu0 0.0
    %535 = vmatprep.subr.mxu0 0.0
    %536 = vmatpush1.msra.mxu0 0.0
    %537 = vmatprep.subr.mxu0 0.0
    %538 = vmatpush1.msra.mxu0 0.0
    %539 = vmatprep.subr.mxu0 0.0
    %540 = vmatpush1.msra.mxu0 0.0
    %541 = vmatprep.subr.mxu0 0.0
    %542 = vmatpush1.msra.mxu0 0.0
    %543 = vmatprep.subr.mxu0 0.0
    %544 = vmatpush1.msra.mxu0 0.0
    %545 = vmatprep.subr.mxu0 0.0
    %546 = vmatpush1.msra.mxu0 0.0
    %547 = vmatprep.subr.mxu0 0.0
    %548 = vmatpush1.msra.mxu0 0.0
    %549 = vmatprep.subr.mxu0 0.0
    %550 = vmatpush1.msra.mxu0 0.0
    %551 = vmatprep.subr.mxu0 0.0
    %552 = vmatpush1.msra.mxu0 0.0
    %553 = vmatprep.subr.mxu0 0.0
    %554 = vmatpush1.msra.mxu0 0.0
    %555 = vmatprep.subr.mxu0 0.0
    %556 = vmatpush1.msra.mxu0 0.0
    %557 = vmatprep.subr.mxu0 0.0
    %558 = vmatpush1.msra.mxu0 0.0
    %559 = vmatprep.subr.mxu0 0.0
    %560 = vmatpush1.msra.mxu0 0.0
    %561 = vmatprep.mubr.f32.mxu0 0.0
    %v562 = vand.u32 %v81, 4294901760
    %563 = vmatmul.mubr.f32.gmra.mrb[0].mxu0 %v562
    %v564 = vpop.f32.mrb[0].mxu0
    %v565 = vadd.f32 %v490, %v564
    %v566 = vpop.f32.mrb[0].mxu0
    %567 = vdwg.mxu0
    %v568 = vcvt.f32.s32.to.zero.pseudo %v565
    %vm569 = vcmp.eq.s32.totalorder %v568, %v77
    %v570 = vsel %vm569, 1, 0
    %v571 = vcvt.s32.f32 %v570
    %v572 = vand.u32 %v44, 4294901760
    %573 = vmatprep.subr.mxu0 %v572
    %v574 = vand.u32 %v43, 4294901760
    %575 = vmatpush1.msra.mxu0 %v574
    %v576 = vand.u32 %v46, 4294901760
    %577 = vmatprep.subr.mxu0 %v576
    %v578 = vand.u32 %v45, 4294901760
    %579 = vmatpush1.msra.mxu0 %v578
    %v580 = vand.u32 %v48, 4294901760
    %581 = vmatprep.subr.mxu0 %v580
    %v582 = vand.u32 %v47, 4294901760
    %583 = vmatpush1.msra.mxu0 %v582
    %v584 = vand.u32 %v50, 4294901760
    %585 = vmatprep.subr.mxu0 %v584
    %v586 = vand.u32 %v49, 4294901760
    %587 = vmatpush1.msra.mxu0 %v586
    %v588 = vand.u32 %v52, 4294901760
    %589 = vmatprep.subr.mxu0 %v588
    %v590 = vand.u32 %v51, 4294901760
    %591 = vmatpush1.msra.mxu0 %v590
    %v592 = vand.u32 %v54, 4294901760
    %593 = vmatprep.subr.mxu0 %v592
    %v594 = vand.u32 %v53, 4294901760
    %595 = vmatpush1.msra.mxu0 %v594
    %v596 = vand.u32 %v56, 4294901760
    %597 = vmatprep.subr.mxu0 %v596
    %v598 = vand.u32 %v55, 4294901760
    %599 = vmatpush1.msra.mxu0 %v598
    %v600 = vand.u32 %v58, 4294901760
    %601 = vmatprep.subr.mxu0 %v600
    %v602 = vand.u32 %v57, 4294901760
    %603 = vmatpush1.msra.mxu0 %v602
    %v604 = vand.u32 %v60, 4294901760
    %605 = vmatprep.subr.mxu0 %v604
    %v606 = vand.u32 %v59, 4294901760
    %607 = vmatpush1.msra.mxu0 %v606
    %v608 = vand.u32 %v62, 4294901760
    %609 = vmatprep.subr.mxu0 %v608
    %v610 = vand.u32 %v61, 4294901760
    %611 = vmatpush1.msra.mxu0 %v610
    %v612 = vand.u32 %v64, 4294901760
    %613 = vmatprep.subr.mxu0 %v612
    %v614 = vand.u32 %v63, 4294901760
    %615 = vmatpush1.msra.mxu0 %v614
    %v616 = vand.u32 %v66, 4294901760
    %617 = vmatprep.subr.mxu0 %v616
    %v618 = vand.u32 %v65, 4294901760
    %619 = vmatpush1.msra.mxu0 %v618
    %v620 = vand.u32 %v68, 4294901760
    %621 = vmatprep.subr.mxu0 %v620
    %v622 = vand.u32 %v67, 4294901760
    %623 = vmatpush1.msra.mxu0 %v622
    %v624 = vand.u32 %v70, 4294901760
    %625 = vmatprep.subr.mxu0 %v624
    %v626 = vand.u32 %v69, 4294901760
    %627 = vmatpush1.msra.mxu0 %v626
    %v628 = vand.u32 %v72, 4294901760
    %629 = vmatprep.subr.mxu0 %v628
    %v630 = vand.u32 %v71, 4294901760
    %631 = vmatpush1.msra.mxu0 %v630
    %v632 = vand.u32 %v74, 4294901760
    %633 = vmatprep.subr.mxu0 %v632
    %v634 = vand.u32 %v73, 4294901760
    %635 = vmatpush1.msra.mxu0 %v634
    %636 = vmatprep.subr.mxu0 0.0
    %637 = vmatpush1.msra.mxu0 0.0
    %638 = vmatprep.subr.mxu0 0.0
    %639 = vmatpush1.msra.mxu0 0.0
    %640 = vmatprep.subr.mxu0 0.0
    %641 = vmatpush1.msra.mxu0 0.0
    %642 = vmatprep.subr.mxu0 0.0
    %643 = vmatpush1.msra.mxu0 0.0
    %644 = vmatprep.subr.mxu0 0.0
    %645 = vmatpush1.msra.mxu0 0.0
    %646 = vmatprep.subr.mxu0 0.0
    %647 = vmatpush1.msra.mxu0 0.0
    %648 = vmatprep.subr.mxu0 0.0
    %649 = vmatpush1.msra.mxu0 0.0
    %650 = vmatprep.subr.mxu0 0.0
    %651 = vmatpush1.msra.mxu0 0.0
    %652 = vmatprep.subr.mxu0 0.0
    %653 = vmatpush1.msra.mxu0 0.0
    %654 = vmatprep.subr.mxu0 0.0
    %655 = vmatpush1.msra.mxu0 0.0
    %656 = vmatprep.subr.mxu0 0.0
    %657 = vmatpush1.msra.mxu0 0.0
    %658 = vmatprep.subr.mxu0 0.0
    %659 = vmatpush1.msra.mxu0 0.0
    %660 = vmatprep.subr.mxu0 0.0
    %661 = vmatpush1.msra.mxu0 0.0
    %662 = vmatprep.subr.mxu0 0.0
    %663 = vmatpush1.msra.mxu0 0.0
    %664 = vmatprep.subr.mxu0 0.0
    %665 = vmatpush1.msra.mxu0 0.0
    %666 = vmatprep.subr.mxu0 0.0
    %667 = vmatpush1.msra.mxu0 0.0
    %668 = vmatprep.mubr.f32.mxu0 0.0
    %v669 = vand.u32 %v571, 4294901760
    %v670 = vsub.f32 %v571, %v669
    %v671 = vand.u32 %v670, 4294901760
    %v672 = vsub.f32 %v670, %v671
    %v673 = vand.u32 %v672, 4294901760
    %674 = vmatmul.mubr.f32.gmra.mrb[0].mxu0 %v673
    %v675 = vpop.f32.mrb[0].mxu0
    %v676 = vadd.f32 0.0, %v675
    %v677 = vpop.f32.mrb[0].mxu0
    %v678 = vadd.f32 0.0, %v677
    %679 = vdwg.mxu0
    %v680 = vand.u32 %v44, 4294901760
    %v681 = vsub.f32 %v44, %v680
    %v682 = vand.u32 %v681, 4294901760
    %v683 = vsub.f32 %v681, %v682
    %v684 = vand.u32 %v683, 4294901760
    %685 = vmatprep.subr.mxu0 %v684
    %v686 = vand.u32 %v43, 4294901760
    %v687 = vsub.f32 %v43, %v686
    %v688 = vand.u32 %v687, 4294901760
    %v689 = vsub.f32 %v687, %v688
    %v690 = vand.u32 %v689, 4294901760
    %691 = vmatpush1.msra.mxu0 %v690
    %v692 = vand.u32 %v46, 4294901760
    %v693 = vsub.f32 %v46, %v692
    %v694 = vand.u32 %v693, 4294901760
    %v695 = vsub.f32 %v693, %v694
    %v696 = vand.u32 %v695, 4294901760
    %697 = vmatprep.subr.mxu0 %v696
    %v698 = vand.u32 %v45, 4294901760
    %v699 = vsub.f32 %v45, %v698
    %v700 = vand.u32 %v699, 4294901760
    %v701 = vsub.f32 %v699, %v700
    %v702 = vand.u32 %v701, 4294901760
    %703 = vmatpush1.msra.mxu0 %v702
    %v704 = vand.u32 %v48, 4294901760
    %v705 = vsub.f32 %v48, %v704
    %v706 = vand.u32 %v705, 4294901760
    %v707 = vsub.f32 %v705, %v706
    %v708 = vand.u32 %v707, 4294901760
    %709 = vmatprep.subr.mxu0 %v708
    %v710 = vand.u32 %v47, 4294901760
    %v711 = vsub.f32 %v47, %v710
    %v712 = vand.u32 %v711, 4294901760
    %v713 = vsub.f32 %v711, %v712
    %v714 = vand.u32 %v713, 4294901760
    %715 = vmatpush1.msra.mxu0 %v714
    %v716 = vand.u32 %v50, 4294901760
    %v717 = vsub.f32 %v50, %v716
    %v718 = vand.u32 %v717, 4294901760
    %v719 = vsub.f32 %v717, %v718
    %v720 = vand.u32 %v719, 4294901760
    %721 = vmatprep.subr.mxu0 %v720
    %v722 = vand.u32 %v49, 4294901760
    %v723 = vsub.f32 %v49, %v722
    %v724 = vand.u32 %v723, 4294901760
    %v725 = vsub.f32 %v723, %v724
    %v726 = vand.u32 %v725, 4294901760
    %727 = vmatpush1.msra.mxu0 %v726
    %v728 = vand.u32 %v52, 4294901760
    %v729 = vsub.f32 %v52, %v728
    %v730 = vand.u32 %v729, 4294901760
    %v731 = vsub.f32 %v729, %v730
    %v732 = vand.u32 %v731, 4294901760
    %733 = vmatprep.subr.mxu0 %v732
    %v734 = vand.u32 %v51, 4294901760
    %v735 = vsub.f32 %v51, %v734
    %v736 = vand.u32 %v735, 4294901760
    %v737 = vsub.f32 %v735, %v736
    %v738 = vand.u32 %v737, 4294901760
    %739 = vmatpush1.msra.mxu0 %v738
    %v740 = vand.u32 %v54, 4294901760
    %v741 = vsub.f32 %v54, %v740
    %v742 = vand.u32 %v741, 4294901760
    %v743 = vsub.f32 %v741, %v742
    %v744 = vand.u32 %v743, 4294901760
    %745 = vmatprep.subr.mxu0 %v744
    %v746 = vand.u32 %v53, 4294901760
    %v747 = vsub.f32 %v53, %v746
    %v748 = vand.u32 %v747, 4294901760
    %v749 = vsub.f32 %v747, %v748
    %v750 = vand.u32 %v749, 4294901760
    %751 = vmatpush1.msra.mxu0 %v750
    %v752 = vand.u32 %v56, 4294901760
    %v753 = vsub.f32 %v56, %v752
    %v754 = vand.u32 %v753, 4294901760
    %v755 = vsub.f32 %v753, %v754
    %v756 = vand.u32 %v755, 4294901760
    %757 = vmatprep.subr.mxu0 %v756
    %v758 = vand.u32 %v55, 4294901760
    %v759 = vsub.f32 %v55, %v758
    %v760 = vand.u32 %v759, 4294901760
    %v761 = vsub.f32 %v759, %v760
    %v762 = vand.u32 %v761, 4294901760
    %763 = vmatpush1.msra.mxu0 %v762
    %v764 = vand.u32 %v58, 4294901760
    %v765 = vsub.f32 %v58, %v764
    %v766 = vand.u32 %v765, 4294901760
    %v767 = vsub.f32 %v765, %v766
    %v768 = vand.u32 %v767, 4294901760
    %769 = vmatprep.subr.mxu0 %v768
    %v770 = vand.u32 %v57, 4294901760
    %v771 = vsub.f32 %v57, %v770
    %v772 = vand.u32 %v771, 4294901760
    %v773 = vsub.f32 %v771, %v772
    %v774 = vand.u32 %v773, 4294901760
    %775 = vmatpush1.msra.mxu0 %v774
    %v776 = vand.u32 %v60, 4294901760
    %v777 = vsub.f32 %v60, %v776
    %v778 = vand.u32 %v777, 4294901760
    %v779 = vsub.f32 %v777, %v778
    %v780 = vand.u32 %v779, 4294901760
    %781 = vmatprep.subr.mxu0 %v780
    %v782 = vand.u32 %v59, 4294901760
    %v783 = vsub.f32 %v59, %v782
    %v784 = vand.u32 %v783, 4294901760
    %v785 = vsub.f32 %v783, %v784
    %v786 = vand.u32 %v785, 4294901760
    %787 = vmatpush1.msra.mxu0 %v786
    %v788 = vand.u32 %v62, 4294901760
    %v789 = vsub.f32 %v62, %v788
    %v790 = vand.u32 %v789, 4294901760
    %v791 = vsub.f32 %v789, %v790
    %v792 = vand.u32 %v791, 4294901760
    %793 = vmatprep.subr.mxu0 %v792
    %v794 = vand.u32 %v61, 4294901760
    %v795 = vsub.f32 %v61, %v794
    %v796 = vand.u32 %v795, 4294901760
    %v797 = vsub.f32 %v795, %v796
    %v798 = vand.u32 %v797, 4294901760
    %799 = vmatpush1.msra.mxu0 %v798
    %v800 = vand.u32 %v64, 4294901760
    %v801 = vsub.f32 %v64, %v800
    %v802 = vand.u32 %v801, 4294901760
    %v803 = vsub.f32 %v801, %v802
    %v804 = vand.u32 %v803, 4294901760
    %805 = vmatprep.subr.mxu0 %v804
    %v806 = vand.u32 %v63, 4294901760
    %v807 = vsub.f32 %v63, %v806
    %v808 = vand.u32 %v807, 4294901760
    %v809 = vsub.f32 %v807, %v808
    %v810 = vand.u32 %v809, 4294901760
    %811 = vmatpush1.msra.mxu0 %v810
    %v812 = vand.u32 %v66, 4294901760
    %v813 = vsub.f32 %v66, %v812
    %v814 = vand.u32 %v813, 4294901760
    %v815 = vsub.f32 %v813, %v814
    %v816 = vand.u32 %v815, 4294901760
    %817 = vmatprep.subr.mxu0 %v816
    %v818 = vand.u32 %v65, 4294901760
    %v819 = vsub.f32 %v65, %v818
    %v820 = vand.u32 %v819, 4294901760
    %v821 = vsub.f32 %v819, %v820
    %v822 = vand.u32 %v821, 4294901760
    %823 = vmatpush1.msra.mxu0 %v822
    %v824 = vand.u32 %v68, 4294901760
    %v825 = vsub.f32 %v68, %v824
    %v826 = vand.u32 %v825, 4294901760
    %v827 = vsub.f32 %v825, %v826
    %v828 = vand.u32 %v827, 4294901760
    %829 = vmatprep.subr.mxu0 %v828
    %v830 = vand.u32 %v67, 4294901760
    %v831 = vsub.f32 %v67, %v830
    %v832 = vand.u32 %v831, 4294901760
    %v833 = vsub.f32 %v831, %v832
    %v834 = vand.u32 %v833, 4294901760
    %835 = vmatpush1.msra.mxu0 %v834
    %v836 = vand.u32 %v70, 4294901760
    %v837 = vsub.f32 %v70, %v836
    %v838 = vand.u32 %v837, 4294901760
    %v839 = vsub.f32 %v837, %v838
    %v840 = vand.u32 %v839, 4294901760
    %841 = vmatprep.subr.mxu0 %v840
    %v842 = vand.u32 %v69, 4294901760
    %v843 = vsub.f32 %v69, %v842
    %v844 = vand.u32 %v843, 4294901760
    %v845 = vsub.f32 %v843, %v844
    %v846 = vand.u32 %v845, 4294901760
    %847 = vmatpush1.msra.mxu0 %v846
    %v848 = vand.u32 %v72, 4294901760
    %v849 = vsub.f32 %v72, %v848
    %v850 = vand.u32 %v849, 4294901760
    %v851 = vsub.f32 %v849, %v850
    %v852 = vand.u32 %v851, 4294901760
    %853 = vmatprep.subr.mxu0 %v852
    %v854 = vand.u32 %v71, 4294901760
    %v855 = vsub.f32 %v71, %v854
    %v856 = vand.u32 %v855, 4294901760
    %v857 = vsub.f32 %v855, %v856
    %v858 = vand.u32 %v857, 4294901760
    %859 = vmatpush1.msra.mxu0 %v858
    %v860 = vand.u32 %v74, 4294901760
    %v861 = vsub.f32 %v74, %v860
    %v862 = vand.u32 %v861, 4294901760
    %v863 = vsub.f32 %v861, %v862
    %v864 = vand.u32 %v863, 4294901760
    %865 = vmatprep.subr.mxu0 %v864
    %v866 = vand.u32 %v73, 4294901760
    %v867 = vsub.f32 %v73, %v866
    %v868 = vand.u32 %v867, 4294901760
    %v869 = vsub.f32 %v867, %v868
    %v870 = vand.u32 %v869, 4294901760
    %871 = vmatpush1.msra.mxu0 %v870
    %872 = vmatprep.subr.mxu0 0.0
    %873 = vmatpush1.msra.mxu0 0.0
    %874 = vmatprep.subr.mxu0 0.0
    %875 = vmatpush1.msra.mxu0 0.0
    %876 = vmatprep.subr.mxu0 0.0
    %877 = vmatpush1.msra.mxu0 0.0
    %878 = vmatprep.subr.mxu0 0.0
    %879 = vmatpush1.msra.mxu0 0.0
    %880 = vmatprep.subr.mxu0 0.0
    %881 = vmatpush1.msra.mxu0 0.0
    %882 = vmatprep.subr.mxu0 0.0
    %883 = vmatpush1.msra.mxu0 0.0
    %884 = vmatprep.subr.mxu0 0.0
    %885 = vmatpush1.msra.mxu0 0.0
    %886 = vmatprep.subr.mxu0 0.0
    %887 = vmatpush1.msra.mxu0 0.0
    %888 = vmatprep.subr.mxu0 0.0
    %889 = vmatpush1.msra.mxu0 0.0
    %890 = vmatprep.subr.mxu0 0.0
    %891 = vmatpush1.msra.mxu0 0.0
    %892 = vmatprep.subr.mxu0 0.0
    %893 = vmatpush1.msra.mxu0 0.0
    %894 = vmatprep.subr.mxu0 0.0
    %895 = vmatpush1.msra.mxu0 0.0
    %896 = vmatprep.subr.mxu0 0.0
    %897 = vmatpush1.msra.mxu0 0.0
    %898 = vmatprep.subr.mxu0 0.0
    %899 = vmatpush1.msra.mxu0 0.0
    %900 = vmatprep.subr.mxu0 0.0
    %901 = vmatpush1.msra.mxu0 0.0
    %902 = vmatprep.subr.mxu0 0.0
    %903 = vmatpush1.msra.mxu0 0.0
    %904 = vmatprep.mubr.f32.mxu0 0.0
    %v905 = vand.u32 %v571, 4294901760
    %906 = vmatmul.mubr.f32.gmra.mrb[0].mxu0 %v905
    %v907 = vpop.f32.mrb[0].mxu0
    %v908 = vadd.f32 %v676, %v907
    %v909 = vpop.f32.mrb[0].mxu0
    %v910 = vadd.f32 %v678, %v909
    %911 = vdwg.mxu0
    %v912 = vand.u32 %v44, 4294901760
    %v913 = vsub.f32 %v44, %v912
    %914 = vmatprep.subr.mxu0 %v913
    %v915 = vand.u32 %v43, 4294901760
    %v916 = vsub.f32 %v43, %v915
    %917 = vmatpush1.msra.mxu0 %v916
    %v918 = vand.u32 %v46, 4294901760
    %v919 = vsub.f32 %v46, %v918
    %920 = vmatprep.subr.mxu0 %v919
    %v921 = vand.u32 %v45, 4294901760
    %v922 = vsub.f32 %v45, %v921
    %923 = vmatpush1.msra.mxu0 %v922
    %v924 = vand.u32 %v48, 4294901760
    %v925 = vsub.f32 %v48, %v924
    %926 = vmatprep.subr.mxu0 %v925
    %v927 = vand.u32 %v47, 4294901760
    %v928 = vsub.f32 %v47, %v927
    %929 = vmatpush1.msra.mxu0 %v928
    %v930 = vand.u32 %v50, 4294901760
    %v931 = vsub.f32 %v50, %v930
    %932 = vmatprep.subr.mxu0 %v931
    %v933 = vand.u32 %v49, 4294901760
    %v934 = vsub.f32 %v49, %v933
    %935 = vmatpush1.msra.mxu0 %v934
    %v936 = vand.u32 %v52, 4294901760
    %v937 = vsub.f32 %v52, %v936
    %938 = vmatprep.subr.mxu0 %v937
    %v939 = vand.u32 %v51, 4294901760
    %v940 = vsub.f32 %v51, %v939
    %941 = vmatpush1.msra.mxu0 %v940
    %v942 = vand.u32 %v54, 4294901760
    %v943 = vsub.f32 %v54, %v942
    %944 = vmatprep.subr.mxu0 %v943
    %v945 = vand.u32 %v53, 4294901760
    %v946 = vsub.f32 %v53, %v945
    %947 = vmatpush1.msra.mxu0 %v946
    %v948 = vand.u32 %v56, 4294901760
    %v949 = vsub.f32 %v56, %v948
    %950 = vmatprep.subr.mxu0 %v949
    %v951 = vand.u32 %v55, 4294901760
    %v952 = vsub.f32 %v55, %v951
    %953 = vmatpush1.msra.mxu0 %v952
    %v954 = vand.u32 %v58, 4294901760
    %v955 = vsub.f32 %v58, %v954
    %956 = vmatprep.subr.mxu0 %v955
    %v957 = vand.u32 %v57, 4294901760
    %v958 = vsub.f32 %v57, %v957
    %959 = vmatpush1.msra.mxu0 %v958
    %v960 = vand.u32 %v60, 4294901760
    %v961 = vsub.f32 %v60, %v960
    %962 = vmatprep.subr.mxu0 %v961
    %v963 = vand.u32 %v59, 4294901760
    %v964 = vsub.f32 %v59, %v963
    %965 = vmatpush1.msra.mxu0 %v964
    %v966 = vand.u32 %v62, 4294901760
    %v967 = vsub.f32 %v62, %v966
    %968 = vmatprep.subr.mxu0 %v967
    %v969 = vand.u32 %v61, 4294901760
    %v970 = vsub.f32 %v61, %v969
    %971 = vmatpush1.msra.mxu0 %v970
    %v972 = vand.u32 %v64, 4294901760
    %v973 = vsub.f32 %v64, %v972
    %974 = vmatprep.subr.mxu0 %v973
    %v975 = vand.u32 %v63, 4294901760
    %v976 = vsub.f32 %v63, %v975
    %977 = vmatpush1.msra.mxu0 %v976
    %v978 = vand.u32 %v66, 4294901760
    %v979 = vsub.f32 %v66, %v978
    %980 = vmatprep.subr.mxu0 %v979
    %v981 = vand.u32 %v65, 4294901760
    %v982 = vsub.f32 %v65, %v981
    %983 = vmatpush1.msra.mxu0 %v982
    %v984 = vand.u32 %v68, 4294901760
    %v985 = vsub.f32 %v68, %v984
    %986 = vmatprep.subr.mxu0 %v985
    %v987 = vand.u32 %v67, 4294901760
    %v988 = vsub.f32 %v67, %v987
    %989 = vmatpush1.msra.mxu0 %v988
    %v990 = vand.u32 %v70, 4294901760
    %v991 = vsub.f32 %v70, %v990
    %992 = vmatprep.subr.mxu0 %v991
    %v993 = vand.u32 %v69, 4294901760
    %v994 = vsub.f32 %v69, %v993
    %995 = vmatpush1.msra.mxu0 %v994
    %v996 = vand.u32 %v72, 4294901760
    %v997 = vsub.f32 %v72, %v996
    %998 = vmatprep.subr.mxu0 %v997
    %v999 = vand.u32 %v71, 4294901760
    %v1000 = vsub.f32 %v71, %v999
    %1001 = vmatpush1.msra.mxu0 %v1000
    %v1002 = vand.u32 %v74, 4294901760
    %v1003 = vsub.f32 %v74, %v1002
    %1004 = vmatprep.subr.mxu0 %v1003
    %v1005 = vand.u32 %v73, 4294901760
    %v1006 = vsub.f32 %v73, %v1005
    %1007 = vmatpush1.msra.mxu0 %v1006
    %1008 = vmatprep.subr.mxu0 0.0
    %1009 = vmatpush1.msra.mxu0 0.0
    %1010 = vmatprep.subr.mxu0 0.0
    %1011 = vmatpush1.msra.mxu0 0.0
    %1012 = vmatprep.subr.mxu0 0.0
    %1013 = vmatpush1.msra.mxu0 0.0
    %1014 = vmatprep.subr.mxu0 0.0
    %1015 = vmatpush1.msra.mxu0 0.0
    %1016 = vmatprep.subr.mxu0 0.0
    %1017 = vmatpush1.msra.mxu0 0.0
    %1018 = vmatprep.subr.mxu0 0.0
    %1019 = vmatpush1.msra.mxu0 0.0
    %1020 = vmatprep.subr.mxu0 0.0
    %1021 = vmatpush1.msra.mxu0 0.0
    %1022 = vmatprep.subr.mxu0 0.0
    %1023 = vmatpush1.msra.mxu0 0.0
    %1024 = vmatprep.subr.mxu0 0.0
    %1025 = vmatpush1.msra.mxu0 0.0
    %1026 = vmatprep.subr.mxu0 0.0
    %1027 = vmatpush1.msra.mxu0 0.0
    %1028 = vmatprep.subr.mxu0 0.0
    %1029 = vmatpush1.msra.mxu0 0.0
    %1030 = vmatprep.subr.mxu0 0.0
    %1031 = vmatpush1.msra.mxu0 0.0
    %1032 = vmatprep.subr.mxu0 0.0
    %1033 = vmatpush1.msra.mxu0 0.0
    %1034 = vmatprep.subr.mxu0 0.0
    %1035 = vmatpush1.msra.mxu0 0.0
    %1036 = vmatprep.subr.mxu0 0.0
    %1037 = vmatpush1.msra.mxu0 0.0
    %1038 = vmatprep.subr.mxu0 0.0
    %1039 = vmatpush1.msra.mxu0 0.0
    %1040 = vmatprep.mubr.f32.mxu0 0.0
    %v1041 = vand.u32 %v571, 4294901760
    %v1042 = vsub.f32 %v571, %v1041
    %1043 = vmatmul.mubr.f32.gmra.mrb[0].mxu0 %v1042
    %v1044 = vpop.f32.mrb[0].mxu0
    %v1045 = vadd.f32 %v908, %v1044
    %v1046 = vpop.f32.mrb[0].mxu0
    %v1047 = vadd.f32 %v910, %v1046
    %1048 = vdwg.mxu0
    %v1049 = vand.u32 %v44, 4294901760
    %1050 = vmatprep.subr.mxu0 %v1049
    %v1051 = vand.u32 %v43, 4294901760
    %1052 = vmatpush1.msra.mxu0 %v1051
    %v1053 = vand.u32 %v46, 4294901760
    %1054 = vmatprep.subr.mxu0 %v1053
    %v1055 = vand.u32 %v45, 4294901760
    %1056 = vmatpush1.msra.mxu0 %v1055
    %v1057 = vand.u32 %v48, 4294901760
    %1058 = vmatprep.subr.mxu0 %v1057
    %v1059 = vand.u32 %v47, 4294901760
    %1060 = vmatpush1.msra.mxu0 %v1059
    %v1061 = vand.u32 %v50, 4294901760
    %1062 = vmatprep.subr.mxu0 %v1061
    %v1063 = vand.u32 %v49, 4294901760
    %1064 = vmatpush1.msra.mxu0 %v1063
    %v1065 = vand.u32 %v52, 4294901760
    %1066 = vmatprep.subr.mxu0 %v1065
    %v1067 = vand.u32 %v51, 4294901760
    %1068 = vmatpush1.msra.mxu0 %v1067
    %v1069 = vand.u32 %v54, 4294901760
    %1070 = vmatprep.subr.mxu0 %v1069
    %v1071 = vand.u32 %v53, 4294901760
    %1072 = vmatpush1.msra.mxu0 %v1071
    %v1073 = vand.u32 %v56, 4294901760
    %1074 = vmatprep.subr.mxu0 %v1073
    %v1075 = vand.u32 %v55, 4294901760
    %1076 = vmatpush1.msra.mxu0 %v1075
    %v1077 = vand.u32 %v58, 4294901760
    %1078 = vmatprep.subr.mxu0 %v1077
    %v1079 = vand.u32 %v57, 4294901760
    %1080 = vmatpush1.msra.mxu0 %v1079
    %v1081 = vand.u32 %v60, 4294901760
    %1082 = vmatprep.subr.mxu0 %v1081
    %v1083 = vand.u32 %v59, 4294901760
    %1084 = vmatpush1.msra.mxu0 %v1083
    %v1085 = vand.u32 %v62, 4294901760
    %1086 = vmatprep.subr.mxu0 %v1085
    %v1087 = vand.u32 %v61, 4294901760
    %1088 = vmatpush1.msra.mxu0 %v1087
    %v1089 = vand.u32 %v64, 4294901760
    %1090 = vmatprep.subr.mxu0 %v1089
    %v1091 = vand.u32 %v63, 4294901760
    %1092 = vmatpush1.msra.mxu0 %v1091
    %v1093 = vand.u32 %v66, 4294901760
    %1094 = vmatprep.subr.mxu0 %v1093
    %v1095 = vand.u32 %v65, 4294901760
    %1096 = vmatpush1.msra.mxu0 %v1095
    %v1097 = vand.u32 %v68, 4294901760
    %1098 = vmatprep.subr.mxu0 %v1097
    %v1099 = vand.u32 %v67, 4294901760
    %1100 = vmatpush1.msra.mxu0 %v1099
    %v1101 = vand.u32 %v70, 4294901760
    %1102 = vmatprep.subr.mxu0 %v1101
    %v1103 = vand.u32 %v69, 4294901760
    %1104 = vmatpush1.msra.mxu0 %v1103
    %v1105 = vand.u32 %v72, 4294901760
    %1106 = vmatprep.subr.mxu0 %v1105
    %v1107 = vand.u32 %v71, 4294901760
    %1108 = vmatpush1.msra.mxu0 %v1107
    %v1109 = vand.u32 %v74, 4294901760
    %1110 = vmatprep.subr.mxu0 %v1109
    %v1111 = vand.u32 %v73, 4294901760
    %1112 = vmatpush1.msra.mxu0 %v1111
    %1113 = vmatprep.subr.mxu0 0.0
    %1114 = vmatpush1.msra.mxu0 0.0
    %1115 = vmatprep.subr.mxu0 0.0
    %1116 = vmatpush1.msra.mxu0 0.0
    %1117 = vmatprep.subr.mxu0 0.0
    %1118 = vmatpush1.msra.mxu0 0.0
    %1119 = vmatprep.subr.mxu0 0.0
    %1120 = vmatpush1.msra.mxu0 0.0
    %1121 = vmatprep.subr.mxu0 0.0
    %1122 = vmatpush1.msra.mxu0 0.0
    %1123 = vmatprep.subr.mxu0 0.0
    %1124 = vmatpush1.msra.mxu0 0.0
    %1125 = vmatprep.subr.mxu0 0.0
    %1126 = vmatpush1.msra.mxu0 0.0
    %1127 = vmatprep.subr.mxu0 0.0
    %1128 = vmatpush1.msra.mxu0 0.0
    %1129 = vmatprep.subr.mxu0 0.0
    %1130 = vmatpush1.msra.mxu0 0.0
    %1131 = vmatprep.subr.mxu0 0.0
    %1132 = vmatpush1.msra.mxu0 0.0
    %1133 = vmatprep.subr.mxu0 0.0
    %1134 = vmatpush1.msra.mxu0 0.0
    %1135 = vmatprep.subr.mxu0 0.0
    %1136 = vmatpush1.msra.mxu0 0.0
    %1137 = vmatprep.subr.mxu0 0.0
    %1138 = vmatpush1.msra.mxu0 0.0
    %1139 = vmatprep.subr.mxu0 0.0
    %1140 = vmatpush1.msra.mxu0 0.0
    %1141 = vmatprep.subr.mxu0 0.0
    %1142 = vmatpush1.msra.mxu0 0.0
    %1143 = vmatprep.subr.mxu0 0.0
    %1144 = vmatpush1.msra.mxu0 0.0
    %1145 = vmatprep.mubr.f32.mxu0 0.0
    %v1146 = vand.u32 %v571, 4294901760
    %v1147 = vsub.f32 %v571, %v1146
    %v1148 = vand.u32 %v1147, 4294901760
    %1149 = vmatmul.mubr.f32.gmra.mrb[0].mxu0 %v1148
    %v1150 = vpop.f32.mrb[0].mxu0
    %v1151 = vadd.f32 %v1045, %v1150
    %v1152 = vpop.f32.mrb[0].mxu0
    %v1153 = vadd.f32 %v1047, %v1152
    %1154 = vdwg.mxu0
    %v1155 = vand.u32 %v44, 4294901760
    %v1156 = vsub.f32 %v44, %v1155
    %v1157 = vand.u32 %v1156, 4294901760
    %1158 = vmatprep.subr.mxu0 %v1157
    %v1159 = vand.u32 %v43, 4294901760
    %v1160 = vsub.f32 %v43, %v1159
    %v1161 = vand.u32 %v1160, 4294901760
    %1162 = vmatpush1.msra.mxu0 %v1161
    %v1163 = vand.u32 %v46, 4294901760
    %v1164 = vsub.f32 %v46, %v1163
    %v1165 = vand.u32 %v1164, 4294901760
    %1166 = vmatprep.subr.mxu0 %v1165
    %v1167 = vand.u32 %v45, 4294901760
    %v1168 = vsub.f32 %v45, %v1167
    %v1169 = vand.u32 %v1168, 4294901760
    %1170 = vmatpush1.msra.mxu0 %v1169
    %v1171 = vand.u32 %v48, 4294901760
    %v1172 = vsub.f32 %v48, %v1171
    %v1173 = vand.u32 %v1172, 4294901760
    %1174 = vmatprep.subr.mxu0 %v1173
    %v1175 = vand.u32 %v47, 4294901760
    %v1176 = vsub.f32 %v47, %v1175
    %v1177 = vand.u32 %v1176, 4294901760
    %1178 = vmatpush1.msra.mxu0 %v1177
    %v1179 = vand.u32 %v50, 4294901760
    %v1180 = vsub.f32 %v50, %v1179
    %v1181 = vand.u32 %v1180, 4294901760
    %1182 = vmatprep.subr.mxu0 %v1181
    %v1183 = vand.u32 %v49, 4294901760
    %v1184 = vsub.f32 %v49, %v1183
    %v1185 = vand.u32 %v1184, 4294901760
    %1186 = vmatpush1.msra.mxu0 %v1185
    %v1187 = vand.u32 %v52, 4294901760
    %v1188 = vsub.f32 %v52, %v1187
    %v1189 = vand.u32 %v1188, 4294901760
    %1190 = vmatprep.subr.mxu0 %v1189
    %v1191 = vand.u32 %v51, 4294901760
    %v1192 = vsub.f32 %v51, %v1191
    %v1193 = vand.u32 %v1192, 4294901760
    %1194 = vmatpush1.msra.mxu0 %v1193
    %v1195 = vand.u32 %v54, 4294901760
    %v1196 = vsub.f32 %v54, %v1195
    %v1197 = vand.u32 %v1196, 4294901760
    %1198 = vmatprep.subr.mxu0 %v1197
    %v1199 = vand.u32 %v53, 4294901760
    %v1200 = vsub.f32 %v53, %v1199
    %v1201 = vand.u32 %v1200, 4294901760
    %1202 = vmatpush1.msra.mxu0 %v1201
    %v1203 = vand.u32 %v56, 4294901760
    %v1204 = vsub.f32 %v56, %v1203
    %v1205 = vand.u32 %v1204, 4294901760
    %1206 = vmatprep.subr.mxu0 %v1205
    %v1207 = vand.u32 %v55, 4294901760
    %v1208 = vsub.f32 %v55, %v1207
    %v1209 = vand.u32 %v1208, 4294901760
    %1210 = vmatpush1.msra.mxu0 %v1209
    %v1211 = vand.u32 %v58, 4294901760
    %v1212 = vsub.f32 %v58, %v1211
    %v1213 = vand.u32 %v1212, 4294901760
    %1214 = vmatprep.subr.mxu0 %v1213
    %v1215 = vand.u32 %v57, 4294901760
    %v1216 = vsub.f32 %v57, %v1215
    %v1217 = vand.u32 %v1216, 4294901760
    %1218 = vmatpush1.msra.mxu0 %v1217
    %v1219 = vand.u32 %v60, 4294901760
    %v1220 = vsub.f32 %v60, %v1219
    %v1221 = vand.u32 %v1220, 4294901760
    %1222 = vmatprep.subr.mxu0 %v1221
    %v1223 = vand.u32 %v59, 4294901760
    %v1224 = vsub.f32 %v59, %v1223
    %v1225 = vand.u32 %v1224, 4294901760
    %1226 = vmatpush1.msra.mxu0 %v1225
    %v1227 = vand.u32 %v62, 4294901760
    %v1228 = vsub.f32 %v62, %v1227
    %v1229 = vand.u32 %v1228, 4294901760
    %1230 = vmatprep.subr.mxu0 %v1229
    %v1231 = vand.u32 %v61, 4294901760
    %v1232 = vsub.f32 %v61, %v1231
    %v1233 = vand.u32 %v1232, 4294901760
    %1234 = vmatpush1.msra.mxu0 %v1233
    %v1235 = vand.u32 %v64, 4294901760
    %v1236 = vsub.f32 %v64, %v1235
    %v1237 = vand.u32 %v1236, 4294901760
    %1238 = vmatprep.subr.mxu0 %v1237
    %v1239 = vand.u32 %v63, 4294901760
    %v1240 = vsub.f32 %v63, %v1239
    %v1241 = vand.u32 %v1240, 4294901760
    %1242 = vmatpush1.msra.mxu0 %v1241
    %v1243 = vand.u32 %v66, 4294901760
    %v1244 = vsub.f32 %v66, %v1243
    %v1245 = vand.u32 %v1244, 4294901760
    %1246 = vmatprep.subr.mxu0 %v1245
    %v1247 = vand.u32 %v65, 4294901760
    %v1248 = vsub.f32 %v65, %v1247
    %v1249 = vand.u32 %v1248, 4294901760
    %1250 = vmatpush1.msra.mxu0 %v1249
    %v1251 = vand.u32 %v68, 4294901760
    %v1252 = vsub.f32 %v68, %v1251
    %v1253 = vand.u32 %v1252, 4294901760
    %1254 = vmatprep.subr.mxu0 %v1253
    %v1255 = vand.u32 %v67, 4294901760
    %v1256 = vsub.f32 %v67, %v1255
    %v1257 = vand.u32 %v1256, 4294901760
    %1258 = vmatpush1.msra.mxu0 %v1257
    %v1259 = vand.u32 %v70, 4294901760
    %v1260 = vsub.f32 %v70, %v1259
    %v1261 = vand.u32 %v1260, 4294901760
    %1262 = vmatprep.subr.mxu0 %v1261
    %v1263 = vand.u32 %v69, 4294901760
    %v1264 = vsub.f32 %v69, %v1263
    %v1265 = vand.u32 %v1264, 4294901760
    %1266 = vmatpush1.msra.mxu0 %v1265
    %v1267 = vand.u32 %v72, 4294901760
    %v1268 = vsub.f32 %v72, %v1267
    %v1269 = vand.u32 %v1268, 4294901760
    %1270 = vmatprep.subr.mxu0 %v1269
    %v1271 = vand.u32 %v71, 4294901760
    %v1272 = vsub.f32 %v71, %v1271
    %v1273 = vand.u32 %v1272, 4294901760
    %1274 = vmatpush1.msra.mxu0 %v1273
    %v1275 = vand.u32 %v74, 4294901760
    %v1276 = vsub.f32 %v74, %v1275
    %v1277 = vand.u32 %v1276, 4294901760
    %1278 = vmatprep.subr.mxu0 %v1277
    %v1279 = vand.u32 %v73, 4294901760
    %v1280 = vsub.f32 %v73, %v1279
    %v1281 = vand.u32 %v1280, 4294901760
    %1282 = vmatpush1.msra.mxu0 %v1281
    %1283 = vmatprep.subr.mxu0 0.0
    %1284 = vmatpush1.msra.mxu0 0.0
    %1285 = vmatprep.subr.mxu0 0.0
    %1286 = vmatpush1.msra.mxu0 0.0
    %1287 = vmatprep.subr.mxu0 0.0
    %1288 = vmatpush1.msra.mxu0 0.0
    %1289 = vmatprep.subr.mxu0 0.0
    %1290 = vmatpush1.msra.mxu0 0.0
    %1291 = vmatprep.subr.mxu0 0.0
    %1292 = vmatpush1.msra.mxu0 0.0
    %1293 = vmatprep.subr.mxu0 0.0
    %1294 = vmatpush1.msra.mxu0 0.0
    %1295 = vmatprep.subr.mxu0 0.0
    %1296 = vmatpush1.msra.mxu0 0.0
    %1297 = vmatprep.subr.mxu0 0.0
    %1298 = vmatpush1.msra.mxu0 0.0
    %1299 = vmatprep.subr.mxu0 0.0
    %1300 = vmatpush1.msra.mxu0 0.0
    %1301 = vmatprep.subr.mxu0 0.0
    %1302 = vmatpush1.msra.mxu0 0.0
    %1303 = vmatprep.subr.mxu0 0.0
    %1304 = vmatpush1.msra.mxu0 0.0
    %1305 = vmatprep.subr.mxu0 0.0
    %1306 = vmatpush1.msra.mxu0 0.0
    %1307 = vmatprep.subr.mxu0 0.0
    %1308 = vmatpush1.msra.mxu0 0.0
    %1309 = vmatprep.subr.mxu0 0.0
    %1310 = vmatpush1.msra.mxu0 0.0
    %1311 = vmatprep.subr.mxu0 0.0
    %1312 = vmatpush1.msra.mxu0 0.0
    %1313 = vmatprep.subr.mxu0 0.0
    %1314 = vmatpush1.msra.mxu0 0.0
    %1315 = vmatprep.mubr.f32.mxu0 0.0
    %v1316 = vand.u32 %v571, 4294901760
    %1317 = vmatmul.mubr.f32.gmra.mrb[0].mxu0 %v1316
    %v1318 = vpop.f32.mrb[0].mxu0
    %v1319 = vadd.f32 %v1151, %v1318
    %v1320 = vpop.f32.mrb[0].mxu0
    %v1321 = vadd.f32 %v1153, %v1320
    %1322 = vdwg.mxu0
    %v1323 = vand.u32 %v44, 4294901760
    %1324 = vmatprep.subr.mxu0 %v1323
    %v1325 = vand.u32 %v43, 4294901760
    %1326 = vmatpush1.msra.mxu0 %v1325
    %v1327 = vand.u32 %v46, 4294901760
    %1328 = vmatprep.subr.mxu0 %v1327
    %v1329 = vand.u32 %v45, 4294901760
    %1330 = vmatpush1.msra.mxu0 %v1329
    %v1331 = vand.u32 %v48, 4294901760
    %1332 = vmatprep.subr.mxu0 %v1331
    %v1333 = vand.u32 %v47, 4294901760
    %1334 = vmatpush1.msra.mxu0 %v1333
    %v1335 = vand.u32 %v50, 4294901760
    %1336 = vmatprep.subr.mxu0 %v1335
    %v1337 = vand.u32 %v49, 4294901760
    %1338 = vmatpush1.msra.mxu0 %v1337
    %v1339 = vand.u32 %v52, 4294901760
    %1340 = vmatprep.subr.mxu0 %v1339
    %v1341 = vand.u32 %v51, 4294901760
    %1342 = vmatpush1.msra.mxu0 %v1341
    %v1343 = vand.u32 %v54, 4294901760
    %1344 = vmatprep.subr.mxu0 %v1343
    %v1345 = vand.u32 %v53, 4294901760
    %1346 = vmatpush1.msra.mxu0 %v1345
    %v1347 = vand.u32 %v56, 4294901760
    %1348 = vmatprep.subr.mxu0 %v1347
    %v1349 = vand.u32 %v55, 4294901760
    %1350 = vmatpush1.msra.mxu0 %v1349
    %v1351 = vand.u32 %v58, 4294901760
    %1352 = vmatprep.subr.mxu0 %v1351
    %v1353 = vand.u32 %v57, 4294901760
    %1354 = vmatpush1.msra.mxu0 %v1353
    %v1355 = vand.u32 %v60, 4294901760
    %1356 = vmatprep.subr.mxu0 %v1355
    %v1357 = vand.u32 %v59, 4294901760
    %1358 = vmatpush1.msra.mxu0 %v1357
    %v1359 = vand.u32 %v62, 4294901760
    %1360 = vmatprep.subr.mxu0 %v1359
    %v1361 = vand.u32 %v61, 4294901760
    %1362 = vmatpush1.msra.mxu0 %v1361
    %v1363 = vand.u32 %v64, 4294901760
    %1364 = vmatprep.subr.mxu0 %v1363
    %v1365 = vand.u32 %v63, 4294901760
    %1366 = vmatpush1.msra.mxu0 %v1365
    %v1367 = vand.u32 %v66, 4294901760
    %1368 = vmatprep.subr.mxu0 %v1367
    %v1369 = vand.u32 %v65, 4294901760
    %1370 = vmatpush1.msra.mxu0 %v1369
    %v1371 = vand.u32 %v68, 4294901760
    %1372 = vmatprep.subr.mxu0 %v1371
    %v1373 = vand.u32 %v67, 4294901760
    %1374 = vmatpush1.msra.mxu0 %v1373
    %v1375 = vand.u32 %v70, 4294901760
    %1376 = vmatprep.subr.mxu0 %v1375
    %v1377 = vand.u32 %v69, 4294901760
    %1378 = vmatpush1.msra.mxu0 %v1377
    %v1379 = vand.u32 %v72, 4294901760
    %1380 = vmatprep.subr.mxu0 %v1379
    %v1381 = vand.u32 %v71, 4294901760
    %1382 = vmatpush1.msra.mxu0 %v1381
    %v1383 = vand.u32 %v74, 4294901760
    %1384 = vmatprep.subr.mxu0 %v1383
    %v1385 = vand.u32 %v73, 4294901760
    %1386 = vmatpush1.msra.mxu0 %v1385
    %1387 = vmatprep.subr.mxu0 0.0
    %1388 = vmatpush1.msra.mxu0 0.0
    %1389 = vmatprep.subr.mxu0 0.0
    %1390 = vmatpush1.msra.mxu0 0.0
    %1391 = vmatprep.subr.mxu0 0.0
    %1392 = vmatpush1.msra.mxu0 0.0
    %1393 = vmatprep.subr.mxu0 0.0
    %1394 = vmatpush1.msra.mxu0 0.0
    %1395 = vmatprep.subr.mxu0 0.0
    %1396 = vmatpush1.msra.mxu0 0.0
    %1397 = vmatprep.subr.mxu0 0.0
    %1398 = vmatpush1.msra.mxu0 0.0
    %1399 = vmatprep.subr.mxu0 0.0
    %1400 = vmatpush1.msra.mxu0 0.0
    %1401 = vmatprep.subr.mxu0 0.0
    %1402 = vmatpush1.msra.mxu0 0.0
    %1403 = vmatprep.subr.mxu0 0.0
    %1404 = vmatpush1.msra.mxu0 0.0
    %1405 = vmatprep.subr.mxu0 0.0
    %1406 = vmatpush1.msra.mxu0 0.0
    %1407 = vmatprep.subr.mxu0 0.0
    %1408 = vmatpush1.msra.mxu0 0.0
    %1409 = vmatprep.subr.mxu0 0.0
    %1410 = vmatpush1.msra.mxu0 0.0
    %1411 = vmatprep.subr.mxu0 0.0
    %1412 = vmatpush1.msra.mxu0 0.0
    %1413 = vmatprep.subr.mxu0 0.0
    %1414 = vmatpush1.msra.mxu0 0.0
    %1415 = vmatprep.subr.mxu0 0.0
    %1416 = vmatpush1.msra.mxu0 0.0
    %1417 = vmatprep.subr.mxu0 0.0
    %1418 = vmatpush1.msra.mxu0 0.0
    %1419 = vmatprep.mubr.f32.mxu0 0.0
    %v1420 = vand.u32 %v571, 4294901760
    %1421 = vmatmul.mubr.f32.gmra.mrb[0].mxu0 %v1420
    %v1422 = vpop.f32.mrb[0].mxu0
    %v1423 = vadd.f32 %v1319, %v1422
    %v1424 = vpop.f32.mrb[0].mxu0
    %v1425 = vadd.f32 %v1321, %v1424
    %1426 = vdwg.mxu0
    %v1427 = vshra.s32 %v76, 2
    %1428 = vrot.lane.b32.xlu0 %v21, 1
    %v1429 = vpop.permute.xlu0 %1428
    %1430 = vrot.lane.b32.xlu0 %v1427, 1
    %v1431 = vpop.permute.xlu0 %1430
    %vm1432 = vcmp.eq.s32.totalorder %v1431, %v1427
    %v1433 = vsel %vm1432, %v1429, -inf
    %v1434 = vmax.f32 %v21, %v1433
    %1435 = vrot.lane.b32.xlu0 %v1434, 127
    %v1436 = vpop.permute.xlu0 %1435
    %1437 = vrot.lane.b32.xlu0 %v1427, 127
    %v1438 = vpop.permute.xlu0 %1437
    %vm1439 = vcmp.eq.s32.totalorder %v1438, %v1427
    %v1440 = vsel %vm1439, %v1436, -inf
    %v1441 = vmax.f32 %v1434, %v1440
    %1442 = vrot.lane.b32.xlu0 %v1441, 2
    %v1443 = vpop.permute.xlu0 %1442
    %1444 = vrot.lane.b32.xlu0 %v1427, 2
    %v1445 = vpop.permute.xlu0 %1444
    %vm1446 = vcmp.eq.s32.totalorder %v1445, %v1427
    %v1447 = vsel %vm1446, %v1443, -inf
    %v1448 = vmax.f32 %v1441, %v1447
    %1449 = vrot.lane.b32.xlu0 %v1448, 126
    %v1450 = vpop.permute.xlu0 %1449
    %1451 = vrot.lane.b32.xlu0 %v1427, 126
    %v1452 = vpop.permute.xlu0 %1451
    %vm1453 = vcmp.eq.s32.totalorder %v1452, %v1427
    %v1454 = vsel %vm1453, %v1450, -inf
    %v1455 = vmax.f32 %v1448, %v1454
    %v1456 = vsub.f32 %v21, %v1455
    %v1457 = vmul.f32 %v1456, 1.442695
    %v1458 = vpow.pop %v1457
    %1459 = vmatprep.subr.mxu0 0.0
    %v1460 = vand.u32 %v27, 4294901760
    %1461 = vmatpush1.msra.mxu0 %v1460
    %1462 = vmatprep.subr.mxu0 0.0
    %v1463 = vand.u32 %v28, 4294901760
    %1464 = vmatpush1.msra.mxu0 %v1463
    %1465 = vmatprep.subr.mxu0 0.0
    %v1466 = vand.u32 %v29, 4294901760
    %1467 = vmatpush1.msra.mxu0 %v1466
    %1468 = vmatprep.subr.mxu0 0.0
    %v1469 = vand.u32 %v30, 4294901760
    %1470 = vmatpush1.msra.mxu0 %v1469
    %1471 = vmatprep.subr.mxu0 0.0
    %v1472 = vand.u32 %v31, 4294901760
    %1473 = vmatpush1.msra.mxu0 %v1472
    %1474 = vmatprep.subr.mxu0 0.0
    %v1475 = vand.u32 %v32, 4294901760
    %1476 = vmatpush1.msra.mxu0 %v1475
    %1477 = vmatprep.subr.mxu0 0.0
    %v1478 = vand.u32 %v33, 4294901760
    %1479 = vmatpush1.msra.mxu0 %v1478
    %1480 = vmatprep.subr.mxu0 0.0
    %v1481 = vand.u32 %v34, 4294901760
    %1482 = vmatpush1.msra.mxu0 %v1481
    %1483 = vmatprep.subr.mxu0 0.0
    %v1484 = vand.u32 %v35, 4294901760
    %1485 = vmatpush1.msra.mxu0 %v1484
    %1486 = vmatprep.subr.mxu0 0.0
    %v1487 = vand.u32 %v36, 4294901760
    %1488 = vmatpush1.msra.mxu0 %v1487
    %1489 = vmatprep.subr.mxu0 0.0
    %v1490 = vand.u32 %v37, 4294901760
    %1491 = vmatpush1.msra.mxu0 %v1490
    %1492 = vmatprep.subr.mxu0 0.0
    %v1493 = vand.u32 %v38, 4294901760
    %1494 = vmatpush1.msra.mxu0 %v1493
    %1495 = vmatprep.subr.mxu0 0.0
    %v1496 = vand.u32 %v39, 4294901760
    %1497 = vmatpush1.msra.mxu0 %v1496
    %1498 = vmatprep.subr.mxu0 0.0
    %v1499 = vand.u32 %v40, 4294901760
    %1500 = vmatpush1.msra.mxu0 %v1499
    %1501 = vmatprep.subr.mxu0 0.0
    %v1502 = vand.u32 %v41, 4294901760
    %1503 = vmatpush1.msra.mxu0 %v1502
    %1504 = vmatprep.subr.mxu0 0.0
    %v1505 = vand.u32 %v42, 4294901760
    %1506 = vmatpush1.msra.mxu0 %v1505
    %1507 = vmatprep.subr.mxu0 0.0
    %1508 = vmatpush1.msra.mxu0 0.0
    %1509 = vmatprep.subr.mxu0 0.0
    %1510 = vmatpush1.msra.mxu0 0.0
    %1511 = vmatprep.subr.mxu0 0.0
    %1512 = vmatpush1.msra.mxu0 0.0
    %1513 = vmatprep.subr.mxu0 0.0
    %1514 = vmatpush1.msra.mxu0 0.0
    %1515 = vmatprep.subr.mxu0 0.0
    %1516 = vmatpush1.msra.mxu0 0.0
    %1517 = vmatprep.subr.mxu0 0.0
    %1518 = vmatpush1.msra.mxu0 0.0
    %1519 = vmatprep.subr.mxu0 0.0
    %1520 = vmatpush1.msra.mxu0 0.0
    %1521 = vmatprep.subr.mxu0 0.0
    %1522 = vmatpush1.msra.mxu0 0.0
    %1523 = vmatprep.subr.mxu0 0.0
    %1524 = vmatpush1.msra.mxu0 0.0
    %1525 = vmatprep.subr.mxu0 0.0
    %1526 = vmatpush1.msra.mxu0 0.0
    %1527 = vmatprep.subr.mxu0 0.0
    %1528 = vmatpush1.msra.mxu0 0.0
    %1529 = vmatprep.subr.mxu0 0.0
    %1530 = vmatpush1.msra.mxu0 0.0
    %1531 = vmatprep.subr.mxu0 0.0
    %1532 = vmatpush1.msra.mxu0 0.0
    %1533 = vmatprep.subr.mxu0 0.0
    %1534 = vmatpush1.msra.mxu0 0.0
    %1535 = vmatprep.subr.mxu0 0.0
    %1536 = vmatpush1.msra.mxu0 0.0
    %1537 = vmatprep.subr.mxu0 0.0
    %1538 = vmatpush1.msra.mxu0 0.0
    %1539 = vmatprep.mubr.f32.mxu0 0.0
    %v1540 = vand.u32 %v1458, 4294901760
    %v1541 = vsub.f32 %v1458, %v1540
    %v1542 = vand.u32 %v1541, 4294901760
    %v1543 = vsub.f32 %v1541, %v1542
    %v1544 = vand.u32 %v1543, 4294901760
    %1545 = vmatmul.mubr.f32.gmra.mrb[0].mxu0 %v1544
    %v1546 = vpop.f32.mrb[0].mxu0
    %v1547 = vadd.f32 0.0, %v1546
    %v1548 = vpop.f32.mrb[0].mxu0
    %1549 = vdwg.mxu0
    %1550 = vmatprep.subr.mxu0 0.0
    %v1551 = vand.u32 %v27, 4294901760
    %v1552 = vsub.f32 %v27, %v1551
    %v1553 = vand.u32 %v1552, 4294901760
    %v1554 = vsub.f32 %v1552, %v1553
    %v1555 = vand.u32 %v1554, 4294901760
    %1556 = vmatpush1.msra.mxu0 %v1555
    %1557 = vmatprep.subr.mxu0 0.0
    %v1558 = vand.u32 %v28, 4294901760
    %v1559 = vsub.f32 %v28, %v1558
    %v1560 = vand.u32 %v1559, 4294901760
    %v1561 = vsub.f32 %v1559, %v1560
    %v1562 = vand.u32 %v1561, 4294901760
    %1563 = vmatpush1.msra.mxu0 %v1562
    %1564 = vmatprep.subr.mxu0 0.0
    %v1565 = vand.u32 %v29, 4294901760
    %v1566 = vsub.f32 %v29, %v1565
    %v1567 = vand.u32 %v1566, 4294901760
    %v1568 = vsub.f32 %v1566, %v1567
    %v1569 = vand.u32 %v1568, 4294901760
    %1570 = vmatpush1.msra.mxu0 %v1569
    %1571 = vmatprep.subr.mxu0 0.0
    %v1572 = vand.u32 %v30, 4294901760
    %v1573 = vsub.f32 %v30, %v1572
    %v1574 = vand.u32 %v1573, 4294901760
    %v1575 = vsub.f32 %v1573, %v1574
    %v1576 = vand.u32 %v1575, 4294901760
    %1577 = vmatpush1.msra.mxu0 %v1576
    %1578 = vmatprep.subr.mxu0 0.0
    %v1579 = vand.u32 %v31, 4294901760
    %v1580 = vsub.f32 %v31, %v1579
    %v1581 = vand.u32 %v1580, 4294901760
    %v1582 = vsub.f32 %v1580, %v1581
    %v1583 = vand.u32 %v1582, 4294901760
    %1584 = vmatpush1.msra.mxu0 %v1583
    %1585 = vmatprep.subr.mxu0 0.0
    %v1586 = vand.u32 %v32, 4294901760
    %v1587 = vsub.f32 %v32, %v1586
    %v1588 = vand.u32 %v1587, 4294901760
    %v1589 = vsub.f32 %v1587, %v1588
    %v1590 = vand.u32 %v1589, 4294901760
    %1591 = vmatpush1.msra.mxu0 %v1590
    %1592 = vmatprep.subr.mxu0 0.0
    %v1593 = vand.u32 %v33, 4294901760
    %v1594 = vsub.f32 %v33, %v1593
    %v1595 = vand.u32 %v1594, 4294901760
    %v1596 = vsub.f32 %v1594, %v1595
    %v1597 = vand.u32 %v1596, 4294901760
    %1598 = vmatpush1.msra.mxu0 %v1597
    %1599 = vmatprep.subr.mxu0 0.0
    %v1600 = vand.u32 %v34, 4294901760
    %v1601 = vsub.f32 %v34, %v1600
    %v1602 = vand.u32 %v1601, 4294901760
    %v1603 = vsub.f32 %v1601, %v1602
    %v1604 = vand.u32 %v1603, 4294901760
    %1605 = vmatpush1.msra.mxu0 %v1604
    %1606 = vmatprep.subr.mxu0 0.0
    %v1607 = vand.u32 %v35, 4294901760
    %v1608 = vsub.f32 %v35, %v1607
    %v1609 = vand.u32 %v1608, 4294901760
    %v1610 = vsub.f32 %v1608, %v1609
    %v1611 = vand.u32 %v1610, 4294901760
    %1612 = vmatpush1.msra.mxu0 %v1611
    %1613 = vmatprep.subr.mxu0 0.0
    %v1614 = vand.u32 %v36, 4294901760
    %v1615 = vsub.f32 %v36, %v1614
    %v1616 = vand.u32 %v1615, 4294901760
    %v1617 = vsub.f32 %v1615, %v1616
    %v1618 = vand.u32 %v1617, 4294901760
    %1619 = vmatpush1.msra.mxu0 %v1618
    %1620 = vmatprep.subr.mxu0 0.0
    %v1621 = vand.u32 %v37, 4294901760
    %v1622 = vsub.f32 %v37, %v1621
    %v1623 = vand.u32 %v1622, 4294901760
    %v1624 = vsub.f32 %v1622, %v1623
    %v1625 = vand.u32 %v1624, 4294901760
    %1626 = vmatpush1.msra.mxu0 %v1625
    %1627 = vmatprep.subr.mxu0 0.0
    %v1628 = vand.u32 %v38, 4294901760
    %v1629 = vsub.f32 %v38, %v1628
    %v1630 = vand.u32 %v1629, 4294901760
    %v1631 = vsub.f32 %v1629, %v1630
    %v1632 = vand.u32 %v1631, 4294901760
    %1633 = vmatpush1.msra.mxu0 %v1632
    %1634 = vmatprep.subr.mxu0 0.0
    %v1635 = vand.u32 %v39, 4294901760
    %v1636 = vsub.f32 %v39, %v1635
    %v1637 = vand.u32 %v1636, 4294901760
    %v1638 = vsub.f32 %v1636, %v1637
    %v1639 = vand.u32 %v1638, 4294901760
    %1640 = vmatpush1.msra.mxu0 %v1639
    %1641 = vmatprep.subr.mxu0 0.0
    %v1642 = vand.u32 %v40, 4294901760
    %v1643 = vsub.f32 %v40, %v1642
    %v1644 = vand.u32 %v1643, 4294901760
    %v1645 = vsub.f32 %v1643, %v1644
    %v1646 = vand.u32 %v1645, 4294901760
    %1647 = vmatpush1.msra.mxu0 %v1646
    %1648 = vmatprep.subr.mxu0 0.0
    %v1649 = vand.u32 %v41, 4294901760
    %v1650 = vsub.f32 %v41, %v1649
    %v1651 = vand.u32 %v1650, 4294901760
    %v1652 = vsub.f32 %v1650, %v1651
    %v1653 = vand.u32 %v1652, 4294901760
    %1654 = vmatpush1.msra.mxu0 %v1653
    %1655 = vmatprep.subr.mxu0 0.0
    %v1656 = vand.u32 %v42, 4294901760
    %v1657 = vsub.f32 %v42, %v1656
    %v1658 = vand.u32 %v1657, 4294901760
    %v1659 = vsub.f32 %v1657, %v1658
    %v1660 = vand.u32 %v1659, 4294901760
    %1661 = vmatpush1.msra.mxu0 %v1660
    %1662 = vmatprep.subr.mxu0 0.0
    %1663 = vmatpush1.msra.mxu0 0.0
    %1664 = vmatprep.subr.mxu0 0.0
    %1665 = vmatpush1.msra.mxu0 0.0
    %1666 = vmatprep.subr.mxu0 0.0
    %1667 = vmatpush1.msra.mxu0 0.0
    %1668 = vmatprep.subr.mxu0 0.0
    %1669 = vmatpush1.msra.mxu0 0.0
    %1670 = vmatprep.subr.mxu0 0.0
    %1671 = vmatpush1.msra.mxu0 0.0
    %1672 = vmatprep.subr.mxu0 0.0
    %1673 = vmatpush1.msra.mxu0 0.0
    %1674 = vmatprep.subr.mxu0 0.0
    %1675 = vmatpush1.msra.mxu0 0.0
    %1676 = vmatprep.subr.mxu0 0.0
    %1677 = vmatpush1.msra.mxu0 0.0
    %1678 = vmatprep.subr.mxu0 0.0
    %1679 = vmatpush1.msra.mxu0 0.0
    %1680 = vmatprep.subr.mxu0 0.0
    %1681 = vmatpush1.msra.mxu0 0.0
    %1682 = vmatprep.subr.mxu0 0.0
    %1683 = vmatpush1.msra.mxu0 0.0
    %1684 = vmatprep.subr.mxu0 0.0
    %1685 = vmatpush1.msra.mxu0 0.0
    %1686 = vmatprep.subr.mxu0 0.0
    %1687 = vmatpush1.msra.mxu0 0.0
    %1688 = vmatprep.subr.mxu0 0.0
    %1689 = vmatpush1.msra.mxu0 0.0
    %1690 = vmatprep.subr.mxu0 0.0
    %1691 = vmatpush1.msra.mxu0 0.0
    %1692 = vmatprep.subr.mxu0 0.0
    %1693 = vmatpush1.msra.mxu0 0.0
    %1694 = vmatprep.mubr.f32.mxu0 0.0
    %v1695 = vand.u32 %v1458, 4294901760
    %1696 = vmatmul.mubr.f32.gmra.mrb[0].mxu0 %v1695
    %v1697 = vpop.f32.mrb[0].mxu0
    %v1698 = vadd.f32 %v1547, %v1697
    %v1699 = vpop.f32.mrb[0].mxu0
    %1700 = vdwg.mxu0
    %1701 = vmatprep.subr.mxu0 0.0
    %v1702 = vand.u32 %v27, 4294901760
    %v1703 = vsub.f32 %v27, %v1702
    %1704 = vmatpush1.msra.mxu0 %v1703
    %1705 = vmatprep.subr.mxu0 0.0
    %v1706 = vand.u32 %v28, 4294901760
    %v1707 = vsub.f32 %v28, %v1706
    %1708 = vmatpush1.msra.mxu0 %v1707
    %1709 = vmatprep.subr.mxu0 0.0
    %v1710 = vand.u32 %v29, 4294901760
    %v1711 = vsub.f32 %v29, %v1710
    %1712 = vmatpush1.msra.mxu0 %v1711
    %1713 = vmatprep.subr.mxu0 0.0
    %v1714 = vand.u32 %v30, 4294901760
    %v1715 = vsub.f32 %v30, %v1714
    %1716 = vmatpush1.msra.mxu0 %v1715
    %1717 = vmatprep.subr.mxu0 0.0
    %v1718 = vand.u32 %v31, 4294901760
    %v1719 = vsub.f32 %v31, %v1718
    %1720 = vmatpush1.msra.mxu0 %v1719
    %1721 = vmatprep.subr.mxu0 0.0
    %v1722 = vand.u32 %v32, 4294901760
    %v1723 = vsub.f32 %v32, %v1722
    %1724 = vmatpush1.msra.mxu0 %v1723
    %1725 = vmatprep.subr.mxu0 0.0
    %v1726 = vand.u32 %v33, 4294901760
    %v1727 = vsub.f32 %v33, %v1726
    %1728 = vmatpush1.msra.mxu0 %v1727
    %1729 = vmatprep.subr.mxu0 0.0
    %v1730 = vand.u32 %v34, 4294901760
    %v1731 = vsub.f32 %v34, %v1730
    %1732 = vmatpush1.msra.mxu0 %v1731
    %1733 = vmatprep.subr.mxu0 0.0
    %v1734 = vand.u32 %v35, 4294901760
    %v1735 = vsub.f32 %v35, %v1734
    %1736 = vmatpush1.msra.mxu0 %v1735
    %1737 = vmatprep.subr.mxu0 0.0
    %v1738 = vand.u32 %v36, 4294901760
    %v1739 = vsub.f32 %v36, %v1738
    %1740 = vmatpush1.msra.mxu0 %v1739
    %1741 = vmatprep.subr.mxu0 0.0
    %v1742 = vand.u32 %v37, 4294901760
    %v1743 = vsub.f32 %v37, %v1742
    %1744 = vmatpush1.msra.mxu0 %v1743
    %1745 = vmatprep.subr.mxu0 0.0
    %v1746 = vand.u32 %v38, 4294901760
    %v1747 = vsub.f32 %v38, %v1746
    %1748 = vmatpush1.msra.mxu0 %v1747
    %1749 = vmatprep.subr.mxu0 0.0
    %v1750 = vand.u32 %v39, 4294901760
    %v1751 = vsub.f32 %v39, %v1750
    %1752 = vmatpush1.msra.mxu0 %v1751
    %1753 = vmatprep.subr.mxu0 0.0
    %v1754 = vand.u32 %v40, 4294901760
    %v1755 = vsub.f32 %v40, %v1754
    %1756 = vmatpush1.msra.mxu0 %v1755
    %1757 = vmatprep.subr.mxu0 0.0
    %v1758 = vand.u32 %v41, 4294901760
    %v1759 = vsub.f32 %v41, %v1758
    %1760 = vmatpush1.msra.mxu0 %v1759
    %1761 = vmatprep.subr.mxu0 0.0
    %v1762 = vand.u32 %v42, 4294901760
    %v1763 = vsub.f32 %v42, %v1762
    %1764 = vmatpush1.msra.mxu0 %v1763
    %1765 = vmatprep.subr.mxu0 0.0
    %1766 = vmatpush1.msra.mxu0 0.0
    %1767 = vmatprep.subr.mxu0 0.0
    %1768 = vmatpush1.msra.mxu0 0.0
    %1769 = vmatprep.subr.mxu0 0.0
    %1770 = vmatpush1.msra.mxu0 0.0
    %1771 = vmatprep.subr.mxu0 0.0
    %1772 = vmatpush1.msra.mxu0 0.0
    %1773 = vmatprep.subr.mxu0 0.0
    %1774 = vmatpush1.msra.mxu0 0.0
    %1775 = vmatprep.subr.mxu0 0.0
    %1776 = vmatpush1.msra.mxu0 0.0
    %1777 = vmatprep.subr.mxu0 0.0
    %1778 = vmatpush1.msra.mxu0 0.0
    %1779 = vmatprep.subr.mxu0 0.0
    %1780 = vmatpush1.msra.mxu0 0.0
    %1781 = vmatprep.subr.mxu0 0.0
    %1782 = vmatpush1.msra.mxu0 0.0
    %1783 = vmatprep.subr.mxu0 0.0
    %1784 = vmatpush1.msra.mxu0 0.0
    %1785 = vmatprep.subr.mxu0 0.0
    %1786 = vmatpush1.msra.mxu0 0.0
    %1787 = vmatprep.subr.mxu0 0.0
    %1788 = vmatpush1.msra.mxu0 0.0
    %1789 = vmatprep.subr.mxu0 0.0
    %1790 = vmatpush1.msra.mxu0 0.0
    %1791 = vmatprep.subr.mxu0 0.0
    %1792 = vmatpush1.msra.mxu0 0.0
    %1793 = vmatprep.subr.mxu0 0.0
    %1794 = vmatpush1.msra.mxu0 0.0
    %1795 = vmatprep.subr.mxu0 0.0
    %1796 = vmatpush1.msra.mxu0 0.0
    %1797 = vmatprep.mubr.f32.mxu0 0.0
    %v1798 = vand.u32 %v1458, 4294901760
    %v1799 = vsub.f32 %v1458, %v1798
    %1800 = vmatmul.mubr.f32.gmra.mrb[0].mxu0 %v1799
    %v1801 = vpop.f32.mrb[0].mxu0
    %v1802 = vadd.f32 %v1698, %v1801
    %v1803 = vpop.f32.mrb[0].mxu0
    %1804 = vdwg.mxu0
    %1805 = vmatprep.subr.mxu0 0.0
    %v1806 = vand.u32 %v27, 4294901760
    %1807 = vmatpush1.msra.mxu0 %v1806
    %1808 = vmatprep.subr.mxu0 0.0
    %v1809 = vand.u32 %v28, 4294901760
    %1810 = vmatpush1.msra.mxu0 %v1809
    %1811 = vmatprep.subr.mxu0 0.0
    %v1812 = vand.u32 %v29, 4294901760
    %1813 = vmatpush1.msra.mxu0 %v1812
    %1814 = vmatprep.subr.mxu0 0.0
    %v1815 = vand.u32 %v30, 4294901760
    %1816 = vmatpush1.msra.mxu0 %v1815
    %1817 = vmatprep.subr.mxu0 0.0
    %v1818 = vand.u32 %v31, 4294901760
    %1819 = vmatpush1.msra.mxu0 %v1818
    %1820 = vmatprep.subr.mxu0 0.0
    %v1821 = vand.u32 %v32, 4294901760
    %1822 = vmatpush1.msra.mxu0 %v1821
    %1823 = vmatprep.subr.mxu0 0.0
    %v1824 = vand.u32 %v33, 4294901760
    %1825 = vmatpush1.msra.mxu0 %v1824
    %1826 = vmatprep.subr.mxu0 0.0
    %v1827 = vand.u32 %v34, 4294901760
    %1828 = vmatpush1.msra.mxu0 %v1827
    %1829 = vmatprep.subr.mxu0 0.0
    %v1830 = vand.u32 %v35, 4294901760
    %1831 = vmatpush1.msra.mxu0 %v1830
    %1832 = vmatprep.subr.mxu0 0.0
    %v1833 = vand.u32 %v36, 4294901760
    %1834 = vmatpush1.msra.mxu0 %v1833
    %1835 = vmatprep.subr.mxu0 0.0
    %v1836 = vand.u32 %v37, 4294901760
    %1837 = vmatpush1.msra.mxu0 %v1836
    %1838 = vmatprep.subr.mxu0 0.0
    %v1839 = vand.u32 %v38, 4294901760
    %1840 = vmatpush1.msra.mxu0 %v1839
    %1841 = vmatprep.subr.mxu0 0.0
    %v1842 = vand.u32 %v39, 4294901760
    %1843 = vmatpush1.msra.mxu0 %v1842
    %1844 = vmatprep.subr.mxu0 0.0
    %v1845 = vand.u32 %v40, 4294901760
    %1846 = vmatpush1.msra.mxu0 %v1845
    %1847 = vmatprep.subr.mxu0 0.0
    %v1848 = vand.u32 %v41, 4294901760
    %1849 = vmatpush1.msra.mxu0 %v1848
    %1850 = vmatprep.subr.mxu0 0.0
    %v1851 = vand.u32 %v42, 4294901760
    %1852 = vmatpush1.msra.mxu0 %v1851
    %1853 = vmatprep.subr.mxu0 0.0
    %1854 = vmatpush1.msra.mxu0 0.0
    %1855 = vmatprep.subr.mxu0 0.0
    %1856 = vmatpush1.msra.mxu0 0.0
    %1857 = vmatprep.subr.mxu0 0.0
    %1858 = vmatpush1.msra.mxu0 0.0
    %1859 = vmatprep.subr.mxu0 0.0
    %1860 = vmatpush1.msra.mxu0 0.0
    %1861 = vmatprep.subr.mxu0 0.0
    %1862 = vmatpush1.msra.mxu0 0.0
    %1863 = vmatprep.subr.mxu0 0.0
    %1864 = vmatpush1.msra.mxu0 0.0
    %1865 = vmatprep.subr.mxu0 0.0
    %1866 = vmatpush1.msra.mxu0 0.0
    %1867 = vmatprep.subr.mxu0 0.0
    %1868 = vmatpush1.msra.mxu0 0.0
    %1869 = vmatprep.subr.mxu0 0.0
    %1870 = vmatpush1.msra.mxu0 0.0
    %1871 = vmatprep.subr.mxu0 0.0
    %1872 = vmatpush1.msra.mxu0 0.0
    %1873 = vmatprep.subr.mxu0 0.0
    %1874 = vmatpush1.msra.mxu0 0.0
    %1875 = vmatprep.subr.mxu0 0.0
    %1876 = vmatpush1.msra.mxu0 0.0
    %1877 = vmatprep.subr.mxu0 0.0
    %1878 = vmatpush1.msra.mxu0 0.0
    %1879 = vmatprep.subr.mxu0 0.0
    %1880 = vmatpush1.msra.mxu0 0.0
    %1881 = vmatprep.subr.mxu0 0.0
    %1882 = vmatpush1.msra.mxu0 0.0
    %1883 = vmatprep.subr.mxu0 0.0
    %1884 = vmatpush1.msra.mxu0 0.0
    %1885 = vmatprep.mubr.f32.mxu0 0.0
    %v1886 = vand.u32 %v1458, 4294901760
    %v1887 = vsub.f32 %v1458, %v1886
    %v1888 = vand.u32 %v1887, 4294901760
    %1889 = vmatmul.mubr.f32.gmra.mrb[0].mxu0 %v1888
    %v1890 = vpop.f32.mrb[0].mxu0
    %v1891 = vadd.f32 %v1802, %v1890
    %v1892 = vpop.f32.mrb[0].mxu0
    %1893 = vdwg.mxu0
    %1894 = vmatprep.subr.mxu0 0.0
    %v1895 = vand.u32 %v27, 4294901760
    %v1896 = vsub.f32 %v27, %v1895
    %v1897 = vand.u32 %v1896, 4294901760
    %1898 = vmatpush1.msra.mxu0 %v1897
    %1899 = vmatprep.subr.mxu0 0.0
    %v1900 = vand.u32 %v28, 4294901760
    %v1901 = vsub.f32 %v28, %v1900
    %v1902 = vand.u32 %v1901, 4294901760
    %1903 = vmatpush1.msra.mxu0 %v1902
    %1904 = vmatprep.subr.mxu0 0.0
    %v1905 = vand.u32 %v29, 4294901760
    %v1906 = vsub.f32 %v29, %v1905
    %v1907 = vand.u32 %v1906, 4294901760
    %1908 = vmatpush1.msra.mxu0 %v1907
    %1909 = vmatprep.subr.mxu0 0.0
    %v1910 = vand.u32 %v30, 4294901760
    %v1911 = vsub.f32 %v30, %v1910
    %v1912 = vand.u32 %v1911, 4294901760
    %1913 = vmatpush1.msra.mxu0 %v1912
    %1914 = vmatprep.subr.mxu0 0.0
    %v1915 = vand.u32 %v31, 4294901760
    %v1916 = vsub.f32 %v31, %v1915
    %v1917 = vand.u32 %v1916, 4294901760
    %1918 = vmatpush1.msra.mxu0 %v1917
    %1919 = vmatprep.subr.mxu0 0.0
    %v1920 = vand.u32 %v32, 4294901760
    %v1921 = vsub.f32 %v32, %v1920
    %v1922 = vand.u32 %v1921, 4294901760
    %1923 = vmatpush1.msra.mxu0 %v1922
    %1924 = vmatprep.subr.mxu0 0.0
    %v1925 = vand.u32 %v33, 4294901760
    %v1926 = vsub.f32 %v33, %v1925
    %v1927 = vand.u32 %v1926, 4294901760
    %1928 = vmatpush1.msra.mxu0 %v1927
    %1929 = vmatprep.subr.mxu0 0.0
    %v1930 = vand.u32 %v34, 4294901760
    %v1931 = vsub.f32 %v34, %v1930
    %v1932 = vand.u32 %v1931, 4294901760
    %1933 = vmatpush1.msra.mxu0 %v1932
    %1934 = vmatprep.subr.mxu0 0.0
    %v1935 = vand.u32 %v35, 4294901760
    %v1936 = vsub.f32 %v35, %v1935
    %v1937 = vand.u32 %v1936, 4294901760
    %1938 = vmatpush1.msra.mxu0 %v1937
    %1939 = vmatprep.subr.mxu0 0.0
    %v1940 = vand.u32 %v36, 4294901760
    %v1941 = vsub.f32 %v36, %v1940
    %v1942 = vand.u32 %v1941, 4294901760
    %1943 = vmatpush1.msra.mxu0 %v1942
    %1944 = vmatprep.subr.mxu0 0.0
    %v1945 = vand.u32 %v37, 4294901760
    %v1946 = vsub.f32 %v37, %v1945
    %v1947 = vand.u32 %v1946, 4294901760
    %1948 = vmatpush1.msra.mxu0 %v1947
    %1949 = vmatprep.subr.mxu0 0.0
    %v1950 = vand.u32 %v38, 4294901760
    %v1951 = vsub.f32 %v38, %v1950
    %v1952 = vand.u32 %v1951, 4294901760
    %1953 = vmatpush1.msra.mxu0 %v1952
    %1954 = vmatprep.subr.mxu0 0.0
    %v1955 = vand.u32 %v39, 4294901760
    %v1956 = vsub.f32 %v39, %v1955
    %v1957 = vand.u32 %v1956, 4294901760
    %1958 = vmatpush1.msra.mxu0 %v1957
    %1959 = vmatprep.subr.mxu0 0.0
    %v1960 = vand.u32 %v40, 4294901760
    %v1961 = vsub.f32 %v40, %v1960
    %v1962 = vand.u32 %v1961, 4294901760
    %1963 = vmatpush1.msra.mxu0 %v1962
    %1964 = vmatprep.subr.mxu0 0.0
    %v1965 = vand.u32 %v41, 4294901760
    %v1966 = vsub.f32 %v41, %v1965
    %v1967 = vand.u32 %v1966, 4294901760
    %1968 = vmatpush1.msra.mxu0 %v1967
    %1969 = vmatprep.subr.mxu0 0.0
    %v1970 = vand.u32 %v42, 4294901760
    %v1971 = vsub.f32 %v42, %v1970
    %v1972 = vand.u32 %v1971, 4294901760
    %1973 = vmatpush1.msra.mxu0 %v1972
    %1974 = vmatprep.subr.mxu0 0.0
    %1975 = vmatpush1.msra.mxu0 0.0
    %1976 = vmatprep.subr.mxu0 0.0
    %1977 = vmatpush1.msra.mxu0 0.0
    %1978 = vmatprep.subr.mxu0 0.0
    %1979 = vmatpush1.msra.mxu0 0.0
    %1980 = vmatprep.subr.mxu0 0.0
    %1981 = vmatpush1.msra.mxu0 0.0
    %1982 = vmatprep.subr.mxu0 0.0
    %1983 = vmatpush1.msra.mxu0 0.0
    %1984 = vmatprep.subr.mxu0 0.0
    %1985 = vmatpush1.msra.mxu0 0.0
    %1986 = vmatprep.subr.mxu0 0.0
    %1987 = vmatpush1.msra.mxu0 0.0
    %1988 = vmatprep.subr.mxu0 0.0
    %1989 = vmatpush1.msra.mxu0 0.0
    %1990 = vmatprep.subr.mxu0 0.0
    %1991 = vmatpush1.msra.mxu0 0.0
    %1992 = vmatprep.subr.mxu0 0.0
    %1993 = vmatpush1.msra.mxu0 0.0
    %1994 = vmatprep.subr.mxu0 0.0
    %1995 = vmatpush1.msra.mxu0 0.0
    %1996 = vmatprep.subr.mxu0 0.0
    %1997 = vmatpush1.msra.mxu0 0.0
    %1998 = vmatprep.subr.mxu0 0.0
    %1999 = vmatpush1.msra.mxu0 0.0
    %2000 = vmatprep.subr.mxu0 0.0
    %2001 = vmatpush1.msra.mxu0 0.0
    %2002 = vmatprep.subr.mxu0 0.0
    %2003 = vmatpush1.msra.mxu0 0.0
    %2004 = vmatprep.subr.mxu0 0.0
    %2005 = vmatpush1.msra.mxu0 0.0
    %2006 = vmatprep.mubr.f32.mxu0 0.0
    %v2007 = vand.u32 %v1458, 4294901760
    %2008 = vmatmul.mubr.f32.gmra.mrb[0].mxu0 %v2007
    %v2009 = vpop.f32.mrb[0].mxu0
    %v2010 = vadd.f32 %v1891, %v2009
    %v2011 = vpop.f32.mrb[0].mxu0
    %2012 = vdwg.mxu0
    %2013 = vmatprep.subr.mxu0 0.0
    %v2014 = vand.u32 %v27, 4294901760
    %2015 = vmatpush1.msra.mxu0 %v2014
    %2016 = vmatprep.subr.mxu0 0.0
    %v2017 = vand.u32 %v28, 4294901760
    %2018 = vmatpush1.msra.mxu0 %v2017
    %2019 = vmatprep.subr.mxu0 0.0
    %v2020 = vand.u32 %v29, 4294901760
    %2021 = vmatpush1.msra.mxu0 %v2020
    %2022 = vmatprep.subr.mxu0 0.0
    %v2023 = vand.u32 %v30, 4294901760
    %2024 = vmatpush1.msra.mxu0 %v2023
    %2025 = vmatprep.subr.mxu0 0.0
    %v2026 = vand.u32 %v31, 4294901760
    %2027 = vmatpush1.msra.mxu0 %v2026
    %2028 = vmatprep.subr.mxu0 0.0
    %v2029 = vand.u32 %v32, 4294901760
    %2030 = vmatpush1.msra.mxu0 %v2029
    %2031 = vmatprep.subr.mxu0 0.0
    %v2032 = vand.u32 %v33, 4294901760
    %2033 = vmatpush1.msra.mxu0 %v2032
    %2034 = vmatprep.subr.mxu0 0.0
    %v2035 = vand.u32 %v34, 4294901760
    %2036 = vmatpush1.msra.mxu0 %v2035
    %2037 = vmatprep.subr.mxu0 0.0
    %v2038 = vand.u32 %v35, 4294901760
    %2039 = vmatpush1.msra.mxu0 %v2038
    %2040 = vmatprep.subr.mxu0 0.0
    %v2041 = vand.u32 %v36, 4294901760
    %2042 = vmatpush1.msra.mxu0 %v2041
    %2043 = vmatprep.subr.mxu0 0.0
    %v2044 = vand.u32 %v37, 4294901760
    %2045 = vmatpush1.msra.mxu0 %v2044
    %2046 = vmatprep.subr.mxu0 0.0
    %v2047 = vand.u32 %v38, 4294901760
    %2048 = vmatpush1.msra.mxu0 %v2047
    %2049 = vmatprep.subr.mxu0 0.0
    %v2050 = vand.u32 %v39, 4294901760
    %2051 = vmatpush1.msra.mxu0 %v2050
    %2052 = vmatprep.subr.mxu0 0.0
    %v2053 = vand.u32 %v40, 4294901760
    %2054 = vmatpush1.msra.mxu0 %v2053
    %2055 = vmatprep.subr.mxu0 0.0
    %v2056 = vand.u32 %v41, 4294901760
    %2057 = vmatpush1.msra.mxu0 %v2056
    %2058 = vmatprep.subr.mxu0 0.0
    %v2059 = vand.u32 %v42, 4294901760
    %2060 = vmatpush1.msra.mxu0 %v2059
    %2061 = vmatprep.subr.mxu0 0.0
    %2062 = vmatpush1.msra.mxu0 0.0
    %2063 = vmatprep.subr.mxu0 0.0
    %2064 = vmatpush1.msra.mxu0 0.0
    %2065 = vmatprep.subr.mxu0 0.0
    %2066 = vmatpush1.msra.mxu0 0.0
    %2067 = vmatprep.subr.mxu0 0.0
    %2068 = vmatpush1.msra.mxu0 0.0
    %2069 = vmatprep.subr.mxu0 0.0
    %2070 = vmatpush1.msra.mxu0 0.0
    %2071 = vmatprep.subr.mxu0 0.0
    %2072 = vmatpush1.msra.mxu0 0.0
    %2073 = vmatprep.subr.mxu0 0.0
    %2074 = vmatpush1.msra.mxu0 0.0
    %2075 = vmatprep.subr.mxu0 0.0
    %2076 = vmatpush1.msra.mxu0 0.0
    %2077 = vmatprep.subr.mxu0 0.0
    %2078 = vmatpush1.msra.mxu0 0.0
    %2079 = vmatprep.subr.mxu0 0.0
    %2080 = vmatpush1.msra.mxu0 0.0
    %2081 = vmatprep.subr.mxu0 0.0
    %2082 = vmatpush1.msra.mxu0 0.0
    %2083 = vmatprep.subr.mxu0 0.0
    %2084 = vmatpush1.msra.mxu0 0.0
    %2085 = vmatprep.subr.mxu0 0.0
    %2086 = vmatpush1.msra.mxu0 0.0
    %2087 = vmatprep.subr.mxu0 0.0
    %2088 = vmatpush1.msra.mxu0 0.0
    %2089 = vmatprep.subr.mxu0 0.0
    %2090 = vmatpush1.msra.mxu0 0.0
    %2091 = vmatprep.subr.mxu0 0.0
    %2092 = vmatpush1.msra.mxu0 0.0
    %2093 = vmatprep.mubr.f32.mxu0 0.0
    %v2094 = vand.u32 %v1458, 4294901760
    %2095 = vmatmul.mubr.f32.gmra.mrb[0].mxu0 %v2094
    %v2096 = vpop.f32.mrb[0].mxu0
    %v2097 = vadd.f32 %v2010, %v2096
    %v2098 = vpop.f32.mrb[0].mxu0
    %2099 = vdwg.mxu0
    %vm2100 = vcmp.eq.s32.totalorder %v77, 0
    %v2101 = vsel %vm2100, 1, 0
    %v2102 = vcvt.s32.f32 %v2101
    %v2103 = vmul.f32 %v1455, %v2102
    %2104 = vmatprep.subr.mxu0 0.0
    %v2105 = vand.u32 %v27, 4294901760
    %2106 = vmatpush1.msra.mxu0 %v2105
    %2107 = vmatprep.subr.mxu0 0.0
    %v2108 = vand.u32 %v28, 4294901760
    %2109 = vmatpush1.msra.mxu0 %v2108
    %2110 = vmatprep.subr.mxu0 0.0
    %v2111 = vand.u32 %v29, 4294901760
    %2112 = vmatpush1.msra.mxu0 %v2111
    %2113 = vmatprep.subr.mxu0 0.0
    %v2114 = vand.u32 %v30, 4294901760
    %2115 = vmatpush1.msra.mxu0 %v2114
    %2116 = vmatprep.subr.mxu0 0.0
    %v2117 = vand.u32 %v31, 4294901760
    %2118 = vmatpush1.msra.mxu0 %v2117
    %2119 = vmatprep.subr.mxu0 0.0
    %v2120 = vand.u32 %v32, 4294901760
    %2121 = vmatpush1.msra.mxu0 %v2120
    %2122 = vmatprep.subr.mxu0 0.0
    %v2123 = vand.u32 %v33, 4294901760
    %2124 = vmatpush1.msra.mxu0 %v2123
    %2125 = vmatprep.subr.mxu0 0.0
    %v2126 = vand.u32 %v34, 4294901760
    %2127 = vmatpush1.msra.mxu0 %v2126
    %2128 = vmatprep.subr.mxu0 0.0
    %v2129 = vand.u32 %v35, 4294901760
    %2130 = vmatpush1.msra.mxu0 %v2129
    %2131 = vmatprep.subr.mxu0 0.0
    %v2132 = vand.u32 %v36, 4294901760
    %2133 = vmatpush1.msra.mxu0 %v2132
    %2134 = vmatprep.subr.mxu0 0.0
    %v2135 = vand.u32 %v37, 4294901760
    %2136 = vmatpush1.msra.mxu0 %v2135
    %2137 = vmatprep.subr.mxu0 0.0
    %v2138 = vand.u32 %v38, 4294901760
    %2139 = vmatpush1.msra.mxu0 %v2138
    %2140 = vmatprep.subr.mxu0 0.0
    %v2141 = vand.u32 %v39, 4294901760
    %2142 = vmatpush1.msra.mxu0 %v2141
    %2143 = vmatprep.subr.mxu0 0.0
    %v2144 = vand.u32 %v40, 4294901760
    %2145 = vmatpush1.msra.mxu0 %v2144
    %2146 = vmatprep.subr.mxu0 0.0
    %v2147 = vand.u32 %v41, 4294901760
    %2148 = vmatpush1.msra.mxu0 %v2147
    %2149 = vmatprep.subr.mxu0 0.0
    %v2150 = vand.u32 %v42, 4294901760
    %2151 = vmatpush1.msra.mxu0 %v2150
    %2152 = vmatprep.subr.mxu0 0.0
    %2153 = vmatpush1.msra.mxu0 0.0
    %2154 = vmatprep.subr.mxu0 0.0
    %2155 = vmatpush1.msra.mxu0 0.0
    %2156 = vmatprep.subr.mxu0 0.0
    %2157 = vmatpush1.msra.mxu0 0.0
    %2158 = vmatprep.subr.mxu0 0.0
    %2159 = vmatpush1.msra.mxu0 0.0
    %2160 = vmatprep.subr.mxu0 0.0
    %2161 = vmatpush1.msra.mxu0 0.0
    %2162 = vmatprep.subr.mxu0 0.0
    %2163 = vmatpush1.msra.mxu0 0.0
    %2164 = vmatprep.subr.mxu0 0.0
    %2165 = vmatpush1.msra.mxu0 0.0
    %2166 = vmatprep.subr.mxu0 0.0
    %2167 = vmatpush1.msra.mxu0 0.0
    %2168 = vmatprep.subr.mxu0 0.0
    %2169 = vmatpush1.msra.mxu0 0.0
    %2170 = vmatprep.subr.mxu0 0.0
    %2171 = vmatpush1.msra.mxu0 0.0
    %2172 = vmatprep.subr.mxu0 0.0
    %2173 = vmatpush1.msra.mxu0 0.0
    %2174 = vmatprep.subr.mxu0 0.0
    %2175 = vmatpush1.msra.mxu0 0.0
    %2176 = vmatprep.subr.mxu0 0.0
    %2177 = vmatpush1.msra.mxu0 0.0
    %2178 = vmatprep.subr.mxu0 0.0
    %2179 = vmatpush1.msra.mxu0 0.0
    %2180 = vmatprep.subr.mxu0 0.0
    %2181 = vmatpush1.msra.mxu0 0.0
    %2182 = vmatprep.subr.mxu0 0.0
    %2183 = vmatpush1.msra.mxu0 0.0
    %2184 = vmatprep.mubr.f32.mxu0 0.0
    %v2185 = vand.u32 %v2103, 4294901760
    %v2186 = vsub.f32 %v2103, %v2185
    %v2187 = vand.u32 %v2186, 4294901760
    %v2188 = vsub.f32 %v2186, %v2187
    %v2189 = vand.u32 %v2188, 4294901760
    %2190 = vmatmul.mubr.f32.gmra.mrb[0].mxu0 %v2189
    %v2191 = vpop.f32.mrb[0].mxu0
    %v2192 = vadd.f32 0.0, %v2191
    %v2193 = vpop.f32.mrb[0].mxu0
    %2194 = vdwg.mxu0
    %2195 = vmatprep.subr.mxu0 0.0
    %v2196 = vand.u32 %v27, 4294901760
    %v2197 = vsub.f32 %v27, %v2196
    %v2198 = vand.u32 %v2197, 4294901760
    %v2199 = vsub.f32 %v2197, %v2198
    %v2200 = vand.u32 %v2199, 4294901760
    %2201 = vmatpush1.msra.mxu0 %v2200
    %2202 = vmatprep.subr.mxu0 0.0
    %v2203 = vand.u32 %v28, 4294901760
    %v2204 = vsub.f32 %v28, %v2203
    %v2205 = vand.u32 %v2204, 4294901760
    %v2206 = vsub.f32 %v2204, %v2205
    %v2207 = vand.u32 %v2206, 4294901760
    %2208 = vmatpush1.msra.mxu0 %v2207
    %2209 = vmatprep.subr.mxu0 0.0
    %v2210 = vand.u32 %v29, 4294901760
    %v2211 = vsub.f32 %v29, %v2210
    %v2212 = vand.u32 %v2211, 4294901760
    %v2213 = vsub.f32 %v2211, %v2212
    %v2214 = vand.u32 %v2213, 4294901760
    %2215 = vmatpush1.msra.mxu0 %v2214
    %2216 = vmatprep.subr.mxu0 0.0
    %v2217 = vand.u32 %v30, 4294901760
    %v2218 = vsub.f32 %v30, %v2217
    %v2219 = vand.u32 %v2218, 4294901760
    %v2220 = vsub.f32 %v2218, %v2219
    %v2221 = vand.u32 %v2220, 4294901760
    %2222 = vmatpush1.msra.mxu0 %v2221
    %2223 = vmatprep.subr.mxu0 0.0
    %v2224 = vand.u32 %v31, 4294901760
    %v2225 = vsub.f32 %v31, %v2224
    %v2226 = vand.u32 %v2225, 4294901760
    %v2227 = vsub.f32 %v2225, %v2226
    %v2228 = vand.u32 %v2227, 4294901760
    %2229 = vmatpush1.msra.mxu0 %v2228
    %2230 = vmatprep.subr.mxu0 0.0
    %v2231 = vand.u32 %v32, 4294901760
    %v2232 = vsub.f32 %v32, %v2231
    %v2233 = vand.u32 %v2232, 4294901760
    %v2234 = vsub.f32 %v2232, %v2233
    %v2235 = vand.u32 %v2234, 4294901760
    %2236 = vmatpush1.msra.mxu0 %v2235
    %2237 = vmatprep.subr.mxu0 0.0
    %v2238 = vand.u32 %v33, 4294901760
    %v2239 = vsub.f32 %v33, %v2238
    %v2240 = vand.u32 %v2239, 4294901760
    %v2241 = vsub.f32 %v2239, %v2240
    %v2242 = vand.u32 %v2241, 4294901760
    %2243 = vmatpush1.msra.mxu0 %v2242
    %2244 = vmatprep.subr.mxu0 0.0
    %v2245 = vand.u32 %v34, 4294901760
    %v2246 = vsub.f32 %v34, %v2245
    %v2247 = vand.u32 %v2246, 4294901760
    %v2248 = vsub.f32 %v2246, %v2247
    %v2249 = vand.u32 %v2248, 4294901760
    %2250 = vmatpush1.msra.mxu0 %v2249
    %2251 = vmatprep.subr.mxu0 0.0
    %v2252 = vand.u32 %v35, 4294901760
    %v2253 = vsub.f32 %v35, %v2252
    %v2254 = vand.u32 %v2253, 4294901760
    %v2255 = vsub.f32 %v2253, %v2254
    %v2256 = vand.u32 %v2255, 4294901760
    %2257 = vmatpush1.msra.mxu0 %v2256
    %2258 = vmatprep.subr.mxu0 0.0
    %v2259 = vand.u32 %v36, 4294901760
    %v2260 = vsub.f32 %v36, %v2259
    %v2261 = vand.u32 %v2260, 4294901760
    %v2262 = vsub.f32 %v2260, %v2261
    %v2263 = vand.u32 %v2262, 4294901760
    %2264 = vmatpush1.msra.mxu0 %v2263
    %2265 = vmatprep.subr.mxu0 0.0
    %v2266 = vand.u32 %v37, 4294901760
    %v2267 = vsub.f32 %v37, %v2266
    %v2268 = vand.u32 %v2267, 4294901760
    %v2269 = vsub.f32 %v2267, %v2268
    %v2270 = vand.u32 %v2269, 4294901760
    %2271 = vmatpush1.msra.mxu0 %v2270
    %2272 = vmatprep.subr.mxu0 0.0
    %v2273 = vand.u32 %v38, 4294901760
    %v2274 = vsub.f32 %v38, %v2273
    %v2275 = vand.u32 %v2274, 4294901760
    %v2276 = vsub.f32 %v2274, %v2275
    %v2277 = vand.u32 %v2276, 4294901760
    %2278 = vmatpush1.msra.mxu0 %v2277
    %2279 = vmatprep.subr.mxu0 0.0
    %v2280 = vand.u32 %v39, 4294901760
    %v2281 = vsub.f32 %v39, %v2280
    %v2282 = vand.u32 %v2281, 4294901760
    %v2283 = vsub.f32 %v2281, %v2282
    %v2284 = vand.u32 %v2283, 4294901760
    %2285 = vmatpush1.msra.mxu0 %v2284
    %2286 = vmatprep.subr.mxu0 0.0
    %v2287 = vand.u32 %v40, 4294901760
    %v2288 = vsub.f32 %v40, %v2287
    %v2289 = vand.u32 %v2288, 4294901760
    %v2290 = vsub.f32 %v2288, %v2289
    %v2291 = vand.u32 %v2290, 4294901760
    %2292 = vmatpush1.msra.mxu0 %v2291
    %2293 = vmatprep.subr.mxu0 0.0
    %v2294 = vand.u32 %v41, 4294901760
    %v2295 = vsub.f32 %v41, %v2294
    %v2296 = vand.u32 %v2295, 4294901760
    %v2297 = vsub.f32 %v2295, %v2296
    %v2298 = vand.u32 %v2297, 4294901760
    %2299 = vmatpush1.msra.mxu0 %v2298
    %2300 = vmatprep.subr.mxu0 0.0
    %v2301 = vand.u32 %v42, 4294901760
    %v2302 = vsub.f32 %v42, %v2301
    %v2303 = vand.u32 %v2302, 4294901760
    %v2304 = vsub.f32 %v2302, %v2303
    %v2305 = vand.u32 %v2304, 4294901760
    %2306 = vmatpush1.msra.mxu0 %v2305
    %2307 = vmatprep.subr.mxu0 0.0
    %2308 = vmatpush1.msra.mxu0 0.0
    %2309 = vmatprep.subr.mxu0 0.0
    %2310 = vmatpush1.msra.mxu0 0.0
    %2311 = vmatprep.subr.mxu0 0.0
    %2312 = vmatpush1.msra.mxu0 0.0
    %2313 = vmatprep.subr.mxu0 0.0
    %2314 = vmatpush1.msra.mxu0 0.0
    %2315 = vmatprep.subr.mxu0 0.0
    %2316 = vmatpush1.msra.mxu0 0.0
    %2317 = vmatprep.subr.mxu0 0.0
    %2318 = vmatpush1.msra.mxu0 0.0
    %2319 = vmatprep.subr.mxu0 0.0
    %2320 = vmatpush1.msra.mxu0 0.0
    %2321 = vmatprep.subr.mxu0 0.0
    %2322 = vmatpush1.msra.mxu0 0.0
    %2323 = vmatprep.subr.mxu0 0.0
    %2324 = vmatpush1.msra.mxu0 0.0
    %2325 = vmatprep.subr.mxu0 0.0
    %2326 = vmatpush1.msra.mxu0 0.0
    %2327 = vmatprep.subr.mxu0 0.0
    %2328 = vmatpush1.msra.mxu0 0.0
    %2329 = vmatprep.subr.mxu0 0.0
    %2330 = vmatpush1.msra.mxu0 0.0
    %2331 = vmatprep.subr.mxu0 0.0
    %2332 = vmatpush1.msra.mxu0 0.0
    %2333 = vmatprep.subr.mxu0 0.0
    %2334 = vmatpush1.msra.mxu0 0.0
    %2335 = vmatprep.subr.mxu0 0.0
    %2336 = vmatpush1.msra.mxu0 0.0
    %2337 = vmatprep.subr.mxu0 0.0
    %2338 = vmatpush1.msra.mxu0 0.0
    %2339 = vmatprep.mubr.f32.mxu0 0.0
    %v2340 = vand.u32 %v2103, 4294901760
    %2341 = vmatmul.mubr.f32.gmra.mrb[0].mxu0 %v2340
    %v2342 = vpop.f32.mrb[0].mxu0
    %v2343 = vadd.f32 %v2192, %v2342
    %v2344 = vpop.f32.mrb[0].mxu0
    %2345 = vdwg.mxu0
    %2346 = vmatprep.subr.mxu0 0.0
    %v2347 = vand.u32 %v27, 4294901760
    %v2348 = vsub.f32 %v27, %v2347
    %2349 = vmatpush1.msra.mxu0 %v2348
    %2350 = vmatprep.subr.mxu0 0.0
    %v2351 = vand.u32 %v28, 4294901760
    %v2352 = vsub.f32 %v28, %v2351
    %2353 = vmatpush1.msra.mxu0 %v2352
    %2354 = vmatprep.subr.mxu0 0.0
    %v2355 = vand.u32 %v29, 4294901760
    %v2356 = vsub.f32 %v29, %v2355
    %2357 = vmatpush1.msra.mxu0 %v2356
    %2358 = vmatprep.subr.mxu0 0.0
    %v2359 = vand.u32 %v30, 4294901760
    %v2360 = vsub.f32 %v30, %v2359
    %2361 = vmatpush1.msra.mxu0 %v2360
    %2362 = vmatprep.subr.mxu0 0.0
    %v2363 = vand.u32 %v31, 4294901760
    %v2364 = vsub.f32 %v31, %v2363
    %2365 = vmatpush1.msra.mxu0 %v2364
    %2366 = vmatprep.subr.mxu0 0.0
    %v2367 = vand.u32 %v32, 4294901760
    %v2368 = vsub.f32 %v32, %v2367
    %2369 = vmatpush1.msra.mxu0 %v2368
    %2370 = vmatprep.subr.mxu0 0.0
    %v2371 = vand.u32 %v33, 4294901760
    %v2372 = vsub.f32 %v33, %v2371
    %2373 = vmatpush1.msra.mxu0 %v2372
    %2374 = vmatprep.subr.mxu0 0.0
    %v2375 = vand.u32 %v34, 4294901760
    %v2376 = vsub.f32 %v34, %v2375
    %2377 = vmatpush1.msra.mxu0 %v2376
    %2378 = vmatprep.subr.mxu0 0.0
    %v2379 = vand.u32 %v35, 4294901760
    %v2380 = vsub.f32 %v35, %v2379
    %2381 = vmatpush1.msra.mxu0 %v2380
    %2382 = vmatprep.subr.mxu0 0.0
    %v2383 = vand.u32 %v36, 4294901760
    %v2384 = vsub.f32 %v36, %v2383
    %2385 = vmatpush1.msra.mxu0 %v2384
    %2386 = vmatprep.subr.mxu0 0.0
    %v2387 = vand.u32 %v37, 4294901760
    %v2388 = vsub.f32 %v37, %v2387
    %2389 = vmatpush1.msra.mxu0 %v2388
    %2390 = vmatprep.subr.mxu0 0.0
    %v2391 = vand.u32 %v38, 4294901760
    %v2392 = vsub.f32 %v38, %v2391
    %2393 = vmatpush1.msra.mxu0 %v2392
    %2394 = vmatprep.subr.mxu0 0.0
    %v2395 = vand.u32 %v39, 4294901760
    %v2396 = vsub.f32 %v39, %v2395
    %2397 = vmatpush1.msra.mxu0 %v2396
    %2398 = vmatprep.subr.mxu0 0.0
    %v2399 = vand.u32 %v40, 4294901760
    %v2400 = vsub.f32 %v40, %v2399
    %2401 = vmatpush1.msra.mxu0 %v2400
    %2402 = vmatprep.subr.mxu0 0.0
    %v2403 = vand.u32 %v41, 4294901760
    %v2404 = vsub.f32 %v41, %v2403
    %2405 = vmatpush1.msra.mxu0 %v2404
    %2406 = vmatprep.subr.mxu0 0.0
    %v2407 = vand.u32 %v42, 4294901760
    %v2408 = vsub.f32 %v42, %v2407
    %2409 = vmatpush1.msra.mxu0 %v2408
    %2410 = vmatprep.subr.mxu0 0.0
    %2411 = vmatpush1.msra.mxu0 0.0
    %2412 = vmatprep.subr.mxu0 0.0
    %2413 = vmatpush1.msra.mxu0 0.0
    %2414 = vmatprep.subr.mxu0 0.0
    %2415 = vmatpush1.msra.mxu0 0.0
    %2416 = vmatprep.subr.mxu0 0.0
    %2417 = vmatpush1.msra.mxu0 0.0
    %2418 = vmatprep.subr.mxu0 0.0
    %2419 = vmatpush1.msra.mxu0 0.0
    %2420 = vmatprep.subr.mxu0 0.0
    %2421 = vmatpush1.msra.mxu0 0.0
    %2422 = vmatprep.subr.mxu0 0.0
    %2423 = vmatpush1.msra.mxu0 0.0
    %2424 = vmatprep.subr.mxu0 0.0
    %2425 = vmatpush1.msra.mxu0 0.0
    %2426 = vmatprep.subr.mxu0 0.0
    %2427 = vmatpush1.msra.mxu0 0.0
    %2428 = vmatprep.subr.mxu0 0.0
    %2429 = vmatpush1.msra.mxu0 0.0
    %2430 = vmatprep.subr.mxu0 0.0
    %2431 = vmatpush1.msra.mxu0 0.0
    %2432 = vmatprep.subr.mxu0 0.0
    %2433 = vmatpush1.msra.mxu0 0.0
    %2434 = vmatprep.subr.mxu0 0.0
    %2435 = vmatpush1.msra.mxu0 0.0
    %2436 = vmatprep.subr.mxu0 0.0
    %2437 = vmatpush1.msra.mxu0 0.0
    %2438 = vmatprep.subr.mxu0 0.0
    %2439 = vmatpush1.msra.mxu0 0.0
    %2440 = vmatprep.subr.mxu0 0.0
    %2441 = vmatpush1.msra.mxu0 0.0
    %2442 = vmatprep.mubr.f32.mxu0 0.0
    %v2443 = vand.u32 %v2103, 4294901760
    %v2444 = vsub.f32 %v2103, %v2443
    %2445 = vmatmul.mubr.f32.gmra.mrb[0].mxu0 %v2444
    %v2446 = vpop.f32.mrb[0].mxu0
    %v2447 = vadd.f32 %v2343, %v2446
    %v2448 = vpop.f32.mrb[0].mxu0
    %2449 = vdwg.mxu0
    %2450 = vmatprep.subr.mxu0 0.0
    %v2451 = vand.u32 %v27, 4294901760
    %2452 = vmatpush1.msra.mxu0 %v2451
    %2453 = vmatprep.subr.mxu0 0.0
    %v2454 = vand.u32 %v28, 4294901760
    %2455 = vmatpush1.msra.mxu0 %v2454
    %2456 = vmatprep.subr.mxu0 0.0
    %v2457 = vand.u32 %v29, 4294901760
    %2458 = vmatpush1.msra.mxu0 %v2457
    %2459 = vmatprep.subr.mxu0 0.0
    %v2460 = vand.u32 %v30, 4294901760
    %2461 = vmatpush1.msra.mxu0 %v2460
    %2462 = vmatprep.subr.mxu0 0.0
    %v2463 = vand.u32 %v31, 4294901760
    %2464 = vmatpush1.msra.mxu0 %v2463
    %2465 = vmatprep.subr.mxu0 0.0
    %v2466 = vand.u32 %v32, 4294901760
    %2467 = vmatpush1.msra.mxu0 %v2466
    %2468 = vmatprep.subr.mxu0 0.0
    %v2469 = vand.u32 %v33, 4294901760
    %2470 = vmatpush1.msra.mxu0 %v2469
    %2471 = vmatprep.subr.mxu0 0.0
    %v2472 = vand.u32 %v34, 4294901760
    %2473 = vmatpush1.msra.mxu0 %v2472
    %2474 = vmatprep.subr.mxu0 0.0
    %v2475 = vand.u32 %v35, 4294901760
    %2476 = vmatpush1.msra.mxu0 %v2475
    %2477 = vmatprep.subr.mxu0 0.0
    %v2478 = vand.u32 %v36, 4294901760
    %2479 = vmatpush1.msra.mxu0 %v2478
    %2480 = vmatprep.subr.mxu0 0.0
    %v2481 = vand.u32 %v37, 4294901760
    %2482 = vmatpush1.msra.mxu0 %v2481
    %2483 = vmatprep.subr.mxu0 0.0
    %v2484 = vand.u32 %v38, 4294901760
    %2485 = vmatpush1.msra.mxu0 %v2484
    %2486 = vmatprep.subr.mxu0 0.0
    %v2487 = vand.u32 %v39, 4294901760
    %2488 = vmatpush1.msra.mxu0 %v2487
    %2489 = vmatprep.subr.mxu0 0.0
    %v2490 = vand.u32 %v40, 4294901760
    %2491 = vmatpush1.msra.mxu0 %v2490
    %2492 = vmatprep.subr.mxu0 0.0
    %v2493 = vand.u32 %v41, 4294901760
    %2494 = vmatpush1.msra.mxu0 %v2493
    %2495 = vmatprep.subr.mxu0 0.0
    %v2496 = vand.u32 %v42, 4294901760
    %2497 = vmatpush1.msra.mxu0 %v2496
    %2498 = vmatprep.subr.mxu0 0.0
    %2499 = vmatpush1.msra.mxu0 0.0
    %2500 = vmatprep.subr.mxu0 0.0
    %2501 = vmatpush1.msra.mxu0 0.0
    %2502 = vmatprep.subr.mxu0 0.0
    %2503 = vmatpush1.msra.mxu0 0.0
    %2504 = vmatprep.subr.mxu0 0.0
    %2505 = vmatpush1.msra.mxu0 0.0
    %2506 = vmatprep.subr.mxu0 0.0
    %2507 = vmatpush1.msra.mxu0 0.0
    %2508 = vmatprep.subr.mxu0 0.0
    %2509 = vmatpush1.msra.mxu0 0.0
    %2510 = vmatprep.subr.mxu0 0.0
    %2511 = vmatpush1.msra.mxu0 0.0
    %2512 = vmatprep.subr.mxu0 0.0
    %2513 = vmatpush1.msra.mxu0 0.0
    %2514 = vmatprep.subr.mxu0 0.0
    %2515 = vmatpush1.msra.mxu0 0.0
    %2516 = vmatprep.subr.mxu0 0.0
    %2517 = vmatpush1.msra.mxu0 0.0
    %2518 = vmatprep.subr.mxu0 0.0
    %2519 = vmatpush1.msra.mxu0 0.0
    %2520 = vmatprep.subr.mxu0 0.0
    %2521 = vmatpush1.msra.mxu0 0.0
    %2522 = vmatprep.subr.mxu0 0.0
    %2523 = vmatpush1.msra.mxu0 0.0
    %2524 = vmatprep.subr.mxu0 0.0
    %2525 = vmatpush1.msra.mxu0 0.0
    %2526 = vmatprep.subr.mxu0 0.0
    %2527 = vmatpush1.msra.mxu0 0.0
    %2528 = vmatprep.subr.mxu0 0.0
    %2529 = vmatpush1.msra.mxu0 0.0
    %2530 = vmatprep.mubr.f32.mxu0 0.0
    %v2531 = vand.u32 %v2103, 4294901760
    %v2532 = vsub.f32 %v2103, %v2531
    %v2533 = vand.u32 %v2532, 4294901760
    %2534 = vmatmul.mubr.f32.gmra.mrb[0].mxu0 %v2533
    %v2535 = vpop.f32.mrb[0].mxu0
    %v2536 = vadd.f32 %v2447, %v2535
    %v2537 = vpop.f32.mrb[0].mxu0
    %2538 = vdwg.mxu0
    %2539 = vmatprep.subr.mxu0 0.0
    %v2540 = vand.u32 %v27, 4294901760
    %v2541 = vsub.f32 %v27, %v2540
    %v2542 = vand.u32 %v2541, 4294901760
    %2543 = vmatpush1.msra.mxu0 %v2542
    %2544 = vmatprep.subr.mxu0 0.0
    %v2545 = vand.u32 %v28, 4294901760
    %v2546 = vsub.f32 %v28, %v2545
    %v2547 = vand.u32 %v2546, 4294901760
    %2548 = vmatpush1.msra.mxu0 %v2547
    %2549 = vmatprep.subr.mxu0 0.0
    %v2550 = vand.u32 %v29, 4294901760
    %v2551 = vsub.f32 %v29, %v2550
    %v2552 = vand.u32 %v2551, 4294901760
    %2553 = vmatpush1.msra.mxu0 %v2552
    %2554 = vmatprep.subr.mxu0 0.0
    %v2555 = vand.u32 %v30, 4294901760
    %v2556 = vsub.f32 %v30, %v2555
    %v2557 = vand.u32 %v2556, 4294901760
    %2558 = vmatpush1.msra.mxu0 %v2557
    %2559 = vmatprep.subr.mxu0 0.0
    %v2560 = vand.u32 %v31, 4294901760
    %v2561 = vsub.f32 %v31, %v2560
    %v2562 = vand.u32 %v2561, 4294901760
    %2563 = vmatpush1.msra.mxu0 %v2562
    %2564 = vmatprep.subr.mxu0 0.0
    %v2565 = vand.u32 %v32, 4294901760
    %v2566 = vsub.f32 %v32, %v2565
    %v2567 = vand.u32 %v2566, 4294901760
    %2568 = vmatpush1.msra.mxu0 %v2567
    %2569 = vmatprep.subr.mxu0 0.0
    %v2570 = vand.u32 %v33, 4294901760
    %v2571 = vsub.f32 %v33, %v2570
    %v2572 = vand.u32 %v2571, 4294901760
    %2573 = vmatpush1.msra.mxu0 %v2572
    %2574 = vmatprep.subr.mxu0 0.0
    %v2575 = vand.u32 %v34, 4294901760
    %v2576 = vsub.f32 %v34, %v2575
    %v2577 = vand.u32 %v2576, 4294901760
    %2578 = vmatpush1.msra.mxu0 %v2577
    %2579 = vmatprep.subr.mxu0 0.0
    %v2580 = vand.u32 %v35, 4294901760
    %v2581 = vsub.f32 %v35, %v2580
    %v2582 = vand.u32 %v2581, 4294901760
    %2583 = vmatpush1.msra.mxu0 %v2582
    %2584 = vmatprep.subr.mxu0 0.0
    %v2585 = vand.u32 %v36, 4294901760
    %v2586 = vsub.f32 %v36, %v2585
    %v2587 = vand.u32 %v2586, 4294901760
    %2588 = vmatpush1.msra.mxu0 %v2587
    %2589 = vmatprep.subr.mxu0 0.0
    %v2590 = vand.u32 %v37, 4294901760
    %v2591 = vsub.f32 %v37, %v2590
    %v2592 = vand.u32 %v2591, 4294901760
    %2593 = vmatpush1.msra.mxu0 %v2592
    %2594 = vmatprep.subr.mxu0 0.0
    %v2595 = vand.u32 %v38, 4294901760
    %v2596 = vsub.f32 %v38, %v2595
    %v2597 = vand.u32 %v2596, 4294901760
    %2598 = vmatpush1.msra.mxu0 %v2597
    %2599 = vmatprep.subr.mxu0 0.0
    %v2600 = vand.u32 %v39, 4294901760
    %v2601 = vsub.f32 %v39, %v2600
    %v2602 = vand.u32 %v2601, 4294901760
    %2603 = vmatpush1.msra.mxu0 %v2602
    %2604 = vmatprep.subr.mxu0 0.0
    %v2605 = vand.u32 %v40, 4294901760
    %v2606 = vsub.f32 %v40, %v2605
    %v2607 = vand.u32 %v2606, 4294901760
    %2608 = vmatpush1.msra.mxu0 %v2607
    %2609 = vmatprep.subr.mxu0 0.0
    %v2610 = vand.u32 %v41, 4294901760
    %v2611 = vsub.f32 %v41, %v2610
    %v2612 = vand.u32 %v2611, 4294901760
    %2613 = vmatpush1.msra.mxu0 %v2612
    %2614 = vmatprep.subr.mxu0 0.0
    %v2615 = vand.u32 %v42, 4294901760
    %v2616 = vsub.f32 %v42, %v2615
    %v2617 = vand.u32 %v2616, 4294901760
    %2618 = vmatpush1.msra.mxu0 %v2617
    %2619 = vmatprep.subr.mxu0 0.0
    %2620 = vmatpush1.msra.mxu0 0.0
    %2621 = vmatprep.subr.mxu0 0.0
    %2622 = vmatpush1.msra.mxu0 0.0
    %2623 = vmatprep.subr.mxu0 0.0
    %2624 = vmatpush1.msra.mxu0 0.0
    %2625 = vmatprep.subr.mxu0 0.0
    %2626 = vmatpush1.msra.mxu0 0.0
    %2627 = vmatprep.subr.mxu0 0.0
    %2628 = vmatpush1.msra.mxu0 0.0
    %2629 = vmatprep.subr.mxu0 0.0
    %2630 = vmatpush1.msra.mxu0 0.0
    %2631 = vmatprep.subr.mxu0 0.0
    %2632 = vmatpush1.msra.mxu0 0.0
    %2633 = vmatprep.subr.mxu0 0.0
    %2634 = vmatpush1.msra.mxu0 0.0
    %2635 = vmatprep.subr.mxu0 0.0
    %2636 = vmatpush1.msra.mxu0 0.0
    %2637 = vmatprep.subr.mxu0 0.0
    %2638 = vmatpush1.msra.mxu0 0.0
    %2639 = vmatprep.subr.mxu0 0.0
    %2640 = vmatpush1.msra.mxu0 0.0
    %2641 = vmatprep.subr.mxu0 0.0
    %2642 = vmatpush1.msra.mxu0 0.0
    %2643 = vmatprep.subr.mxu0 0.0
    %2644 = vmatpush1.msra.mxu0 0.0
    %2645 = vmatprep.subr.mxu0 0.0
    %2646 = vmatpush1.msra.mxu0 0.0
    %2647 = vmatprep.subr.mxu0 0.0
    %2648 = vmatpush1.msra.mxu0 0.0
    %2649 = vmatprep.subr.mxu0 0.0
    %2650 = vmatpush1.msra.mxu0 0.0
    %2651 = vmatprep.mubr.f32.mxu0 0.0
    %v2652 = vand.u32 %v2103, 4294901760
    %2653 = vmatmul.mubr.f32.gmra.mrb[0].mxu0 %v2652
    %v2654 = vpop.f32.mrb[0].mxu0
    %v2655 = vadd.f32 %v2536, %v2654
    %v2656 = vpop.f32.mrb[0].mxu0
    %2657 = vdwg.mxu0
    %2658 = vmatprep.subr.mxu0 0.0
    %v2659 = vand.u32 %v27, 4294901760
    %2660 = vmatpush1.msra.mxu0 %v2659
    %2661 = vmatprep.subr.mxu0 0.0
    %v2662 = vand.u32 %v28, 4294901760
    %2663 = vmatpush1.msra.mxu0 %v2662
    %2664 = vmatprep.subr.mxu0 0.0
    %v2665 = vand.u32 %v29, 4294901760
    %2666 = vmatpush1.msra.mxu0 %v2665
    %2667 = vmatprep.subr.mxu0 0.0
    %v2668 = vand.u32 %v30, 4294901760
    %2669 = vmatpush1.msra.mxu0 %v2668
    %2670 = vmatprep.subr.mxu0 0.0
    %v2671 = vand.u32 %v31, 4294901760
    %2672 = vmatpush1.msra.mxu0 %v2671
    %2673 = vmatprep.subr.mxu0 0.0
    %v2674 = vand.u32 %v32, 4294901760
    %2675 = vmatpush1.msra.mxu0 %v2674
    %2676 = vmatprep.subr.mxu0 0.0
    %v2677 = vand.u32 %v33, 4294901760
    %2678 = vmatpush1.msra.mxu0 %v2677
    %2679 = vmatprep.subr.mxu0 0.0
    %v2680 = vand.u32 %v34, 4294901760
    %2681 = vmatpush1.msra.mxu0 %v2680
    %2682 = vmatprep.subr.mxu0 0.0
    %v2683 = vand.u32 %v35, 4294901760
    %2684 = vmatpush1.msra.mxu0 %v2683
    %2685 = vmatprep.subr.mxu0 0.0
    %v2686 = vand.u32 %v36, 4294901760
    %2687 = vmatpush1.msra.mxu0 %v2686
    %2688 = vmatprep.subr.mxu0 0.0
    %v2689 = vand.u32 %v37, 4294901760
    %2690 = vmatpush1.msra.mxu0 %v2689
    %2691 = vmatprep.subr.mxu0 0.0
    %v2692 = vand.u32 %v38, 4294901760
    %2693 = vmatpush1.msra.mxu0 %v2692
    %2694 = vmatprep.subr.mxu0 0.0
    %v2695 = vand.u32 %v39, 4294901760
    %2696 = vmatpush1.msra.mxu0 %v2695
    %2697 = vmatprep.subr.mxu0 0.0
    %v2698 = vand.u32 %v40, 4294901760
    %2699 = vmatpush1.msra.mxu0 %v2698
    %2700 = vmatprep.subr.mxu0 0.0
    %v2701 = vand.u32 %v41, 4294901760
    %2702 = vmatpush1.msra.mxu0 %v2701
    %2703 = vmatprep.subr.mxu0 0.0
    %v2704 = vand.u32 %v42, 4294901760
    %2705 = vmatpush1.msra.mxu0 %v2704
    %2706 = vmatprep.subr.mxu0 0.0
    %2707 = vmatpush1.msra.mxu0 0.0
    %2708 = vmatprep.subr.mxu0 0.0
    %2709 = vmatpush1.msra.mxu0 0.0
    %2710 = vmatprep.subr.mxu0 0.0
    %2711 = vmatpush1.msra.mxu0 0.0
    %2712 = vmatprep.subr.mxu0 0.0
    %2713 = vmatpush1.msra.mxu0 0.0
    %2714 = vmatprep.subr.mxu0 0.0
    %2715 = vmatpush1.msra.mxu0 0.0
    %2716 = vmatprep.subr.mxu0 0.0
    %2717 = vmatpush1.msra.mxu0 0.0
    %2718 = vmatprep.subr.mxu0 0.0
    %2719 = vmatpush1.msra.mxu0 0.0
    %2720 = vmatprep.subr.mxu0 0.0
    %2721 = vmatpush1.msra.mxu0 0.0
    %2722 = vmatprep.subr.mxu0 0.0
    %2723 = vmatpush1.msra.mxu0 0.0
    %2724 = vmatprep.subr.mxu0 0.0
    %2725 = vmatpush1.msra.mxu0 0.0
    %2726 = vmatprep.subr.mxu0 0.0
    %2727 = vmatpush1.msra.mxu0 0.0
    %2728 = vmatprep.subr.mxu0 0.0
    %2729 = vmatpush1.msra.mxu0 0.0
    %2730 = vmatprep.subr.mxu0 0.0
    %2731 = vmatpush1.msra.mxu0 0.0
    %2732 = vmatprep.subr.mxu0 0.0
    %2733 = vmatpush1.msra.mxu0 0.0
    %2734 = vmatprep.subr.mxu0 0.0
    %2735 = vmatpush1.msra.mxu0 0.0
    %2736 = vmatprep.subr.mxu0 0.0
    %2737 = vmatpush1.msra.mxu0 0.0
    %2738 = vmatprep.mubr.f32.mxu0 0.0
    %v2739 = vand.u32 %v2103, 4294901760
    %2740 = vmatmul.mubr.f32.gmra.mrb[0].mxu0 %v2739
    %v2741 = vpop.f32.mrb[0].mxu0
    %v2742 = vadd.f32 %v2655, %v2741
    %v2743 = vpop.f32.mrb[0].mxu0
    %2744 = vdwg.mxu0
    %v2745 = vlog2.pop %v2097
    %v2746 = vmul.f32 %v2745, 0.6931472
    %v2747 = vadd.f32 %v2746, %v2742
    %v2748 = vmul.f32 %v1423, %v21
    %2749 = vmatprep.subr.mxu0 0.0
    %v2750 = vand.u32 %v27, 4294901760
    %2751 = vmatpush1.msra.mxu0 %v2750
    %2752 = vmatprep.subr.mxu0 0.0
    %v2753 = vand.u32 %v28, 4294901760
    %2754 = vmatpush1.msra.mxu0 %v2753
    %2755 = vmatprep.subr.mxu0 0.0
    %v2756 = vand.u32 %v29, 4294901760
    %2757 = vmatpush1.msra.mxu0 %v2756
    %2758 = vmatprep.subr.mxu0 0.0
    %v2759 = vand.u32 %v30, 4294901760
    %2760 = vmatpush1.msra.mxu0 %v2759
    %2761 = vmatprep.subr.mxu0 0.0
    %v2762 = vand.u32 %v31, 4294901760
    %2763 = vmatpush1.msra.mxu0 %v2762
    %2764 = vmatprep.subr.mxu0 0.0
    %v2765 = vand.u32 %v32, 4294901760
    %2766 = vmatpush1.msra.mxu0 %v2765
    %2767 = vmatprep.subr.mxu0 0.0
    %v2768 = vand.u32 %v33, 4294901760
    %2769 = vmatpush1.msra.mxu0 %v2768
    %2770 = vmatprep.subr.mxu0 0.0
    %v2771 = vand.u32 %v34, 4294901760
    %2772 = vmatpush1.msra.mxu0 %v2771
    %2773 = vmatprep.subr.mxu0 0.0
    %v2774 = vand.u32 %v35, 4294901760
    %2775 = vmatpush1.msra.mxu0 %v2774
    %2776 = vmatprep.subr.mxu0 0.0
    %v2777 = vand.u32 %v36, 4294901760
    %2778 = vmatpush1.msra.mxu0 %v2777
    %2779 = vmatprep.subr.mxu0 0.0
    %v2780 = vand.u32 %v37, 4294901760
    %2781 = vmatpush1.msra.mxu0 %v2780
    %2782 = vmatprep.subr.mxu0 0.0
    %v2783 = vand.u32 %v38, 4294901760
    %2784 = vmatpush1.msra.mxu0 %v2783
    %2785 = vmatprep.subr.mxu0 0.0
    %v2786 = vand.u32 %v39, 4294901760
    %2787 = vmatpush1.msra.mxu0 %v2786
    %2788 = vmatprep.subr.mxu0 0.0
    %v2789 = vand.u32 %v40, 4294901760
    %2790 = vmatpush1.msra.mxu0 %v2789
    %2791 = vmatprep.subr.mxu0 0.0
    %v2792 = vand.u32 %v41, 4294901760
    %2793 = vmatpush1.msra.mxu0 %v2792
    %2794 = vmatprep.subr.mxu0 0.0
    %v2795 = vand.u32 %v42, 4294901760
    %2796 = vmatpush1.msra.mxu0 %v2795
    %2797 = vmatprep.subr.mxu0 0.0
    %2798 = vmatpush1.msra.mxu0 0.0
    %2799 = vmatprep.subr.mxu0 0.0
    %2800 = vmatpush1.msra.mxu0 0.0
    %2801 = vmatprep.subr.mxu0 0.0
    %2802 = vmatpush1.msra.mxu0 0.0
    %2803 = vmatprep.subr.mxu0 0.0
    %2804 = vmatpush1.msra.mxu0 0.0
    %2805 = vmatprep.subr.mxu0 0.0
    %2806 = vmatpush1.msra.mxu0 0.0
    %2807 = vmatprep.subr.mxu0 0.0
    %2808 = vmatpush1.msra.mxu0 0.0
    %2809 = vmatprep.subr.mxu0 0.0
    %2810 = vmatpush1.msra.mxu0 0.0
    %2811 = vmatprep.subr.mxu0 0.0
    %2812 = vmatpush1.msra.mxu0 0.0
    %2813 = vmatprep.subr.mxu0 0.0
    %2814 = vmatpush1.msra.mxu0 0.0
    %2815 = vmatprep.subr.mxu0 0.0
    %2816 = vmatpush1.msra.mxu0 0.0
    %2817 = vmatprep.subr.mxu0 0.0
    %2818 = vmatpush1.msra.mxu0 0.0
    %2819 = vmatprep.subr.mxu0 0.0
    %2820 = vmatpush1.msra.mxu0 0.0
    %2821 = vmatprep.subr.mxu0 0.0
    %2822 = vmatpush1.msra.mxu0 0.0
    %2823 = vmatprep.subr.mxu0 0.0
    %2824 = vmatpush1.msra.mxu0 0.0
    %2825 = vmatprep.subr.mxu0 0.0
    %2826 = vmatpush1.msra.mxu0 0.0
    %2827 = vmatprep.subr.mxu0 0.0
    %2828 = vmatpush1.msra.mxu0 0.0
    %2829 = vmatprep.mubr.f32.mxu0 0.0
    %v2830 = vand.u32 %v2748, 4294901760
    %v2831 = vsub.f32 %v2748, %v2830
    %v2832 = vand.u32 %v2831, 4294901760
    %v2833 = vsub.f32 %v2831, %v2832
    %v2834 = vand.u32 %v2833, 4294901760
    %2835 = vmatmul.mubr.f32.gmra.mrb[0].mxu0 %v2834
    %v2836 = vpop.f32.mrb[0].mxu0
    %v2837 = vadd.f32 0.0, %v2836
    %v2838 = vpop.f32.mrb[0].mxu0
    %2839 = vdwg.mxu0
    %2840 = vmatprep.subr.mxu0 0.0
    %v2841 = vand.u32 %v27, 4294901760
    %v2842 = vsub.f32 %v27, %v2841
    %v2843 = vand.u32 %v2842, 4294901760
    %v2844 = vsub.f32 %v2842, %v2843
    %v2845 = vand.u32 %v2844, 4294901760
    %2846 = vmatpush1.msra.mxu0 %v2845
    %2847 = vmatprep.subr.mxu0 0.0
    %v2848 = vand.u32 %v28, 4294901760
    %v2849 = vsub.f32 %v28, %v2848
    %v2850 = vand.u32 %v2849, 4294901760
    %v2851 = vsub.f32 %v2849, %v2850
    %v2852 = vand.u32 %v2851, 4294901760
    %2853 = vmatpush1.msra.mxu0 %v2852
    %2854 = vmatprep.subr.mxu0 0.0
    %v2855 = vand.u32 %v29, 4294901760
    %v2856 = vsub.f32 %v29, %v2855
    %v2857 = vand.u32 %v2856, 4294901760
    %v2858 = vsub.f32 %v2856, %v2857
    %v2859 = vand.u32 %v2858, 4294901760
    %2860 = vmatpush1.msra.mxu0 %v2859
    %2861 = vmatprep.subr.mxu0 0.0
    %v2862 = vand.u32 %v30, 4294901760
    %v2863 = vsub.f32 %v30, %v2862
    %v2864 = vand.u32 %v2863, 4294901760
    %v2865 = vsub.f32 %v2863, %v2864
    %v2866 = vand.u32 %v2865, 4294901760
    %2867 = vmatpush1.msra.mxu0 %v2866
    %2868 = vmatprep.subr.mxu0 0.0
    %v2869 = vand.u32 %v31, 4294901760
    %v2870 = vsub.f32 %v31, %v2869
    %v2871 = vand.u32 %v2870, 4294901760
    %v2872 = vsub.f32 %v2870, %v2871
    %v2873 = vand.u32 %v2872, 4294901760
    %2874 = vmatpush1.msra.mxu0 %v2873
    %2875 = vmatprep.subr.mxu0 0.0
    %v2876 = vand.u32 %v32, 4294901760
    %v2877 = vsub.f32 %v32, %v2876
    %v2878 = vand.u32 %v2877, 4294901760
    %v2879 = vsub.f32 %v2877, %v2878
    %v2880 = vand.u32 %v2879, 4294901760
    %2881 = vmatpush1.msra.mxu0 %v2880
    %2882 = vmatprep.subr.mxu0 0.0
    %v2883 = vand.u32 %v33, 4294901760
    %v2884 = vsub.f32 %v33, %v2883
    %v2885 = vand.u32 %v2884, 4294901760
    %v2886 = vsub.f32 %v2884, %v2885
    %v2887 = vand.u32 %v2886, 4294901760
    %2888 = vmatpush1.msra.mxu0 %v2887
    %2889 = vmatprep.subr.mxu0 0.0
    %v2890 = vand.u32 %v34, 4294901760
    %v2891 = vsub.f32 %v34, %v2890
    %v2892 = vand.u32 %v2891, 4294901760
    %v2893 = vsub.f32 %v2891, %v2892
    %v2894 = vand.u32 %v2893, 4294901760
    %2895 = vmatpush1.msra.mxu0 %v2894
    %2896 = vmatprep.subr.mxu0 0.0
    %v2897 = vand.u32 %v35, 4294901760
    %v2898 = vsub.f32 %v35, %v2897
    %v2899 = vand.u32 %v2898, 4294901760
    %v2900 = vsub.f32 %v2898, %v2899
    %v2901 = vand.u32 %v2900, 4294901760
    %2902 = vmatpush1.msra.mxu0 %v2901
    %2903 = vmatprep.subr.mxu0 0.0
    %v2904 = vand.u32 %v36, 4294901760
    %v2905 = vsub.f32 %v36, %v2904
    %v2906 = vand.u32 %v2905, 4294901760
    %v2907 = vsub.f32 %v2905, %v2906
    %v2908 = vand.u32 %v2907, 4294901760
    %2909 = vmatpush1.msra.mxu0 %v2908
    %2910 = vmatprep.subr.mxu0 0.0
    %v2911 = vand.u32 %v37, 4294901760
    %v2912 = vsub.f32 %v37, %v2911
    %v2913 = vand.u32 %v2912, 4294901760
    %v2914 = vsub.f32 %v2912, %v2913
    %v2915 = vand.u32 %v2914, 4294901760
    %2916 = vmatpush1.msra.mxu0 %v2915
    %2917 = vmatprep.subr.mxu0 0.0
    %v2918 = vand.u32 %v38, 4294901760
    %v2919 = vsub.f32 %v38, %v2918
    %v2920 = vand.u32 %v2919, 4294901760
    %v2921 = vsub.f32 %v2919, %v2920
    %v2922 = vand.u32 %v2921, 4294901760
    %2923 = vmatpush1.msra.mxu0 %v2922
    %2924 = vmatprep.subr.mxu0 0.0
    %v2925 = vand.u32 %v39, 4294901760
    %v2926 = vsub.f32 %v39, %v2925
    %v2927 = vand.u32 %v2926, 4294901760
    %v2928 = vsub.f32 %v2926, %v2927
    %v2929 = vand.u32 %v2928, 4294901760
    %2930 = vmatpush1.msra.mxu0 %v2929
    %2931 = vmatprep.subr.mxu0 0.0
    %v2932 = vand.u32 %v40, 4294901760
    %v2933 = vsub.f32 %v40, %v2932
    %v2934 = vand.u32 %v2933, 4294901760
    %v2935 = vsub.f32 %v2933, %v2934
    %v2936 = vand.u32 %v2935, 4294901760
    %2937 = vmatpush1.msra.mxu0 %v2936
    %2938 = vmatprep.subr.mxu0 0.0
    %v2939 = vand.u32 %v41, 4294901760
    %v2940 = vsub.f32 %v41, %v2939
    %v2941 = vand.u32 %v2940, 4294901760
    %v2942 = vsub.f32 %v2940, %v2941
    %v2943 = vand.u32 %v2942, 4294901760
    %2944 = vmatpush1.msra.mxu0 %v2943
    %2945 = vmatprep.subr.mxu0 0.0
    %v2946 = vand.u32 %v42, 4294901760
    %v2947 = vsub.f32 %v42, %v2946
    %v2948 = vand.u32 %v2947, 4294901760
    %v2949 = vsub.f32 %v2947, %v2948
    %v2950 = vand.u32 %v2949, 4294901760
    %2951 = vmatpush1.msra.mxu0 %v2950
    %2952 = vmatprep.subr.mxu0 0.0
    %2953 = vmatpush1.msra.mxu0 0.0
    %2954 = vmatprep.subr.mxu0 0.0
    %2955 = vmatpush1.msra.mxu0 0.0
    %2956 = vmatprep.subr.mxu0 0.0
    %2957 = vmatpush1.msra.mxu0 0.0
    %2958 = vmatprep.subr.mxu0 0.0
    %2959 = vmatpush1.msra.mxu0 0.0
    %2960 = vmatprep.subr.mxu0 0.0
    %2961 = vmatpush1.msra.mxu0 0.0
    %2962 = vmatprep.subr.mxu0 0.0
    %2963 = vmatpush1.msra.mxu0 0.0
    %2964 = vmatprep.subr.mxu0 0.0
    %2965 = vmatpush1.msra.mxu0 0.0
    %2966 = vmatprep.subr.mxu0 0.0
    %2967 = vmatpush1.msra.mxu0 0.0
    %2968 = vmatprep.subr.mxu0 0.0
    %2969 = vmatpush1.msra.mxu0 0.0
    %2970 = vmatprep.subr.mxu0 0.0
    %2971 = vmatpush1.msra.mxu0 0.0
    %2972 = vmatprep.subr.mxu0 0.0
    %2973 = vmatpush1.msra.mxu0 0.0
    %2974 = vmatprep.subr.mxu0 0.0
    %2975 = vmatpush1.msra.mxu0 0.0
    %2976 = vmatprep.subr.mxu0 0.0
    %2977 = vmatpush1.msra.mxu0 0.0
    %2978 = vmatprep.subr.mxu0 0.0
    %2979 = vmatpush1.msra.mxu0 0.0
    %2980 = vmatprep.subr.mxu0 0.0
    %2981 = vmatpush1.msra.mxu0 0.0
    %2982 = vmatprep.subr.mxu0 0.0
    %2983 = vmatpush1.msra.mxu0 0.0
    %2984 = vmatprep.mubr.f32.mxu0 0.0
    %v2985 = vand.u32 %v2748, 4294901760
    %2986 = vmatmul.mubr.f32.gmra.mrb[0].mxu0 %v2985
    %v2987 = vpop.f32.mrb[0].mxu0
    %v2988 = vadd.f32 %v2837, %v2987
    %v2989 = vpop.f32.mrb[0].mxu0
    %2990 = vdwg.mxu0
    %2991 = vmatprep.subr.mxu0 0.0
    %v2992 = vand.u32 %v27, 4294901760
    %v2993 = vsub.f32 %v27, %v2992
    %2994 = vmatpush1.msra.mxu0 %v2993
    %2995 = vmatprep.subr.mxu0 0.0
    %v2996 = vand.u32 %v28, 4294901760
    %v2997 = vsub.f32 %v28, %v2996
    %2998 = vmatpush1.msra.mxu0 %v2997
    %2999 = vmatprep.subr.mxu0 0.0
    %v3000 = vand.u32 %v29, 4294901760
    %v3001 = vsub.f32 %v29, %v3000
    %3002 = vmatpush1.msra.mxu0 %v3001
    %3003 = vmatprep.subr.mxu0 0.0
    %v3004 = vand.u32 %v30, 4294901760
    %v3005 = vsub.f32 %v30, %v3004
    %3006 = vmatpush1.msra.mxu0 %v3005
    %3007 = vmatprep.subr.mxu0 0.0
    %v3008 = vand.u32 %v31, 4294901760
    %v3009 = vsub.f32 %v31, %v3008
    %3010 = vmatpush1.msra.mxu0 %v3009
    %3011 = vmatprep.subr.mxu0 0.0
    %v3012 = vand.u32 %v32, 4294901760
    %v3013 = vsub.f32 %v32, %v3012
    %3014 = vmatpush1.msra.mxu0 %v3013
    %3015 = vmatprep.subr.mxu0 0.0
    %v3016 = vand.u32 %v33, 4294901760
    %v3017 = vsub.f32 %v33, %v3016
    %3018 = vmatpush1.msra.mxu0 %v3017
    %3019 = vmatprep.subr.mxu0 0.0
    %v3020 = vand.u32 %v34, 4294901760
    %v3021 = vsub.f32 %v34, %v3020
    %3022 = vmatpush1.msra.mxu0 %v3021
    %3023 = vmatprep.subr.mxu0 0.0
    %v3024 = vand.u32 %v35, 4294901760
    %v3025 = vsub.f32 %v35, %v3024
    %3026 = vmatpush1.msra.mxu0 %v3025
    %3027 = vmatprep.subr.mxu0 0.0
    %v3028 = vand.u32 %v36, 4294901760
    %v3029 = vsub.f32 %v36, %v3028
    %3030 = vmatpush1.msra.mxu0 %v3029
    %3031 = vmatprep.subr.mxu0 0.0
    %v3032 = vand.u32 %v37, 4294901760
    %v3033 = vsub.f32 %v37, %v3032
    %3034 = vmatpush1.msra.mxu0 %v3033
    %3035 = vmatprep.subr.mxu0 0.0
    %v3036 = vand.u32 %v38, 4294901760
    %v3037 = vsub.f32 %v38, %v3036
    %3038 = vmatpush1.msra.mxu0 %v3037
    %3039 = vmatprep.subr.mxu0 0.0
    %v3040 = vand.u32 %v39, 4294901760
    %v3041 = vsub.f32 %v39, %v3040
    %3042 = vmatpush1.msra.mxu0 %v3041
    %3043 = vmatprep.subr.mxu0 0.0
    %v3044 = vand.u32 %v40, 4294901760
    %v3045 = vsub.f32 %v40, %v3044
    %3046 = vmatpush1.msra.mxu0 %v3045
    %3047 = vmatprep.subr.mxu0 0.0
    %v3048 = vand.u32 %v41, 4294901760
    %v3049 = vsub.f32 %v41, %v3048
    %3050 = vmatpush1.msra.mxu0 %v3049
    %3051 = vmatprep.subr.mxu0 0.0
    %v3052 = vand.u32 %v42, 4294901760
    %v3053 = vsub.f32 %v42, %v3052
    %3054 = vmatpush1.msra.mxu0 %v3053
    %3055 = vmatprep.subr.mxu0 0.0
    %3056 = vmatpush1.msra.mxu0 0.0
    %3057 = vmatprep.subr.mxu0 0.0
    %3058 = vmatpush1.msra.mxu0 0.0
    %3059 = vmatprep.subr.mxu0 0.0
    %3060 = vmatpush1.msra.mxu0 0.0
    %3061 = vmatprep.subr.mxu0 0.0
    %3062 = vmatpush1.msra.mxu0 0.0
    %3063 = vmatprep.subr.mxu0 0.0
    %3064 = vmatpush1.msra.mxu0 0.0
    %3065 = vmatprep.subr.mxu0 0.0
    %3066 = vmatpush1.msra.mxu0 0.0
    %3067 = vmatprep.subr.mxu0 0.0
    %3068 = vmatpush1.msra.mxu0 0.0
    %3069 = vmatprep.subr.mxu0 0.0
    %3070 = vmatpush1.msra.mxu0 0.0
    %3071 = vmatprep.subr.mxu0 0.0
    %3072 = vmatpush1.msra.mxu0 0.0
    %3073 = vmatprep.subr.mxu0 0.0
    %3074 = vmatpush1.msra.mxu0 0.0
    %3075 = vmatprep.subr.mxu0 0.0
    %3076 = vmatpush1.msra.mxu0 0.0
    %3077 = vmatprep.subr.mxu0 0.0
    %3078 = vmatpush1.msra.mxu0 0.0
    %3079 = vmatprep.subr.mxu0 0.0
    %3080 = vmatpush1.msra.mxu0 0.0
    %3081 = vmatprep.subr.mxu0 0.0
    %3082 = vmatpush1.msra.mxu0 0.0
    %3083 = vmatprep.subr.mxu0 0.0
    %3084 = vmatpush1.msra.mxu0 0.0
    %3085 = vmatprep.subr.mxu0 0.0
    %3086 = vmatpush1.msra.mxu0 0.0
    %3087 = vmatprep.mubr.f32.mxu0 0.0
    %v3088 = vand.u32 %v2748, 4294901760
    %v3089 = vsub.f32 %v2748, %v3088
    %3090 = vmatmul.mubr.f32.gmra.mrb[0].mxu0 %v3089
    %v3091 = vpop.f32.mrb[0].mxu0
    %v3092 = vadd.f32 %v2988, %v3091
    %v3093 = vpop.f32.mrb[0].mxu0
    %3094 = vdwg.mxu0
    %3095 = vmatprep.subr.mxu0 0.0
    %v3096 = vand.u32 %v27, 4294901760
    %3097 = vmatpush1.msra.mxu0 %v3096
    %3098 = vmatprep.subr.mxu0 0.0
    %v3099 = vand.u32 %v28, 4294901760
    %3100 = vmatpush1.msra.mxu0 %v3099
    %3101 = vmatprep.subr.mxu0 0.0
    %v3102 = vand.u32 %v29, 4294901760
    %3103 = vmatpush1.msra.mxu0 %v3102
    %3104 = vmatprep.subr.mxu0 0.0
    %v3105 = vand.u32 %v30, 4294901760
    %3106 = vmatpush1.msra.mxu0 %v3105
    %3107 = vmatprep.subr.mxu0 0.0
    %v3108 = vand.u32 %v31, 4294901760
    %3109 = vmatpush1.msra.mxu0 %v3108
    %3110 = vmatprep.subr.mxu0 0.0
    %v3111 = vand.u32 %v32, 4294901760
    %3112 = vmatpush1.msra.mxu0 %v3111
    %3113 = vmatprep.subr.mxu0 0.0
    %v3114 = vand.u32 %v33, 4294901760
    %3115 = vmatpush1.msra.mxu0 %v3114
    %3116 = vmatprep.subr.mxu0 0.0
    %v3117 = vand.u32 %v34, 4294901760
    %3118 = vmatpush1.msra.mxu0 %v3117
    %3119 = vmatprep.subr.mxu0 0.0
    %v3120 = vand.u32 %v35, 4294901760
    %3121 = vmatpush1.msra.mxu0 %v3120
    %3122 = vmatprep.subr.mxu0 0.0
    %v3123 = vand.u32 %v36, 4294901760
    %3124 = vmatpush1.msra.mxu0 %v3123
    %3125 = vmatprep.subr.mxu0 0.0
    %v3126 = vand.u32 %v37, 4294901760
    %3127 = vmatpush1.msra.mxu0 %v3126
    %3128 = vmatprep.subr.mxu0 0.0
    %v3129 = vand.u32 %v38, 4294901760
    %3130 = vmatpush1.msra.mxu0 %v3129
    %3131 = vmatprep.subr.mxu0 0.0
    %v3132 = vand.u32 %v39, 4294901760
    %3133 = vmatpush1.msra.mxu0 %v3132
    %3134 = vmatprep.subr.mxu0 0.0
    %v3135 = vand.u32 %v40, 4294901760
    %3136 = vmatpush1.msra.mxu0 %v3135
    %3137 = vmatprep.subr.mxu0 0.0
    %v3138 = vand.u32 %v41, 4294901760
    %3139 = vmatpush1.msra.mxu0 %v3138
    %3140 = vmatprep.subr.mxu0 0.0
    %v3141 = vand.u32 %v42, 4294901760
    %3142 = vmatpush1.msra.mxu0 %v3141
    %3143 = vmatprep.subr.mxu0 0.0
    %3144 = vmatpush1.msra.mxu0 0.0
    %3145 = vmatprep.subr.mxu0 0.0
    %3146 = vmatpush1.msra.mxu0 0.0
    %3147 = vmatprep.subr.mxu0 0.0
    %3148 = vmatpush1.msra.mxu0 0.0
    %3149 = vmatprep.subr.mxu0 0.0
    %3150 = vmatpush1.msra.mxu0 0.0
    %3151 = vmatprep.subr.mxu0 0.0
    %3152 = vmatpush1.msra.mxu0 0.0
    %3153 = vmatprep.subr.mxu0 0.0
    %3154 = vmatpush1.msra.mxu0 0.0
    %3155 = vmatprep.subr.mxu0 0.0
    %3156 = vmatpush1.msra.mxu0 0.0
    %3157 = vmatprep.subr.mxu0 0.0
    %3158 = vmatpush1.msra.mxu0 0.0
    %3159 = vmatprep.subr.mxu0 0.0
    %3160 = vmatpush1.msra.mxu0 0.0
    %3161 = vmatprep.subr.mxu0 0.0
    %3162 = vmatpush1.msra.mxu0 0.0
    %3163 = vmatprep.subr.mxu0 0.0
    %3164 = vmatpush1.msra.mxu0 0.0
    %3165 = vmatprep.subr.mxu0 0.0
    %3166 = vmatpush1.msra.mxu0 0.0
    %3167 = vmatprep.subr.mxu0 0.0
    %3168 = vmatpush1.msra.mxu0 0.0
    %3169 = vmatprep.subr.mxu0 0.0
    %3170 = vmatpush1.msra.mxu0 0.0
    %3171 = vmatprep.subr.mxu0 0.0
    %3172 = vmatpush1.msra.mxu0 0.0
    %3173 = vmatprep.subr.mxu0 0.0
    %3174 = vmatpush1.msra.mxu0 0.0
    %3175 = vmatprep.mubr.f32.mxu0 0.0
    %v3176 = vand.u32 %v2748, 4294901760
    %v3177 = vsub.f32 %v2748, %v3176
    %v3178 = vand.u32 %v3177, 4294901760
    %3179 = vmatmul.mubr.f32.gmra.mrb[0].mxu0 %v3178
    %v3180 = vpop.f32.mrb[0].mxu0
    %v3181 = vadd.f32 %v3092, %v3180
    %v3182 = vpop.f32.mrb[0].mxu0
    %3183 = vdwg.mxu0
    %3184 = vmatprep.subr.mxu0 0.0
    %v3185 = vand.u32 %v27, 4294901760
    %v3186 = vsub.f32 %v27, %v3185
    %v3187 = vand.u32 %v3186, 4294901760
    %3188 = vmatpush1.msra.mxu0 %v3187
    %3189 = vmatprep.subr.mxu0 0.0
    %v3190 = vand.u32 %v28, 4294901760
    %v3191 = vsub.f32 %v28, %v3190
    %v3192 = vand.u32 %v3191, 4294901760
    %3193 = vmatpush1.msra.mxu0 %v3192
    %3194 = vmatprep.subr.mxu0 0.0
    %v3195 = vand.u32 %v29, 4294901760
    %v3196 = vsub.f32 %v29, %v3195
    %v3197 = vand.u32 %v3196, 4294901760
    %3198 = vmatpush1.msra.mxu0 %v3197
    %3199 = vmatprep.subr.mxu0 0.0
    %v3200 = vand.u32 %v30, 4294901760
    %v3201 = vsub.f32 %v30, %v3200
    %v3202 = vand.u32 %v3201, 4294901760
    %3203 = vmatpush1.msra.mxu0 %v3202
    %3204 = vmatprep.subr.mxu0 0.0
    %v3205 = vand.u32 %v31, 4294901760
    %v3206 = vsub.f32 %v31, %v3205
    %v3207 = vand.u32 %v3206, 4294901760
    %3208 = vmatpush1.msra.mxu0 %v3207
    %3209 = vmatprep.subr.mxu0 0.0
    %v3210 = vand.u32 %v32, 4294901760
    %v3211 = vsub.f32 %v32, %v3210
    %v3212 = vand.u32 %v3211, 4294901760
    %3213 = vmatpush1.msra.mxu0 %v3212
    %3214 = vmatprep.subr.mxu0 0.0
    %v3215 = vand.u32 %v33, 4294901760
    %v3216 = vsub.f32 %v33, %v3215
    %v3217 = vand.u32 %v3216, 4294901760
    %3218 = vmatpush1.msra.mxu0 %v3217
    %3219 = vmatprep.subr.mxu0 0.0
    %v3220 = vand.u32 %v34, 4294901760
    %v3221 = vsub.f32 %v34, %v3220
    %v3222 = vand.u32 %v3221, 4294901760
    %3223 = vmatpush1.msra.mxu0 %v3222
    %3224 = vmatprep.subr.mxu0 0.0
    %v3225 = vand.u32 %v35, 4294901760
    %v3226 = vsub.f32 %v35, %v3225
    %v3227 = vand.u32 %v3226, 4294901760
    %3228 = vmatpush1.msra.mxu0 %v3227
    %3229 = vmatprep.subr.mxu0 0.0
    %v3230 = vand.u32 %v36, 4294901760
    %v3231 = vsub.f32 %v36, %v3230
    %v3232 = vand.u32 %v3231, 4294901760
    %3233 = vmatpush1.msra.mxu0 %v3232
    %3234 = vmatprep.subr.mxu0 0.0
    %v3235 = vand.u32 %v37, 4294901760
    %v3236 = vsub.f32 %v37, %v3235
    %v3237 = vand.u32 %v3236, 4294901760
    %3238 = vmatpush1.msra.mxu0 %v3237
    %3239 = vmatprep.subr.mxu0 0.0
    %v3240 = vand.u32 %v38, 4294901760
    %v3241 = vsub.f32 %v38, %v3240
    %v3242 = vand.u32 %v3241, 4294901760
    %3243 = vmatpush1.msra.mxu0 %v3242
    %3244 = vmatprep.subr.mxu0 0.0
    %v3245 = vand.u32 %v39, 4294901760
    %v3246 = vsub.f32 %v39, %v3245
    %v3247 = vand.u32 %v3246, 4294901760
    %3248 = vmatpush1.msra.mxu0 %v3247
    %3249 = vmatprep.subr.mxu0 0.0
    %v3250 = vand.u32 %v40, 4294901760
    %v3251 = vsub.f32 %v40, %v3250
    %v3252 = vand.u32 %v3251, 4294901760
    %3253 = vmatpush1.msra.mxu0 %v3252
    %3254 = vmatprep.subr.mxu0 0.0
    %v3255 = vand.u32 %v41, 4294901760
    %v3256 = vsub.f32 %v41, %v3255
    %v3257 = vand.u32 %v3256, 4294901760
    %3258 = vmatpush1.msra.mxu0 %v3257
    %3259 = vmatprep.subr.mxu0 0.0
    %v3260 = vand.u32 %v42, 4294901760
    %v3261 = vsub.f32 %v42, %v3260
    %v3262 = vand.u32 %v3261, 4294901760
    %3263 = vmatpush1.msra.mxu0 %v3262
    %3264 = vmatprep.subr.mxu0 0.0
    %3265 = vmatpush1.msra.mxu0 0.0
    %3266 = vmatprep.subr.mxu0 0.0
    %3267 = vmatpush1.msra.mxu0 0.0
    %3268 = vmatprep.subr.mxu0 0.0
    %3269 = vmatpush1.msra.mxu0 0.0
    %3270 = vmatprep.subr.mxu0 0.0
    %3271 = vmatpush1.msra.mxu0 0.0
    %3272 = vmatprep.subr.mxu0 0.0
    %3273 = vmatpush1.msra.mxu0 0.0
    %3274 = vmatprep.subr.mxu0 0.0
    %3275 = vmatpush1.msra.mxu0 0.0
    %3276 = vmatprep.subr.mxu0 0.0
    %3277 = vmatpush1.msra.mxu0 0.0
    %3278 = vmatprep.subr.mxu0 0.0
    %3279 = vmatpush1.msra.mxu0 0.0
    %3280 = vmatprep.subr.mxu0 0.0
    %3281 = vmatpush1.msra.mxu0 0.0
    %3282 = vmatprep.subr.mxu0 0.0
    %3283 = vmatpush1.msra.mxu0 0.0
    %3284 = vmatprep.subr.mxu0 0.0
    %3285 = vmatpush1.msra.mxu0 0.0
    %3286 = vmatprep.subr.mxu0 0.0
    %3287 = vmatpush1.msra.mxu0 0.0
    %3288 = vmatprep.subr.mxu0 0.0
    %3289 = vmatpush1.msra.mxu0 0.0
    %3290 = vmatprep.subr.mxu0 0.0
    %3291 = vmatpush1.msra.mxu0 0.0
    %3292 = vmatprep.subr.mxu0 0.0
    %3293 = vmatpush1.msra.mxu0 0.0
    %3294 = vmatprep.subr.mxu0 0.0
    %3295 = vmatpush1.msra.mxu0 0.0
    %3296 = vmatprep.mubr.f32.mxu0 0.0
    %v3297 = vand.u32 %v2748, 4294901760
    %3298 = vmatmul.mubr.f32.gmra.mrb[0].mxu0 %v3297
    %v3299 = vpop.f32.mrb[0].mxu0
    %v3300 = vadd.f32 %v3181, %v3299
    %v3301 = vpop.f32.mrb[0].mxu0
    %3302 = vdwg.mxu0
    %3303 = vmatprep.subr.mxu0 0.0
    %v3304 = vand.u32 %v27, 4294901760
    %3305 = vmatpush1.msra.mxu0 %v3304
    %3306 = vmatprep.subr.mxu0 0.0
    %v3307 = vand.u32 %v28, 4294901760
    %3308 = vmatpush1.msra.mxu0 %v3307
    %3309 = vmatprep.subr.mxu0 0.0
    %v3310 = vand.u32 %v29, 4294901760
    %3311 = vmatpush1.msra.mxu0 %v3310
    %3312 = vmatprep.subr.mxu0 0.0
    %v3313 = vand.u32 %v30, 4294901760
    %3314 = vmatpush1.msra.mxu0 %v3313
    %3315 = vmatprep.subr.mxu0 0.0
    %v3316 = vand.u32 %v31, 4294901760
    %3317 = vmatpush1.msra.mxu0 %v3316
    %3318 = vmatprep.subr.mxu0 0.0
    %v3319 = vand.u32 %v32, 4294901760
    %3320 = vmatpush1.msra.mxu0 %v3319
    %3321 = vmatprep.subr.mxu0 0.0
    %v3322 = vand.u32 %v33, 4294901760
    %3323 = vmatpush1.msra.mxu0 %v3322
    %3324 = vmatprep.subr.mxu0 0.0
    %v3325 = vand.u32 %v34, 4294901760
    %3326 = vmatpush1.msra.mxu0 %v3325
    %3327 = vmatprep.subr.mxu0 0.0
    %v3328 = vand.u32 %v35, 4294901760
    %3329 = vmatpush1.msra.mxu0 %v3328
    %3330 = vmatprep.subr.mxu0 0.0
    %v3331 = vand.u32 %v36, 4294901760
    %3332 = vmatpush1.msra.mxu0 %v3331
    %3333 = vmatprep.subr.mxu0 0.0
    %v3334 = vand.u32 %v37, 4294901760
    %3335 = vmatpush1.msra.mxu0 %v3334
    %3336 = vmatprep.subr.mxu0 0.0
    %v3337 = vand.u32 %v38, 4294901760
    %3338 = vmatpush1.msra.mxu0 %v3337
    %3339 = vmatprep.subr.mxu0 0.0
    %v3340 = vand.u32 %v39, 4294901760
    %3341 = vmatpush1.msra.mxu0 %v3340
    %3342 = vmatprep.subr.mxu0 0.0
    %v3343 = vand.u32 %v40, 4294901760
    %3344 = vmatpush1.msra.mxu0 %v3343
    %3345 = vmatprep.subr.mxu0 0.0
    %v3346 = vand.u32 %v41, 4294901760
    %3347 = vmatpush1.msra.mxu0 %v3346
    %3348 = vmatprep.subr.mxu0 0.0
    %v3349 = vand.u32 %v42, 4294901760
    %3350 = vmatpush1.msra.mxu0 %v3349
    %3351 = vmatprep.subr.mxu0 0.0
    %3352 = vmatpush1.msra.mxu0 0.0
    %3353 = vmatprep.subr.mxu0 0.0
    %3354 = vmatpush1.msra.mxu0 0.0
    %3355 = vmatprep.subr.mxu0 0.0
    %3356 = vmatpush1.msra.mxu0 0.0
    %3357 = vmatprep.subr.mxu0 0.0
    %3358 = vmatpush1.msra.mxu0 0.0
    %3359 = vmatprep.subr.mxu0 0.0
    %3360 = vmatpush1.msra.mxu0 0.0
    %3361 = vmatprep.subr.mxu0 0.0
    %3362 = vmatpush1.msra.mxu0 0.0
    %3363 = vmatprep.subr.mxu0 0.0
    %3364 = vmatpush1.msra.mxu0 0.0
    %3365 = vmatprep.subr.mxu0 0.0
    %3366 = vmatpush1.msra.mxu0 0.0
    %3367 = vmatprep.subr.mxu0 0.0
    %3368 = vmatpush1.msra.mxu0 0.0
    %3369 = vmatprep.subr.mxu0 0.0
    %3370 = vmatpush1.msra.mxu0 0.0
    %3371 = vmatprep.subr.mxu0 0.0
    %3372 = vmatpush1.msra.mxu0 0.0
    %3373 = vmatprep.subr.mxu0 0.0
    %3374 = vmatpush1.msra.mxu0 0.0
    %3375 = vmatprep.subr.mxu0 0.0
    %3376 = vmatpush1.msra.mxu0 0.0
    %3377 = vmatprep.subr.mxu0 0.0
    %3378 = vmatpush1.msra.mxu0 0.0
    %3379 = vmatprep.subr.mxu0 0.0
    %3380 = vmatpush1.msra.mxu0 0.0
    %3381 = vmatprep.subr.mxu0 0.0
    %3382 = vmatpush1.msra.mxu0 0.0
    %3383 = vmatprep.mubr.f32.mxu0 0.0
    %v3384 = vand.u32 %v2748, 4294901760
    %3385 = vmatmul.mubr.f32.gmra.mrb[0].mxu0 %v3384
    %v3386 = vpop.f32.mrb[0].mxu0
    %v3387 = vadd.f32 %v3300, %v3386
    %v3388 = vpop.f32.mrb[0].mxu0
    %3389 = vdwg.mxu0
    %v3390 = vlaneseq
    %v3391 = vshrl.u32 %v3390, 7
    %v3392 = vstv 0
    %v3393 = vadd.s32 %v3392, %v3391
    %v3394 = vmul.u32 %v3393, 32
    %v3395 = vadd.s32 %v3394, %v76
    %vm3396 = vcmp.lt.s32.totalorder %v3395, 8
    %v3397 = vmul.f32 %v2747, %v1425
    %v3398 = vsub.f32 %v3397, %v3387
    %v3399 = vsel %vm3396, %v3398, 0.0
    %vm3400 = vcmask 253952
    %v3401 = vsel %vm3400, %v3399, 0.0
    %3402 = vadd.xlane.f32.xlu0 %v3401
    %v3403 = vpop.xlane.xlu0 %3402
    %v3404 = vrot.slane %v3403, 4
    %v3405 = vadd.f32 %v3403, %v3404
    %v3406 = vrot.slane %v3405, 2
    %v3407 = vadd.f32 %v3405, %v3406
    %v3408 = vrot.slane %v3407, 1
    %v3409 = vadd.f32 %v3407, %v3408
    %s3410 = vtos %v3409
    %v3411 = vstv %s3410
    %3412 = vst [vmem:[#allocation2] sm:$0xff] %v3411
    // Predicated region
    $region22: #{tpu_custom_call.1} parent=1 // pred_check
      _
    $region23: #{tpu_custom_call.1} parent=1 // pred_check_branch
      %3414 = sbr.rel (0) target = $region25
    $region24: #{tpu_custom_call.1} parent=1 // pred_region
      %s3416 = ssub.s32 128, 128
      %3417 = vsyncadd [#allocation3], %s3416
      %s3419 = sshll.u32 [#allocation2], 4
      %s3420 = int_to_ptr.vmem [resolvable:$true] %s3419
      %3422 = dma.vmem_to_hbm [thread:$0]  %s3420, 128, %s5, [#allocation3]
    $region25: #{tpu_custom_call.1} parent=1 // pred_fallthru
      _
    // Predicated region
    $region26: #{tpu_custom_call.1} parent=1 // pred_check
      _
    $region27: #{tpu_custom_call.1} parent=1 // pred_check_branch
      %3424 = sbr.rel (0) target = $region29
    $region28: #{tpu_custom_call.1} parent=1 // pred_region
      %3425 = dma.done [#allocation3], 128
    $region29: #{tpu_custom_call.1} parent=1 // pred_fallthru
      _
    %3426 = vsyncpa [#allocation3], 1

</llo_original>
